<compile_context>
chip_gen: v5e
topology: v5e:2x2
jax: 0.10.0
libtpu: 0.0.40
codegen_flags: <defaults>
</compile_context>

<pallas_src>
import functools
import math

import jax
import jax.numpy as jnp
import numpy as np
from jax.experimental import pallas as pl
from jax.experimental.pallas import tpu as pltpu


# ----------------------------- small helpers -------------------------------

def _layer_norm(v, w, b, eps):
    m = jnp.mean(v, axis=-1, keepdims=True)
    c = v - m
    var = jnp.mean(c * c, axis=-1, keepdims=True)
    return c * jax.lax.rsqrt(var + eps) * w + b


def _softmax_rows(s):
    s = s - jnp.max(s, axis=-1, keepdims=True)
    e = jnp.exp(s)
    # EUP reciprocal instead of a VPU divide.
    return e * pl.reciprocal(jnp.sum(e, axis=-1, keepdims=True), approx=True)


def _transformer_layer(x, l1w, l1b, wqkv, bqkv, wo, bo, l2w, l2b,
                       f1w, f1b, f2w, f2b, *, batch, num_heads, eps):
    """One pre-LN ViT encoder block on a (B*S, D) f32 slab.

    All wide matmuls (QKV, per-head output-proj accumulation, MLP) run in bf16
    on the MXU with f32 accumulation.  The Q columns of wqkv/bqkv are already
    pre-scaled by 1/sqrt(dh).  There is no per-head concatenate: each head's
    context is K-accumulated through the matching row-slice of wo.
    """
    BS, D = x.shape
    S = BS // batch
    dh = D // num_heads

    # ---- multi-head self-attention (pre-LN) ----
    h = _layer_norm(x, l1w, l1b, eps)
    qkv = jnp.dot(h.astype(jnp.bfloat16), wqkv,
                  preferred_element_type=jnp.float32) + bqkv          # (BS, 3D)

    attn_rows = []
    for b in range(batch):                                            # static unroll
        r0 = b * S
        acc = jnp.zeros((S, D), jnp.float32)
        for hh in range(num_heads):                                   # static unroll
            c = hh * dh
            q = qkv[r0:r0 + S, c:c + dh].astype(jnp.bfloat16)         # pre-scaled
            k = qkv[r0:r0 + S, D + c:D + c + dh].astype(jnp.bfloat16)
            v = qkv[r0:r0 + S, 2 * D + c:2 * D + c + dh].astype(jnp.bfloat16)
            s = jax.lax.dot_general(q, k, (((1,), (1,)), ((), ())),
                                    preferred_element_type=jnp.float32)   # (S, S)
            p = _softmax_rows(s)
            ctx = jnp.dot(p.astype(jnp.bfloat16), v,
                          preferred_element_type=jnp.float32)             # (S, dh)
            # K-accumulate into the output projection (no ctx concat).
            acc = acc + jnp.dot(ctx.astype(jnp.bfloat16), wo[c:c + dh, :],
                                preferred_element_type=jnp.float32)
        attn_rows.append(acc)
    attn = attn_rows[0] if batch == 1 else jnp.concatenate(attn_rows, axis=0)
    x = x + attn + bo                                                 # attention residual

    # ---- MLP (pre-LN) ----
    y = _layer_norm(x, l2w, l2b, eps)
    y = jnp.dot(y.astype(jnp.bfloat16), f1w,
                preferred_element_type=jnp.float32) + f1b
    # TODO(synk): torch nn.GELU() is exact erf-GELU; tanh approximation used
    # since erf is not guaranteed to lower in Mosaic.
    y = jax.nn.gelu(y, approximate=True)
    y = jnp.dot(y.astype(jnp.bfloat16), f2w,
                preferred_element_type=jnp.float32) + f2b
    return x + y                                                      # MLP residual


# ----------------------------- Pallas kernels ------------------------------

def linear_kernel(x_ref, w_ref, b_ref, o_ref):
    # y = x @ w + b     (weights pre-transposed to (K, N), stored bf16)
    y = jnp.dot(x_ref[...].astype(jnp.bfloat16), w_ref[...],
                preferred_element_type=jnp.float32)
    o_ref[...] = (y + b_ref[...]).astype(o_ref.dtype)


def linear(x, w_t, b, max_rows=512):
    """x: (M, K) @ w_t: (K, N) bf16 + b: (1, N) -> (M, N).  No activation pad:
    cdiv grid lets Pallas mask any remainder block."""
    M, K = x.shape
    N = w_t.shape[1]
    tm = M if M <= max_rows else 256
    return pl.pallas_call(
        linear_kernel,
        out_shape=jax.ShapeDtypeStruct((M, N), x.dtype),
        grid=(pl.cdiv(M, tm),),
        in_specs=[pl.BlockSpec((tm, K), lambda i: (i, 0)),
                  pl.BlockSpec((K, N), lambda i: (0, 0)),
                  pl.BlockSpec((1, N), lambda i: (0, 0))],
        out_specs=pl.BlockSpec((tm, N), lambda i: (i, 0)),
        compiler_params=pltpu.CompilerParams(
            dimension_semantics=("parallel",),
            vmem_limit_bytes=64 << 20),
    )(x, w_t, b)


def encoder_stack_kernel(x_ref, l1w, l1b, wqkv, bqkv, wo, bo, l2w, l2b,
                         f1w, f1b, f2w, f2b,
                         tlnw, tlnb, nw, nb,
                         o_ref, x_sc,
                         *, batch, num_heads, eps_block, eps_final1, eps_final2):
    """All encoder layers + Transformer.ln + encoder_norm.  Grid = (layer,).
    The (B*S, D) activation stays resident in the f32 VMEM scratch."""
    layer = pl.program_id(0)

    @pl.when(layer == 0)
    def _():
        x_sc[...] = x_ref[...].astype(jnp.float32)

    x = _transformer_layer(
        x_sc[...], l1w[0], l1b[0], wqkv[0], bqkv[0], wo[0], bo[0],
        l2w[0], l2b[0], f1w[0], f1b[0], f2w[0], f2b[0],
        batch=batch, num_heads=num_heads, eps=eps_block)
    x_sc[...] = x

    @pl.when(layer == pl.num_programs(0) - 1)
    def _():
        z = _layer_norm(x, tlnw[...], tlnb[...], eps_final1)   # Transformer.ln
        z = _layer_norm(z, nw[...], nb[...], eps_final2)       # encoder_norm
        o_ref[...] = z.astype(o_ref.dtype)


def decoder_stack_kernel(x_ref, hw, hb, pe, l1w, l1b, wqkv, bqkv, wo, bo,
                         l2w, l2b, f1w, f1b, f2w, f2b,
                         tlnw, tlnb, nw, nb, pw, pb,
                         o_ref, x_sc,
                         *, batch, num_heads, eps_block, eps_final1, eps_final2):
    """hidden_proj + dec-PE prologue, all decoder layers, then Transformer.ln +
    decoder_norm + decoder_proj epilogue — one pallas_call, grid = (layer,)."""
    layer = pl.program_id(0)

    @pl.when(layer == 0)
    def _():
        hid = jnp.dot(x_ref[...].astype(jnp.bfloat16), hw[...],
                      preferred_element_type=jnp.float32) + hb[...]
        x_sc[...] = hid + pe[...]

    x = _transformer_layer(
        x_sc[...], l1w[0], l1b[0], wqkv[0], bqkv[0], wo[0], bo[0],
        l2w[0], l2b[0], f1w[0], f1b[0], f2w[0], f2b[0],
        batch=batch, num_heads=num_heads, eps=eps_block)
    x_sc[...] = x

    @pl.when(layer == pl.num_programs(0) - 1)
    def _():
        z = _layer_norm(x, tlnw[...], tlnb[...], eps_final1)   # Transformer.ln
        z = _layer_norm(z, nw[...], nb[...], eps_final2)       # decoder_norm
        y = jnp.dot(z.astype(jnp.bfloat16), pw[...],
                    preferred_element_type=jnp.float32) + pb[...]
        o_ref[...] = y.astype(o_ref.dtype)


# ----------------------------- stack wrappers -------------------------------

_PER_LAYER_KEYS = ('ln1_w', 'ln1_b', 'wqkv', 'bqkv', 'wo', 'bo',
                   'ln2_w', 'ln2_b', 'fc1_w', 'fc1_b', 'fc2_w', 'fc2_b')


def _layer_spec(w):    # stacked per-layer weight (L, ...), block (1, ...)
    return pl.BlockSpec((1,) + w.shape[1:], lambda l: (l, 0, 0))


def _shared_spec(w):   # weight resident for the whole grid
    return pl.BlockSpec(w.shape, lambda l, _nd=w.ndim: (0,) * _nd)


def encoder_stack(x2d, stacked, final_ln1, final_ln2, *, batch, num_heads,
                  eps_block=1e-6, eps_final1=1e-6, eps_final2=1e-5):
    BS, D = x2d.shape
    per_layer = [stacked[k] for k in _PER_LAYER_KEYS]
    L = per_layer[0].shape[0]
    finals = [final_ln1[0], final_ln1[1], final_ln2[0], final_ln2[1]]

    in_specs = ([_shared_spec(x2d)]
                + [_layer_spec(w) for w in per_layer]
                + [_shared_spec(w) for w in finals])

    return pl.pallas_call(
        functools.partial(encoder_stack_kernel, batch=batch, num_heads=num_heads,
                          eps_block=eps_block, eps_final1=eps_final1,
                          eps_final2=eps_final2),
        out_shape=jax.ShapeDtypeStruct((BS, D), x2d.dtype),
        grid=(L,),
        in_specs=in_specs,
        out_specs=pl.BlockSpec((BS, D), lambda l: (0, 0)),
        scratch_shapes=[pltpu.VMEM((BS, D), jnp.float32)],
        compiler_params=pltpu.CompilerParams(
            dimension_semantics=("arbitrary",),
            vmem_limit_bytes=64 << 20),
    )(x2d, *per_layer, *finals)


def decoder_stack(x2d, hidden_w, hidden_b, pe2d, stacked, final_ln1, final_ln2,
                  proj_w, proj_b, *, batch, num_heads,
                  eps_block=1e-6, eps_final1=1e-6, eps_final2=1e-5):
    BS, _ = x2d.shape
    Dd = hidden_w.shape[1]
    Np = proj_w.shape[1]
    per_layer = [stacked[k] for k in _PER_LAYER_KEYS]
    L = per_layer[0].shape[0]
    finals = [final_ln1[0], final_ln1[1], final_ln2[0], final_ln2[1]]

    in_specs = ([_shared_spec(x2d), _shared_spec(hidden_w),
                 _shared_spec(hidden_b), _shared_spec(pe2d)]
                + [_layer_spec(w) for w in per_layer]
                + [_shared_spec(w) for w in finals]
                + [_shared_spec(proj_w), _shared_spec(proj_b)])

    return pl.pallas_call(
        functools.partial(decoder_stack_kernel, batch=batch, num_heads=num_heads,
                          eps_block=eps_block, eps_final1=eps_final1,
                          eps_final2=eps_final2),
        out_shape=jax.ShapeDtypeStruct((BS, Np), x2d.dtype),
        grid=(L,),
        in_specs=in_specs,
        out_specs=pl.BlockSpec((BS, Np), lambda l: (0, 0)),
        scratch_shapes=[pltpu.VMEM((BS, Dd), jnp.float32)],
        compiler_params=pltpu.CompilerParams(
            dimension_semantics=("arbitrary",),
            vmem_limit_bytes=64 << 20),
    )(x2d, hidden_w, hidden_b, pe2d, *per_layer, *finals, proj_w, proj_b)


# --------------------------- parameters / glue ------------------------------

def sinusoidal_pe(d_model, seq_len, token):
    """Exact replica of the PyTorch PositionalEncoding buffer construction."""
    height = width = int(math.sqrt(seq_len - 1 if token else seq_len))
    dh = int(d_model / 2)
    pe = np.zeros((d_model, height, width), dtype=np.float32)
    div_term = np.exp(np.arange(0.0, dh, 2) * -(math.log(10000.0) / dh))
    pos_w = np.arange(0.0, width)[:, None]
    pos_h = np.arange(0.0, height)[:, None]
    pe[0:dh:2, :, :] = np.repeat(np.sin(pos_w * div_term).T[:, None, :], height, axis=1)
    pe[1:dh:2, :, :] = np.repeat(np.cos(pos_w * div_term).T[:, None, :], height, axis=1)
    pe[dh::2, :, :] = np.repeat(np.sin(pos_h * div_term).T[:, :, None], width, axis=2)
    pe[dh + 1::2, :, :] = np.repeat(np.cos(pos_h * div_term).T[:, :, None], width, axis=2)
    pe = pe.reshape(d_model, (seq_len - 1) if token else seq_len)
    if token:
        pe = np.concatenate([np.zeros((d_model, 1), np.float32), pe], axis=1)
    return jnp.asarray(pe.T[None])                         # (1, seq_len, d_model)


def img_to_patches(x, p):
    """NCHW image -> (B, S, C*p*p) patches in (C, ph, pw) order (matches Conv2d)."""
    B, C, H, W = x.shape
    gh, gw = H // p, W // p
    x = x.reshape(B, C, gh, p, gw, p)
    x = x.transpose(0, 2, 4, 1, 3, 5)                      # (B, gh, gw, C, p, p)
    return x.reshape(B, gh * gw, C * p * p)


def init_block_params(key, D, Dm):
    """One encoder block (logical f32 params); QKV weights concatenated along
    the output axis (columns [q heads | k heads | v heads], head-major)."""
    ks = jax.random.split(key, 4)
    std = 0.02

    def nrm(k, shape):
        return std * jax.random.normal(k, shape, jnp.float32)

    return dict(
        ln1_w=jnp.ones((1, D), jnp.float32), ln1_b=jnp.zeros((1, D), jnp.float32),
        wqkv=nrm(ks[0], (D, 3 * D)), bqkv=jnp.zeros((1, 3 * D), jnp.float32),
        wo=nrm(ks[1], (D, D)), bo=jnp.zeros((1, D), jnp.float32),
        ln2_w=jnp.ones((1, D), jnp.float32), ln2_b=jnp.zeros((1, D), jnp.float32),
        fc1_w=nrm(ks[2], (D, Dm)), fc1_b=jnp.zeros((1, Dm), jnp.float32),
        fc2_w=nrm(ks[3], (Dm, D)), fc2_b=jnp.zeros((1, D), jnp.float32),
    )


def prepare_stack(blocks, num_heads):
    """Stack per-layer params with a leading layer dim, fold 1/sqrt(dh) into
    the Q columns of wqkv/bqkv, and cast the matmul weights to bf16."""
    st = {k: jnp.stack([blk[k] for blk in blocks], axis=0) for k in blocks[0]}
    D = st['wqkv'].shape[1]
    scale = jnp.float32(1.0 / math.sqrt(D // num_heads))
    st['wqkv'] = st['wqkv'].at[:, :, :D].multiply(scale).astype(jnp.bfloat16)
    st['bqkv'] = st['bqkv'].at[:, :, :D].multiply(scale)          # bias stays f32
    for k in ('wo', 'fc1_w', 'fc2_w'):
        st[k] = st[k].astype(jnp.bfloat16)
    return st


def init_mae_params(key, cfg):
    keys = jax.random.split(key, 6)
    De, Dd, p = cfg['enc_dim'], cfg['dec_dim'], cfg['patch']
    std = 0.02
    enc_blocks = [init_block_params(k, De, cfg['enc_mlp'])
                  for k in jax.random.split(keys[1], cfg['enc_layers'])]
    dec_blocks = [init_block_params(k, Dd, cfg['dec_mlp'])
                  for k in jax.random.split(keys[3], cfg['dec_layers'])]
    return dict(
        embed_w_t=(std * jax.random.normal(keys[0], (3 * p * p, De),
                                           jnp.float32)).astype(jnp.bfloat16),
        embed_b=jnp.zeros((1, De), jnp.float32),
        class_token=jnp.zeros((1, 1, De), jnp.float32),
        enc_stack=prepare_stack(enc_blocks, cfg['enc_heads']),
        enc_trans_ln_w=jnp.ones((1, De), jnp.float32),
        enc_trans_ln_b=jnp.zeros((1, De), jnp.float32),
        enc_norm_w=jnp.ones((1, De), jnp.float32),
        enc_norm_b=jnp.zeros((1, De), jnp.float32),
        hidden_w_t=(std * jax.random.normal(keys[2], (De, Dd),
                                            jnp.float32)).astype(jnp.bfloat16),
        hidden_b=jnp.zeros((1, Dd), jnp.float32),
        dec_stack=prepare_stack(dec_blocks, cfg['dec_heads']),
        dec_trans_ln_w=jnp.ones((1, Dd), jnp.float32),
        dec_trans_ln_b=jnp.zeros((1, Dd), jnp.float32),
        dec_norm_w=jnp.ones((1, Dd), jnp.float32),
        dec_norm_b=jnp.zeros((1, Dd), jnp.float32),
        dec_proj_w_t=(std * jax.random.normal(keys[4], (Dd, 3 * p * p),
                                              jnp.float32)).astype(jnp.bfloat16),
        dec_proj_b=jnp.zeros((1, 3 * p * p), jnp.float32),
        enc_pe=sinusoidal_pe(De, cfg['seq'] + 1, True),
        dec_pe=sinusoidal_pe(Dd, cfg['seq'], False),
    )


def mae_forward(params, cfg, x_img, perm):
    B = x_img.shape[0]
    p, De, Dd = cfg['patch'], cfg['enc_dim'], cfg['dec_dim']
    seq, nm = cfg['seq'], cfg['non_masked']
    pp3 = 3 * p * p

    # ---- embed (Conv2d(3, De, p, p) as im2col + one Pallas matmul) ----
    patches = img_to_patches(x_img, p)                               # (B, S, 3*p*p)
    emb = linear(patches.reshape(B * seq, pp3), params['embed_w_t'],
                 params['embed_b']).reshape(B, seq, De)
    cls = jnp.broadcast_to(params['class_token'], (B, 1, De))
    x = jnp.concatenate([cls, emb], axis=1) + params['enc_pe']       # (B, S+1, De)

    # ---- mask (random token permutation, keep class token + first nm) ----
    # TODO(synk): fold this gather and the unmask scatter/argsort below into
    # the stack kernels via PrefetchScalarGridSpec-driven index_maps.
    x_perm = x[:, perm]
    masked = x_perm[:, :nm + 1]                                      # (B, nm+1, De)

    # ---- encoder: all layers + Transformer.ln + encoder_norm in ONE call ----
    h = encoder_stack(masked.reshape(B * (nm + 1), De), params['enc_stack'],
                      (params['enc_trans_ln_w'], params['enc_trans_ln_b']),
                      (params['enc_norm_w'], params['enc_norm_b']),
                      batch=B, num_heads=cfg['enc_heads'])
    h = h.reshape(B, nm + 1, De)

    # ---- unmask (scatter back, inverse permutation) ----
    full = jnp.zeros_like(x_perm).at[:, :nm + 1].set(h)
    unshuf = jnp.argsort(perm)
    xd = full[:, unshuf][:, 1:]                                      # drop class token
    non_masked_idx = perm[1:nm + 1] - 1

    # ---- decoder: hidden_proj + PE + layers + norms + proj in ONE call ----
    pe2d = jnp.broadcast_to(params['dec_pe'], (B, seq, Dd)).reshape(B * seq, Dd)
    out = decoder_stack(xd.reshape(B * seq, De),
                        params['hidden_w_t'], params['hidden_b'], pe2d,
                        params['dec_stack'],
                        (params['dec_trans_ln_w'], params['dec_trans_ln_b']),
                        (params['dec_norm_w'], params['dec_norm_b']),
                        params['dec_proj_w_t'], params['dec_proj_b'],
                        batch=B, num_heads=cfg['dec_heads'])
    out = out.reshape(B, seq, pp3)
    # TODO(synk): final (0,2,1) permute left to XLA; an in-kernel transpose of
    # this non-lane-aligned (S, 3*p*p) tile is risky to lower at these shapes.
    return jnp.transpose(out, (0, 2, 1)), non_masked_idx            # (B, 3*p*p, S)


if __name__ == "__main__":
    cfg = dict(image=16, patch=4, n_classes=10,
               enc_layers=2, enc_dim=32, enc_heads=4, enc_mlp=64,
               dec_layers=2, dec_dim=32, dec_heads=4, dec_mlp=64,
               mask_ratio=0.75)
    cfg['seq'] = (cfg['image'] // cfg['patch']) ** 2
    cfg['non_masked'] = int((1 - cfg['mask_ratio']) * cfg['seq'])

    root = jax.random.PRNGKey(0)
    k_x, k_p, k_perm = jax.random.split(root, 3)

    params = init_mae_params(k_p, cfg)
    x_img = jax.random.normal(k_x, (2, 3, cfg['image'], cfg['image']), jnp.float32)

    # deterministic stand-in for torch.randperm in MAE.mask()
    perm = jnp.concatenate([
        jnp.zeros((1,), jnp.int32),
        jax.random.permutation(k_perm, cfg['seq']).astype(jnp.int32) + 1])

    fwd = jax.jit(lambda prm, img, pm: mae_forward(prm, cfg, img, pm))
    out, idx = fwd(params, x_img, perm)
    jax.block_until_ready(out)
    jax.block_until_ready(idx)
    assert out.shape == (2, 3 * cfg['patch'] ** 2, cfg['seq'])
    assert idx.shape == (cfg['non_masked'],)
    assert bool(jnp.all(jnp.isfinite(out)))
    print("KERNEL_OK")
</pallas_src>

<mosaic_0001>
module attributes {stable_mosaic.version = 11 : i64} {
  func.func @linear_kernel(%arg0: i32, %arg1: memref<32x48xf32, #tpu.memory_space<vmem>>, %arg2: memref<48x32xbf16, #tpu.memory_space<vmem>>, %arg3: memref<1x32xf32, #tpu.memory_space<vmem>>, %arg4: memref<32x32xf32, #tpu.memory_space<vmem>>) attributes {dimension_semantics = [#tpu.dimension_semantics<parallel>], iteration_bounds = array<i64: 1>, scalar_prefetch = 0 : i64, scratch_operands = 0 : i64, tpu.core_type = #tpu.core_type<tc>, window_params = [{transform_indices = @transform_0, window_bounds = array<i64: 32, 48>}, {pipeline_mode = #tpu.pipeline_mode<synchronous>, transform_indices = @transform_1, window_bounds = array<i64: 48, 32>}, {pipeline_mode = #tpu.pipeline_mode<synchronous>, transform_indices = @transform_2, window_bounds = array<i64: 1, 32>}, {transform_indices = @transform_3, window_bounds = array<i64: 32, 32>}]} {
    %c0 = arith.constant 0 : index
    %c0_0 = arith.constant 0 : index
    %0 = vector.load %arg1[%c0, %c0_0] : memref<32x48xf32, #tpu.memory_space<vmem>>, vector<32x48xf32>
    %1 = arith.truncf %0 : vector<32x48xf32> to vector<32x48xbf16>
    %c0_1 = arith.constant 0 : index
    %c0_2 = arith.constant 0 : index
    %2 = vector.load %arg2[%c0_1, %c0_2] : memref<48x32xbf16, #tpu.memory_space<vmem>>, vector<48x32xbf16>
    %cst = arith.constant dense<0.000000e+00> : vector<32x32xf32>
    %3 = tpu.matmul %1, %2, %cst {dimension_numbers = #tpu.dot_dimension_numbers<[1], [0], [0], [1], [0, 0, 1, 1], [], []>} : vector<32x48xbf16>, vector<48x32xbf16>, vector<32x32xf32> -> vector<32x32xf32>
    %c0_3 = arith.constant 0 : index
    %c0_4 = arith.constant 0 : index
    %4 = vector.load %arg3[%c0_3, %c0_4] : memref<1x32xf32, #tpu.memory_space<vmem>>, vector<1x32xf32>
    %5 = vector.broadcast %4 : vector<1x32xf32> to vector<32x32xf32>
    %6 = arith.addf %3, %5 : vector<32x32xf32>
    %c0_5 = arith.constant 0 : index
    %c0_6 = arith.constant 0 : index
    %7 = vector.load %arg4[%c0_5, %c0_6] : memref<32x32xf32, #tpu.memory_space<vmem>>, vector<32x32xf32>
    tpu.vector_store %arg4[%c0_5, %c0_6], %6 {strides = array<i32>} : memref<32x32xf32, #tpu.memory_space<vmem>>, vector<32x32xf32>,
    return
  }
  func.func @transform_0(%arg0: i32) -> (i32, i32) {
    %c0_i32 = arith.constant 0 : i32
    %c0_i32_0 = arith.constant 0 : i32
    return %arg0, %c0_i32 : i32, i32
  }
  func.func @transform_1(%arg0: i32) -> (i32, i32) {
    %c0_i32 = arith.constant 0 : i32
    %c0_i32_0 = arith.constant 0 : i32
    %c0_i32_1 = arith.constant 0 : i32
    return %c0_i32, %c0_i32_0 : i32, i32
  }
  func.func @transform_2(%arg0: i32) -> (i32, i32) {
    %c0_i32 = arith.constant 0 : i32
    %c0_i32_0 = arith.constant 0 : i32
    %c0_i32_1 = arith.constant 0 : i32
    return %c0_i32, %c0_i32_0 : i32, i32
  }
  func.func @transform_3(%arg0: i32) -> (i32, i32) {
    %c0_i32 = arith.constant 0 : i32
    %c0_i32_0 = arith.constant 0 : i32
    return %arg0, %c0_i32 : i32, i32
  }
}

module attributes {stable_mosaic.version = 11 : i64} {
  func.func @encoder_stack_kernel(%arg0: i32, %arg1: memref<10x32xf32, #tpu.memory_space<vmem>>, %arg2: memref<1x1x32xf32, #tpu.memory_space<vmem>>, %arg3: memref<1x1x32xf32, #tpu.memory_space<vmem>>, %arg4: memref<1x32x96xbf16, #tpu.memory_space<vmem>>, %arg5: memref<1x1x96xf32, #tpu.memory_space<vmem>>, %arg6: memref<1x32x32xbf16, #tpu.memory_space<vmem>>, %arg7: memref<1x1x32xf32, #tpu.memory_space<vmem>>, %arg8: memref<1x1x32xf32, #tpu.memory_space<vmem>>, %arg9: memref<1x1x32xf32, #tpu.memory_space<vmem>>, %arg10: memref<1x32x64xbf16, #tpu.memory_space<vmem>>, %arg11: memref<1x1x64xf32, #tpu.memory_space<vmem>>, %arg12: memref<1x64x32xbf16, #tpu.memory_space<vmem>>, %arg13: memref<1x1x32xf32, #tpu.memory_space<vmem>>, %arg14: memref<1x32xf32, #tpu.memory_space<vmem>>, %arg15: memref<1x32xf32, #tpu.memory_space<vmem>>, %arg16: memref<1x32xf32, #tpu.memory_space<vmem>>, %arg17: memref<1x32xf32, #tpu.memory_space<vmem>>, %arg18: memref<10x32xf32, #tpu.memory_space<vmem>>, %arg19: memref<10x32xf32, #tpu.memory_space<vmem>>) attributes {dimension_semantics = [#tpu.dimension_semantics<arbitrary>], iteration_bounds = array<i64: 2>, scalar_prefetch = 0 : i64, scratch_operands = 1 : i64, tpu.core_type = #tpu.core_type<tc>, window_params = [{pipeline_mode = #tpu.pipeline_mode<synchronous>, transform_indices = @transform_0, window_bounds = array<i64: 10, 32>}, {transform_indices = @transform_1, window_bounds = array<i64: 1, 1, 32>}, {transform_indices = @transform_2, window_bounds = array<i64: 1, 1, 32>}, {transform_indices = @transform_3, window_bounds = array<i64: 1, 32, 96>}, {transform_indices = @transform_4, window_bounds = array<i64: 1, 1, 96>}, {transform_indices = @transform_5, window_bounds = array<i64: 1, 32, 32>}, {transform_indices = @transform_6, window_bounds = array<i64: 1, 1, 32>}, {transform_indices = @transform_7, window_bounds = array<i64: 1, 1, 32>}, {transform_indices = @transform_8, window_bounds = array<i64: 1, 1, 32>}, {transform_indices = @transform_9, window_bounds = array<i64: 1, 32, 64>}, {transform_indices = @transform_10, window_bounds = array<i64: 1, 1, 64>}, {transform_indices = @transform_11, window_bounds = array<i64: 1, 64, 32>}, {transform_indices = @transform_12, window_bounds = array<i64: 1, 1, 32>}, {pipeline_mode = #tpu.pipeline_mode<synchronous>, transform_indices = @transform_13, window_bounds = array<i64: 1, 32>}, {pipeline_mode = #tpu.pipeline_mode<synchronous>, transform_indices = @transform_14, window_bounds = array<i64: 1, 32>}, {pipeline_mode = #tpu.pipeline_mode<synchronous>, transform_indices = @transform_15, window_bounds = array<i64: 1, 32>}, {pipeline_mode = #tpu.pipeline_mode<synchronous>, transform_indices = @transform_16, window_bounds = array<i64: 1, 32>}, {pipeline_mode = #tpu.pipeline_mode<synchronous>, transform_indices = @transform_17, window_bounds = array<i64: 10, 32>}]} {
    %c0_i32 = arith.constant 0 : i32
    %0 = arith.cmpi eq, %arg0, %c0_i32 : i32
    %1 = arith.extui %0 : i1 to i32
    %c0_i32_0 = arith.constant 0 : i32
    %2 = arith.cmpi ne, %1, %c0_i32_0 : i32
    scf.if %2 {
      %c0_99 = arith.constant 0 : index
      %c0_100 = arith.constant 0 : index
      %288 = vector.load %arg1[%c0_99, %c0_100] : memref<10x32xf32, #tpu.memory_space<vmem>>, vector<10x32xf32>
      %c0_101 = arith.constant 0 : index
      %c0_102 = arith.constant 0 : index
      %289 = vector.load %arg19[%c0_101, %c0_102] : memref<10x32xf32, #tpu.memory_space<vmem>>, vector<10x32xf32>
      tpu.vector_store %arg19[%c0_101, %c0_102], %288 {strides = array<i32>} : memref<10x32xf32, #tpu.memory_space<vmem>>, vector<10x32xf32>,
    } else {
    }
    %c0 = arith.constant 0 : index
    %c0_1 = arith.constant 0 : index
    %3 = vector.load %arg19[%c0, %c0_1] : memref<10x32xf32, #tpu.memory_space<vmem>>, vector<10x32xf32>
    %c0_2 = arith.constant 0 : index
    %c0_3 = arith.constant 0 : index
    %c0_4 = arith.constant 0 : index
    %4 = vector.load %arg2[%c0_2, %c0_3, %c0_4] : memref<1x1x32xf32, #tpu.memory_space<vmem>>, vector<1x1x32xf32>
    %5 = vector.shape_cast %4 : vector<1x1x32xf32> to vector<1x32xf32>
    %c0_5 = arith.constant 0 : index
    %c0_6 = arith.constant 0 : index
    %c0_7 = arith.constant 0 : index
    %6 = vector.load %arg3[%c0_5, %c0_6, %c0_7] : memref<1x1x32xf32, #tpu.memory_space<vmem>>, vector<1x1x32xf32>
    %7 = vector.shape_cast %6 : vector<1x1x32xf32> to vector<1x32xf32>
    %c0_8 = arith.constant 0 : index
    %c0_9 = arith.constant 0 : index
    %c0_10 = arith.constant 0 : index
    %8 = vector.load %arg4[%c0_8, %c0_9, %c0_10] : memref<1x32x96xbf16, #tpu.memory_space<vmem>>, vector<1x32x96xbf16>
    %9 = vector.shape_cast %8 : vector<1x32x96xbf16> to vector<32x96xbf16>
    %c0_11 = arith.constant 0 : index
    %c0_12 = arith.constant 0 : index
    %c0_13 = arith.constant 0 : index
    %10 = vector.load %arg5[%c0_11, %c0_12, %c0_13] : memref<1x1x96xf32, #tpu.memory_space<vmem>>, vector<1x1x96xf32>
    %11 = vector.shape_cast %10 : vector<1x1x96xf32> to vector<1x96xf32>
    %c0_14 = arith.constant 0 : index
    %c0_15 = arith.constant 0 : index
    %c0_16 = arith.constant 0 : index
    %12 = vector.load %arg6[%c0_14, %c0_15, %c0_16] : memref<1x32x32xbf16, #tpu.memory_space<vmem>>, vector<1x32x32xbf16>
    %13 = vector.shape_cast %12 : vector<1x32x32xbf16> to vector<32x32xbf16>
    %c0_17 = arith.constant 0 : index
    %c0_18 = arith.constant 0 : index
    %c0_19 = arith.constant 0 : index
    %14 = vector.load %arg7[%c0_17, %c0_18, %c0_19] : memref<1x1x32xf32, #tpu.memory_space<vmem>>, vector<1x1x32xf32>
    %15 = vector.shape_cast %14 : vector<1x1x32xf32> to vector<1x32xf32>
    %c0_20 = arith.constant 0 : index
    %c0_21 = arith.constant 0 : index
    %c0_22 = arith.constant 0 : index
    %16 = vector.load %arg8[%c0_20, %c0_21, %c0_22] : memref<1x1x32xf32, #tpu.memory_space<vmem>>, vector<1x1x32xf32>
    %17 = vector.shape_cast %16 : vector<1x1x32xf32> to vector<1x32xf32>
    %c0_23 = arith.constant 0 : index
    %c0_24 = arith.constant 0 : index
    %c0_25 = arith.constant 0 : index
    %18 = vector.load %arg9[%c0_23, %c0_24, %c0_25] : memref<1x1x32xf32, #tpu.memory_space<vmem>>, vector<1x1x32xf32>
    %19 = vector.shape_cast %18 : vector<1x1x32xf32> to vector<1x32xf32>
    %c0_26 = arith.constant 0 : index
    %c0_27 = arith.constant 0 : index
    %c0_28 = arith.constant 0 : index
    %20 = vector.load %arg10[%c0_26, %c0_27, %c0_28] : memref<1x32x64xbf16, #tpu.memory_space<vmem>>, vector<1x32x64xbf16>
    %21 = vector.shape_cast %20 : vector<1x32x64xbf16> to vector<32x64xbf16>
    %c0_29 = arith.constant 0 : index
    %c0_30 = arith.constant 0 : index
    %c0_31 = arith.constant 0 : index
    %22 = vector.load %arg11[%c0_29, %c0_30, %c0_31] : memref<1x1x64xf32, #tpu.memory_space<vmem>>, vector<1x1x64xf32>
    %23 = vector.shape_cast %22 : vector<1x1x64xf32> to vector<1x64xf32>
    %c0_32 = arith.constant 0 : index
    %c0_33 = arith.constant 0 : index
    %c0_34 = arith.constant 0 : index
    %24 = vector.load %arg12[%c0_32, %c0_33, %c0_34] : memref<1x64x32xbf16, #tpu.memory_space<vmem>>, vector<1x64x32xbf16>
    %25 = vector.shape_cast %24 : vector<1x64x32xbf16> to vector<64x32xbf16>
    %c0_35 = arith.constant 0 : index
    %c0_36 = arith.constant 0 : index
    %c0_37 = arith.constant 0 : index
    %26 = vector.load %arg13[%c0_35, %c0_36, %c0_37] : memref<1x1x32xf32, #tpu.memory_space<vmem>>, vector<1x1x32xf32>
    %27 = vector.shape_cast %26 : vector<1x1x32xf32> to vector<1x32xf32>
    %cst = arith.constant dense<0.000000e+00> : vector<10xf32>
    %28 = vector.multi_reduction <add>, %3, %cst [1] : vector<10x32xf32> to vector<10xf32>
    %29 = vector.shape_cast %28 : vector<10xf32> to vector<10x1xf32>
    %cst_38 = arith.constant 3.200000e+01 : f32
    %30 = vector.broadcast %cst_38 : f32 to vector<10x1xf32>
    %31 = arith.divf %29, %30 : vector<10x1xf32>
    %32 = vector.broadcast %31 : vector<10x1xf32> to vector<10x32xf32>
    %33 = arith.subf %3, %32 : vector<10x32xf32>
    %34 = arith.mulf %33, %33 : vector<10x32xf32>
    %cst_39 = arith.constant dense<0.000000e+00> : vector<10xf32>
    %35 = vector.multi_reduction <add>, %34, %cst_39 [1] : vector<10x32xf32> to vector<10xf32>
    %36 = vector.shape_cast %35 : vector<10xf32> to vector<10x1xf32>
    %cst_40 = arith.constant 3.200000e+01 : f32
    %37 = vector.broadcast %cst_40 : f32 to vector<10x1xf32>
    %38 = arith.divf %36, %37 : vector<10x1xf32>
    %cst_41 = arith.constant 9.99999997E-7 : f32
    %39 = vector.broadcast %cst_41 : f32 to vector<10x1xf32>
    %40 = arith.addf %38, %39 : vector<10x1xf32>
    %41 = math.rsqrt %40 : vector<10x1xf32>
    %42 = vector.broadcast %41 : vector<10x1xf32> to vector<10x32xf32>
    %43 = arith.mulf %33, %42 : vector<10x32xf32>
    %44 = vector.broadcast %5 : vector<1x32xf32> to vector<10x32xf32>
    %45 = arith.mulf %43, %44 : vector<10x32xf32>
    %46 = vector.broadcast %7 : vector<1x32xf32> to vector<10x32xf32>
    %47 = arith.addf %45, %46 : vector<10x32xf32>
    %48 = arith.truncf %47 : vector<10x32xf32> to vector<10x32xbf16>
    %cst_42 = arith.constant dense<0.000000e+00> : vector<10x96xf32>
    %49 = tpu.matmul %48, %9, %cst_42 {dimension_numbers = #tpu.dot_dimension_numbers<[1], [0], [0], [1], [0, 0, 1, 1], [], []>} : vector<10x32xbf16>, vector<32x96xbf16>, vector<10x96xf32> -> vector<10x96xf32>
    %50 = vector.broadcast %11 : vector<1x96xf32> to vector<10x96xf32>
    %51 = arith.addf %49, %50 : vector<10x96xf32>
    %cst_43 = arith.constant 0.000000e+00 : f32
    %52 = vector.broadcast %cst_43 : f32 to vector<5x32xf32>
    %53 = vector.extract_strided_slice %51 {offsets = [0, 0], sizes = [5, 8], strides = [1, 1]} : vector<10x96xf32> to vector<5x8xf32>
    %54 = arith.truncf %53 : vector<5x8xf32> to vector<5x8xbf16>
    %55 = vector.extract_strided_slice %51 {offsets = [0, 32], sizes = [5, 8], strides = [1, 1]} : vector<10x96xf32> to vector<5x8xf32>
    %56 = arith.truncf %55 : vector<5x8xf32> to vector<5x8xbf16>
    %57 = vector.extract_strided_slice %51 {offsets = [0, 64], sizes = [5, 8], strides = [1, 1]} : vector<10x96xf32> to vector<5x8xf32>
    %58 = arith.truncf %57 : vector<5x8xf32> to vector<5x8xbf16>
    %cst_44 = arith.constant dense<0.000000e+00> : vector<5x5xf32>
    %59 = tpu.matmul %54, %56, %cst_44 {dimension_numbers = #tpu.dot_dimension_numbers<[1], [1], [0], [0], [0, 0, 1, 0], [], []>} : vector<5x8xbf16>, vector<5x8xbf16>, vector<5x5xf32> -> vector<5x5xf32>
    %cst_45 = arith.constant dense<0xFF800000> : vector<5xf32>
    %60 = vector.multi_reduction <maximumf>, %59, %cst_45 [1] : vector<5x5xf32> to vector<5xf32>
    %61 = vector.shape_cast %60 : vector<5xf32> to vector<5x1xf32>
    %62 = vector.broadcast %61 : vector<5x1xf32> to vector<5x5xf32>
    %63 = arith.subf %59, %62 : vector<5x5xf32>
    %64 = math.exp %63 : vector<5x5xf32>
    %cst_46 = arith.constant dense<0.000000e+00> : vector<5xf32>
    %65 = vector.multi_reduction <add>, %64, %cst_46 [1] : vector<5x5xf32> to vector<5xf32>
    %66 = vector.shape_cast %65 : vector<5xf32> to vector<5x1xf32>
    %67 = tpu.reciprocal %66 {approx = true} : vector<5x1xf32> -> vector<5x1xf32>
    %68 = vector.broadcast %67 : vector<5x1xf32> to vector<5x5xf32>
    %69 = arith.mulf %64, %68 : vector<5x5xf32>
    %70 = arith.truncf %69 : vector<5x5xf32> to vector<5x5xbf16>
    %cst_47 = arith.constant dense<0.000000e+00> : vector<5x8xf32>
    %71 = tpu.matmul %70, %58, %cst_47 {dimension_numbers = #tpu.dot_dimension_numbers<[1], [0], [0], [1], [0, 0, 1, 1], [], []>} : vector<5x5xbf16>, vector<5x8xbf16>, vector<5x8xf32> -> vector<5x8xf32>
    %72 = arith.truncf %71 : vector<5x8xf32> to vector<5x8xbf16>
    %73 = vector.extract_strided_slice %13 {offsets = [0, 0], sizes = [8, 32], strides = [1, 1]} : vector<32x32xbf16> to vector<8x32xbf16>
    %cst_48 = arith.constant dense<0.000000e+00> : vector<5x32xf32>
    %74 = tpu.matmul %72, %73, %cst_48 {dimension_numbers = #tpu.dot_dimension_numbers<[1], [0], [0], [1], [0, 0, 1, 1], [], []>} : vector<5x8xbf16>, vector<8x32xbf16>, vector<5x32xf32> -> vector<5x32xf32>
    %75 = arith.addf %52, %74 : vector<5x32xf32>
    %76 = vector.extract_strided_slice %51 {offsets = [0, 8], sizes = [5, 8], strides = [1, 1]} : vector<10x96xf32> to vector<5x8xf32>
    %77 = arith.truncf %76 : vector<5x8xf32> to vector<5x8xbf16>
    %78 = vector.extract_strided_slice %51 {offsets = [0, 40], sizes = [5, 8], strides = [1, 1]} : vector<10x96xf32> to vector<5x8xf32>
    %79 = arith.truncf %78 : vector<5x8xf32> to vector<5x8xbf16>
    %80 = vector.extract_strided_slice %51 {offsets = [0, 72], sizes = [5, 8], strides = [1, 1]} : vector<10x96xf32> to vector<5x8xf32>
    %81 = arith.truncf %80 : vector<5x8xf32> to vector<5x8xbf16>
    %cst_49 = arith.constant dense<0.000000e+00> : vector<5x5xf32>
    %82 = tpu.matmul %77, %79, %cst_49 {dimension_numbers = #tpu.dot_dimension_numbers<[1], [1], [0], [0], [0, 0, 1, 0], [], []>} : vector<5x8xbf16>, vector<5x8xbf16>, vector<5x5xf32> -> vector<5x5xf32>
    %cst_50 = arith.constant dense<0xFF800000> : vector<5xf32>
    %83 = vector.multi_reduction <maximumf>, %82, %cst_50 [1] : vector<5x5xf32> to vector<5xf32>
    %84 = vector.shape_cast %83 : vector<5xf32> to vector<5x1xf32>
    %85 = vector.broadcast %84 : vector<5x1xf32> to vector<5x5xf32>
    %86 = arith.subf %82, %85 : vector<5x5xf32>
    %87 = math.exp %86 : vector<5x5xf32>
    %cst_51 = arith.constant dense<0.000000e+00> : vector<5xf32>
    %88 = vector.multi_reduction <add>, %87, %cst_51 [1] : vector<5x5xf32> to vector<5xf32>
    %89 = vector.shape_cast %88 : vector<5xf32> to vector<5x1xf32>
    %90 = tpu.reciprocal %89 {approx = true} : vector<5x1xf32> -> vector<5x1xf32>
    %91 = vector.broadcast %90 : vector<5x1xf32> to vector<5x5xf32>
    %92 = arith.mulf %87, %91 : vector<5x5xf32>
    %93 = arith.truncf %92 : vector<5x5xf32> to vector<5x5xbf16>
    %cst_52 = arith.constant dense<0.000000e+00> : vector<5x8xf32>
    %94 = tpu.matmul %93, %81, %cst_52 {dimension_numbers = #tpu.dot_dimension_numbers<[1], [0], [0], [1], [0, 0, 1, 1], [], []>} : vector<5x5xbf16>, vector<5x8xbf16>, vector<5x8xf32> -> vector<5x8xf32>
    %95 = arith.truncf %94 : vector<5x8xf32> to vector<5x8xbf16>
    %96 = vector.extract_strided_slice %13 {offsets = [8, 0], sizes = [8, 32], strides = [1, 1]} : vector<32x32xbf16> to vector<8x32xbf16>
    %cst_53 = arith.constant dense<0.000000e+00> : vector<5x32xf32>
    %97 = tpu.matmul %95, %96, %cst_53 {dimension_numbers = #tpu.dot_dimension_numbers<[1], [0], [0], [1], [0, 0, 1, 1], [], []>} : vector<5x8xbf16>, vector<8x32xbf16>, vector<5x32xf32> -> vector<5x32xf32>
    %98 = arith.addf %75, %97 : vector<5x32xf32>
    %99 = vector.extract_strided_slice %51 {offsets = [0, 16], sizes = [5, 8], strides = [1, 1]} : vector<10x96xf32> to vector<5x8xf32>
    %100 = arith.truncf %99 : vector<5x8xf32> to vector<5x8xbf16>
    %101 = vector.extract_strided_slice %51 {offsets = [0, 48], sizes = [5, 8], strides = [1, 1]} : vector<10x96xf32> to vector<5x8xf32>
    %102 = arith.truncf %101 : vector<5x8xf32> to vector<5x8xbf16>
    %103 = vector.extract_strided_slice %51 {offsets = [0, 80], sizes = [5, 8], strides = [1, 1]} : vector<10x96xf32> to vector<5x8xf32>
    %104 = arith.truncf %103 : vector<5x8xf32> to vector<5x8xbf16>
    %cst_54 = arith.constant dense<0.000000e+00> : vector<5x5xf32>
    %105 = tpu.matmul %100, %102, %cst_54 {dimension_numbers = #tpu.dot_dimension_numbers<[1], [1], [0], [0], [0, 0, 1, 0], [], []>} : vector<5x8xbf16>, vector<5x8xbf16>, vector<5x5xf32> -> vector<5x5xf32>
    %cst_55 = arith.constant dense<0xFF800000> : vector<5xf32>
    %106 = vector.multi_reduction <maximumf>, %105, %cst_55 [1] : vector<5x5xf32> to vector<5xf32>
    %107 = vector.shape_cast %106 : vector<5xf32> to vector<5x1xf32>
    %108 = vector.broadcast %107 : vector<5x1xf32> to vector<5x5xf32>
    %109 = arith.subf %105, %108 : vector<5x5xf32>
    %110 = math.exp %109 : vector<5x5xf32>
    %cst_56 = arith.constant dense<0.000000e+00> : vector<5xf32>
    %111 = vector.multi_reduction <add>, %110, %cst_56 [1] : vector<5x5xf32> to vector<5xf32>
    %112 = vector.shape_cast %111 : vector<5xf32> to vector<5x1xf32>
    %113 = tpu.reciprocal %112 {approx = true} : vector<5x1xf32> -> vector<5x1xf32>
    %114 = vector.broadcast %113 : vector<5x1xf32> to vector<5x5xf32>
    %115 = arith.mulf %110, %114 : vector<5x5xf32>
    %116 = arith.truncf %115 : vector<5x5xf32> to vector<5x5xbf16>
    %cst_57 = arith.constant dense<0.000000e+00> : vector<5x8xf32>
    %117 = tpu.matmul %116, %104, %cst_57 {dimension_numbers = #tpu.dot_dimension_numbers<[1], [0], [0], [1], [0, 0, 1, 1], [], []>} : vector<5x5xbf16>, vector<5x8xbf16>, vector<5x8xf32> -> vector<5x8xf32>
    %118 = arith.truncf %117 : vector<5x8xf32> to vector<5x8xbf16>
    %119 = vector.extract_strided_slice %13 {offsets = [16, 0], sizes = [8, 32], strides = [1, 1]} : vector<32x32xbf16> to vector<8x32xbf16>
    %cst_58 = arith.constant dense<0.000000e+00> : vector<5x32xf32>
    %120 = tpu.matmul %118, %119, %cst_58 {dimension_numbers = #tpu.dot_dimension_numbers<[1], [0], [0], [1], [0, 0, 1, 1], [], []>} : vector<5x8xbf16>, vector<8x32xbf16>, vector<5x32xf32> -> vector<5x32xf32>
    %121 = arith.addf %98, %120 : vector<5x32xf32>
    %122 = vector.extract_strided_slice %51 {offsets = [0, 24], sizes = [5, 8], strides = [1, 1]} : vector<10x96xf32> to vector<5x8xf32>
    %123 = arith.truncf %122 : vector<5x8xf32> to vector<5x8xbf16>
    %124 = vector.extract_strided_slice %51 {offsets = [0, 56], sizes = [5, 8], strides = [1, 1]} : vector<10x96xf32> to vector<5x8xf32>
    %125 = arith.truncf %124 : vector<5x8xf32> to vector<5x8xbf16>
    %126 = vector.extract_strided_slice %51 {offsets = [0, 88], sizes = [5, 8], strides = [1, 1]} : vector<10x96xf32> to vector<5x8xf32>
    %127 = arith.truncf %126 : vector<5x8xf32> to vector<5x8xbf16>
    %cst_59 = arith.constant dense<0.000000e+00> : vector<5x5xf32>
    %128 = tpu.matmul %123, %125, %cst_59 {dimension_numbers = #tpu.dot_dimension_numbers<[1], [1], [0], [0], [0, 0, 1, 0], [], []>} : vector<5x8xbf16>, vector<5x8xbf16>, vector<5x5xf32> -> vector<5x5xf32>
    %cst_60 = arith.constant dense<0xFF800000> : vector<5xf32>
    %129 = vector.multi_reduction <maximumf>, %128, %cst_60 [1] : vector<5x5xf32> to vector<5xf32>
    %130 = vector.shape_cast %129 : vector<5xf32> to vector<5x1xf32>
    %131 = vector.broadcast %130 : vector<5x1xf32> to vector<5x5xf32>
    %132 = arith.subf %128, %131 : vector<5x5xf32>
    %133 = math.exp %132 : vector<5x5xf32>
    %cst_61 = arith.constant dense<0.000000e+00> : vector<5xf32>
    %134 = vector.multi_reduction <add>, %133, %cst_61 [1] : vector<5x5xf32> to vector<5xf32>
    %135 = vector.shape_cast %134 : vector<5xf32> to vector<5x1xf32>
    %136 = tpu.reciprocal %135 {approx = true} : vector<5x1xf32> -> vector<5x1xf32>
    %137 = vector.broadcast %136 : vector<5x1xf32> to vector<5x5xf32>
    %138 = arith.mulf %133, %137 : vector<5x5xf32>
    %139 = arith.truncf %138 : vector<5x5xf32> to vector<5x5xbf16>
    %cst_62 = arith.constant dense<0.000000e+00> : vector<5x8xf32>
    %140 = tpu.matmul %139, %127, %cst_62 {dimension_numbers = #tpu.dot_dimension_numbers<[1], [0], [0], [1], [0, 0, 1, 1], [], []>} : vector<5x5xbf16>, vector<5x8xbf16>, vector<5x8xf32> -> vector<5x8xf32>
    %141 = arith.truncf %140 : vector<5x8xf32> to vector<5x8xbf16>
    %142 = vector.extract_strided_slice %13 {offsets = [24, 0], sizes = [8, 32], strides = [1, 1]} : vector<32x32xbf16> to vector<8x32xbf16>
    %cst_63 = arith.constant dense<0.000000e+00> : vector<5x32xf32>
    %143 = tpu.matmul %141, %142, %cst_63 {dimension_numbers = #tpu.dot_dimension_numbers<[1], [0], [0], [1], [0, 0, 1, 1], [], []>} : vector<5x8xbf16>, vector<8x32xbf16>, vector<5x32xf32> -> vector<5x32xf32>
    %144 = arith.addf %121, %143 : vector<5x32xf32>
    %cst_64 = arith.constant 0.000000e+00 : f32
    %145 = vector.broadcast %cst_64 : f32 to vector<5x32xf32>
    %146 = vector.extract_strided_slice %51 {offsets = [5, 0], sizes = [5, 8], strides = [1, 1]} : vector<10x96xf32> to vector<5x8xf32>
    %147 = arith.truncf %146 : vector<5x8xf32> to vector<5x8xbf16>
    %148 = vector.extract_strided_slice %51 {offsets = [5, 32], sizes = [5, 8], strides = [1, 1]} : vector<10x96xf32> to vector<5x8xf32>
    %149 = arith.truncf %148 : vector<5x8xf32> to vector<5x8xbf16>
    %150 = vector.extract_strided_slice %51 {offsets = [5, 64], sizes = [5, 8], strides = [1, 1]} : vector<10x96xf32> to vector<5x8xf32>
    %151 = arith.truncf %150 : vector<5x8xf32> to vector<5x8xbf16>
    %cst_65 = arith.constant dense<0.000000e+00> : vector<5x5xf32>
    %152 = tpu.matmul %147, %149, %cst_65 {dimension_numbers = #tpu.dot_dimension_numbers<[1], [1], [0], [0], [0, 0, 1, 0], [], []>} : vector<5x8xbf16>, vector<5x8xbf16>, vector<5x5xf32> -> vector<5x5xf32>
    %cst_66 = arith.constant dense<0xFF800000> : vector<5xf32>
    %153 = vector.multi_reduction <maximumf>, %152, %cst_66 [1] : vector<5x5xf32> to vector<5xf32>
    %154 = vector.shape_cast %153 : vector<5xf32> to vector<5x1xf32>
    %155 = vector.broadcast %154 : vector<5x1xf32> to vector<5x5xf32>
    %156 = arith.subf %152, %155 : vector<5x5xf32>
    %157 = math.exp %156 : vector<5x5xf32>
    %cst_67 = arith.constant dense<0.000000e+00> : vector<5xf32>
    %158 = vector.multi_reduction <add>, %157, %cst_67 [1] : vector<5x5xf32> to vector<5xf32>
    %159 = vector.shape_cast %158 : vector<5xf32> to vector<5x1xf32>
    %160 = tpu.reciprocal %159 {approx = true} : vector<5x1xf32> -> vector<5x1xf32>
    %161 = vector.broadcast %160 : vector<5x1xf32> to vector<5x5xf32>
    %162 = arith.mulf %157, %161 : vector<5x5xf32>
    %163 = arith.truncf %162 : vector<5x5xf32> to vector<5x5xbf16>
    %cst_68 = arith.constant dense<0.000000e+00> : vector<5x8xf32>
    %164 = tpu.matmul %163, %151, %cst_68 {dimension_numbers = #tpu.dot_dimension_numbers<[1], [0], [0], [1], [0, 0, 1, 1], [], []>} : vector<5x5xbf16>, vector<5x8xbf16>, vector<5x8xf32> -> vector<5x8xf32>
    %165 = arith.truncf %164 : vector<5x8xf32> to vector<5x8xbf16>
    %166 = vector.extract_strided_slice %13 {offsets = [0, 0], sizes = [8, 32], strides = [1, 1]} : vector<32x32xbf16> to vector<8x32xbf16>
    %cst_69 = arith.constant dense<0.000000e+00> : vector<5x32xf32>
    %167 = tpu.matmul %165, %166, %cst_69 {dimension_numbers = #tpu.dot_dimension_numbers<[1], [0], [0], [1], [0, 0, 1, 1], [], []>} : vector<5x8xbf16>, vector<8x32xbf16>, vector<5x32xf32> -> vector<5x32xf32>
    %168 = arith.addf %145, %167 : vector<5x32xf32>
    %169 = vector.extract_strided_slice %51 {offsets = [5, 8], sizes = [5, 8], strides = [1, 1]} : vector<10x96xf32> to vector<5x8xf32>
    %170 = arith.truncf %169 : vector<5x8xf32> to vector<5x8xbf16>
    %171 = vector.extract_strided_slice %51 {offsets = [5, 40], sizes = [5, 8], strides = [1, 1]} : vector<10x96xf32> to vector<5x8xf32>
    %172 = arith.truncf %171 : vector<5x8xf32> to vector<5x8xbf16>
    %173 = vector.extract_strided_slice %51 {offsets = [5, 72], sizes = [5, 8], strides = [1, 1]} : vector<10x96xf32> to vector<5x8xf32>
    %174 = arith.truncf %173 : vector<5x8xf32> to vector<5x8xbf16>
    %cst_70 = arith.constant dense<0.000000e+00> : vector<5x5xf32>
    %175 = tpu.matmul %170, %172, %cst_70 {dimension_numbers = #tpu.dot_dimension_numbers<[1], [1], [0], [0], [0, 0, 1, 0], [], []>} : vector<5x8xbf16>, vector<5x8xbf16>, vector<5x5xf32> -> vector<5x5xf32>
    %cst_71 = arith.constant dense<0xFF800000> : vector<5xf32>
    %176 = vector.multi_reduction <maximumf>, %175, %cst_71 [1] : vector<5x5xf32> to vector<5xf32>
    %177 = vector.shape_cast %176 : vector<5xf32> to vector<5x1xf32>
    %178 = vector.broadcast %177 : vector<5x1xf32> to vector<5x5xf32>
    %179 = arith.subf %175, %178 : vector<5x5xf32>
    %180 = math.exp %179 : vector<5x5xf32>
    %cst_72 = arith.constant dense<0.000000e+00> : vector<5xf32>
    %181 = vector.multi_reduction <add>, %180, %cst_72 [1] : vector<5x5xf32> to vector<5xf32>
    %182 = vector.shape_cast %181 : vector<5xf32> to vector<5x1xf32>
    %183 = tpu.reciprocal %182 {approx = true} : vector<5x1xf32> -> vector<5x1xf32>
    %184 = vector.broadcast %183 : vector<5x1xf32> to vector<5x5xf32>
    %185 = arith.mulf %180, %184 : vector<5x5xf32>
    %186 = arith.truncf %185 : vector<5x5xf32> to vector<5x5xbf16>
    %cst_73 = arith.constant dense<0.000000e+00> : vector<5x8xf32>
    %187 = tpu.matmul %186, %174, %cst_73 {dimension_numbers = #tpu.dot_dimension_numbers<[1], [0], [0], [1], [0, 0, 1, 1], [], []>} : vector<5x5xbf16>, vector<5x8xbf16>, vector<5x8xf32> -> vector<5x8xf32>
    %188 = arith.truncf %187 : vector<5x8xf32> to vector<5x8xbf16>
    %189 = vector.extract_strided_slice %13 {offsets = [8, 0], sizes = [8, 32], strides = [1, 1]} : vector<32x32xbf16> to vector<8x32xbf16>
    %cst_74 = arith.constant dense<0.000000e+00> : vector<5x32xf32>
    %190 = tpu.matmul %188, %189, %cst_74 {dimension_numbers = #tpu.dot_dimension_numbers<[1], [0], [0], [1], [0, 0, 1, 1], [], []>} : vector<5x8xbf16>, vector<8x32xbf16>, vector<5x32xf32> -> vector<5x32xf32>
    %191 = arith.addf %168, %190 : vector<5x32xf32>
    %192 = vector.extract_strided_slice %51 {offsets = [5, 16], sizes = [5, 8], strides = [1, 1]} : vector<10x96xf32> to vector<5x8xf32>
    %193 = arith.truncf %192 : vector<5x8xf32> to vector<5x8xbf16>
    %194 = vector.extract_strided_slice %51 {offsets = [5, 48], sizes = [5, 8], strides = [1, 1]} : vector<10x96xf32> to vector<5x8xf32>
    %195 = arith.truncf %194 : vector<5x8xf32> to vector<5x8xbf16>
    %196 = vector.extract_strided_slice %51 {offsets = [5, 80], sizes = [5, 8], strides = [1, 1]} : vector<10x96xf32> to vector<5x8xf32>
    %197 = arith.truncf %196 : vector<5x8xf32> to vector<5x8xbf16>
    %cst_75 = arith.constant dense<0.000000e+00> : vector<5x5xf32>
    %198 = tpu.matmul %193, %195, %cst_75 {dimension_numbers = #tpu.dot_dimension_numbers<[1], [1], [0], [0], [0, 0, 1, 0], [], []>} : vector<5x8xbf16>, vector<5x8xbf16>, vector<5x5xf32> -> vector<5x5xf32>
    %cst_76 = arith.constant dense<0xFF800000> : vector<5xf32>
    %199 = vector.multi_reduction <maximumf>, %198, %cst_76 [1] : vector<5x5xf32> to vector<5xf32>
    %200 = vector.shape_cast %199 : vector<5xf32> to vector<5x1xf32>
    %201 = vector.broadcast %200 : vector<5x1xf32> to vector<5x5xf32>
    %202 = arith.subf %198, %201 : vector<5x5xf32>
    %203 = math.exp %202 : vector<5x5xf32>
    %cst_77 = arith.constant dense<0.000000e+00> : vector<5xf32>
    %204 = vector.multi_reduction <add>, %203, %cst_77 [1] : vector<5x5xf32> to vector<5xf32>
    %205 = vector.shape_cast %204 : vector<5xf32> to vector<5x1xf32>
    %206 = tpu.reciprocal %205 {approx = true} : vector<5x1xf32> -> vector<5x1xf32>
    %207 = vector.broadcast %206 : vector<5x1xf32> to vector<5x5xf32>
    %208 = arith.mulf %203, %207 : vector<5x5xf32>
    %209 = arith.truncf %208 : vector<5x5xf32> to vector<5x5xbf16>
    %cst_78 = arith.constant dense<0.000000e+00> : vector<5x8xf32>
    %210 = tpu.matmul %209, %197, %cst_78 {dimension_numbers = #tpu.dot_dimension_numbers<[1], [0], [0], [1], [0, 0, 1, 1], [], []>} : vector<5x5xbf16>, vector<5x8xbf16>, vector<5x8xf32> -> vector<5x8xf32>
    %211 = arith.truncf %210 : vector<5x8xf32> to vector<5x8xbf16>
    %212 = vector.extract_strided_slice %13 {offsets = [16, 0], sizes = [8, 32], strides = [1, 1]} : vector<32x32xbf16> to vector<8x32xbf16>
    %cst_79 = arith.constant dense<0.000000e+00> : vector<5x32xf32>
    %213 = tpu.matmul %211, %212, %cst_79 {dimension_numbers = #tpu.dot_dimension_numbers<[1], [0], [0], [1], [0, 0, 1, 1], [], []>} : vector<5x8xbf16>, vector<8x32xbf16>, vector<5x32xf32> -> vector<5x32xf32>
    %214 = arith.addf %191, %213 : vector<5x32xf32>
    %215 = vector.extract_strided_slice %51 {offsets = [5, 24], sizes = [5, 8], strides = [1, 1]} : vector<10x96xf32> to vector<5x8xf32>
    %216 = arith.truncf %215 : vector<5x8xf32> to vector<5x8xbf16>
    %217 = vector.extract_strided_slice %51 {offsets = [5, 56], sizes = [5, 8], strides = [1, 1]} : vector<10x96xf32> to vector<5x8xf32>
    %218 = arith.truncf %217 : vector<5x8xf32> to vector<5x8xbf16>
    %219 = vector.extract_strided_slice %51 {offsets = [5, 88], sizes = [5, 8], strides = [1, 1]} : vector<10x96xf32> to vector<5x8xf32>
    %220 = arith.truncf %219 : vector<5x8xf32> to vector<5x8xbf16>
    %cst_80 = arith.constant dense<0.000000e+00> : vector<5x5xf32>
    %221 = tpu.matmul %216, %218, %cst_80 {dimension_numbers = #tpu.dot_dimension_numbers<[1], [1], [0], [0], [0, 0, 1, 0], [], []>} : vector<5x8xbf16>, vector<5x8xbf16>, vector<5x5xf32> -> vector<5x5xf32>
    %cst_81 = arith.constant dense<0xFF800000> : vector<5xf32>
    %222 = vector.multi_reduction <maximumf>, %221, %cst_81 [1] : vector<5x5xf32> to vector<5xf32>
    %223 = vector.shape_cast %222 : vector<5xf32> to vector<5x1xf32>
    %224 = vector.broadcast %223 : vector<5x1xf32> to vector<5x5xf32>
    %225 = arith.subf %221, %224 : vector<5x5xf32>
    %226 = math.exp %225 : vector<5x5xf32>
    %cst_82 = arith.constant dense<0.000000e+00> : vector<5xf32>
    %227 = vector.multi_reduction <add>, %226, %cst_82 [1] : vector<5x5xf32> to vector<5xf32>
    %228 = vector.shape_cast %227 : vector<5xf32> to vector<5x1xf32>
    %229 = tpu.reciprocal %228 {approx = true} : vector<5x1xf32> -> vector<5x1xf32>
    %230 = vector.broadcast %229 : vector<5x1xf32> to vector<5x5xf32>
    %231 = arith.mulf %226, %230 : vector<5x5xf32>
    %232 = arith.truncf %231 : vector<5x5xf32> to vector<5x5xbf16>
    %cst_83 = arith.constant dense<0.000000e+00> : vector<5x8xf32>
    %233 = tpu.matmul %232, %220, %cst_83 {dimension_numbers = #tpu.dot_dimension_numbers<[1], [0], [0], [1], [0, 0, 1, 1], [], []>} : vector<5x5xbf16>, vector<5x8xbf16>, vector<5x8xf32> -> vector<5x8xf32>
    %234 = arith.truncf %233 : vector<5x8xf32> to vector<5x8xbf16>
    %235 = vector.extract_strided_slice %13 {offsets = [24, 0], sizes = [8, 32], strides = [1, 1]} : vector<32x32xbf16> to vector<8x32xbf16>
    %cst_84 = arith.constant dense<0.000000e+00> : vector<5x32xf32>
    %236 = tpu.matmul %234, %235, %cst_84 {dimension_numbers = #tpu.dot_dimension_numbers<[1], [0], [0], [1], [0, 0, 1, 1], [], []>} : vector<5x8xbf16>, vector<8x32xbf16>, vector<5x32xf32> -> vector<5x32xf32>
    %237 = arith.addf %214, %236 : vector<5x32xf32>
    %238 = tpu.concatenate %144, %237 in 0 : vector<5x32xf32>, vector<5x32xf32> -> vector<10x32xf32>
    %239 = arith.addf %3, %238 : vector<10x32xf32>
    %240 = vector.broadcast %15 : vector<1x32xf32> to vector<10x32xf32>
    %241 = arith.addf %239, %240 : vector<10x32xf32>
    %cst_85 = arith.constant dense<0.000000e+00> : vector<10xf32>
    %242 = vector.multi_reduction <add>, %241, %cst_85 [1] : vector<10x32xf32> to vector<10xf32>
    %243 = vector.shape_cast %242 : vector<10xf32> to vector<10x1xf32>
    %cst_86 = arith.constant 3.200000e+01 : f32
    %244 = vector.broadcast %cst_86 : f32 to vector<10x1xf32>
    %245 = arith.divf %243, %244 : vector<10x1xf32>
    %246 = vector.broadcast %245 : vector<10x1xf32> to vector<10x32xf32>
    %247 = arith.subf %241, %246 : vector<10x32xf32>
    %248 = arith.mulf %247, %247 : vector<10x32xf32>
    %cst_87 = arith.constant dense<0.000000e+00> : vector<10xf32>
    %249 = vector.multi_reduction <add>, %248, %cst_87 [1] : vector<10x32xf32> to vector<10xf32>
    %250 = vector.shape_cast %249 : vector<10xf32> to vector<10x1xf32>
    %cst_88 = arith.constant 3.200000e+01 : f32
    %251 = vector.broadcast %cst_88 : f32 to vector<10x1xf32>
    %252 = arith.divf %250, %251 : vector<10x1xf32>
    %cst_89 = arith.constant 9.99999997E-7 : f32
    %253 = vector.broadcast %cst_89 : f32 to vector<10x1xf32>
    %254 = arith.addf %252, %253 : vector<10x1xf32>
    %255 = math.rsqrt %254 : vector<10x1xf32>
    %256 = vector.broadcast %255 : vector<10x1xf32> to vector<10x32xf32>
    %257 = arith.mulf %247, %256 : vector<10x32xf32>
    %258 = vector.broadcast %17 : vector<1x32xf32> to vector<10x32xf32>
    %259 = arith.mulf %257, %258 : vector<10x32xf32>
    %260 = vector.broadcast %19 : vector<1x32xf32> to vector<10x32xf32>
    %261 = arith.addf %259, %260 : vector<10x32xf32>
    %262 = arith.truncf %261 : vector<10x32xf32> to vector<10x32xbf16>
    %cst_90 = arith.constant dense<0.000000e+00> : vector<10x64xf32>
    %263 = tpu.matmul %262, %21, %cst_90 {dimension_numbers = #tpu.dot_dimension_numbers<[1], [0], [0], [1], [0, 0, 1, 1], [], []>} : vector<10x32xbf16>, vector<32x64xbf16>, vector<10x64xf32> -> vector<10x64xf32>
    %264 = vector.broadcast %23 : vector<1x64xf32> to vector<10x64xf32>
    %265 = arith.addf %263, %264 : vector<10x64xf32>
    %266 = arith.mulf %265, %265 : vector<10x64xf32>
    %267 = arith.mulf %265, %266 : vector<10x64xf32>
    %cst_91 = arith.constant 4.471500e-02 : f32
    %268 = vector.broadcast %cst_91 : f32 to vector<10x64xf32>
    %269 = arith.mulf %268, %267 : vector<10x64xf32>
    %270 = arith.addf %265, %269 : vector<10x64xf32>
    %cst_92 = arith.constant 0.797884583 : f32
    %271 = vector.broadcast %cst_92 : f32 to vector<10x64xf32>
    %272 = arith.mulf %271, %270 : vector<10x64xf32>
    %273 = math.tanh %272 : vector<10x64xf32>
    %cst_93 = arith.constant 1.000000e+00 : f32
    %274 = vector.broadcast %cst_93 : f32 to vector<10x64xf32>
    %275 = arith.addf %274, %273 : vector<10x64xf32>
    %cst_94 = arith.constant 5.000000e-01 : f32
    %276 = vector.broadcast %cst_94 : f32 to vector<10x64xf32>
    %277 = arith.mulf %276, %275 : vector<10x64xf32>
    %278 = arith.mulf %265, %277 : vector<10x64xf32>
    %279 = arith.truncf %278 : vector<10x64xf32> to vector<10x64xbf16>
    %cst_95 = arith.constant dense<0.000000e+00> : vector<10x32xf32>
    %280 = tpu.matmul %279, %25, %cst_95 {dimension_numbers = #tpu.dot_dimension_numbers<[1], [0], [0], [1], [0, 0, 1, 1], [], []>} : vector<10x64xbf16>, vector<64x32xbf16>, vector<10x32xf32> -> vector<10x32xf32>
    %281 = vector.broadcast %27 : vector<1x32xf32> to vector<10x32xf32>
    %282 = arith.addf %280, %281 : vector<10x32xf32>
    %283 = arith.addf %241, %282 : vector<10x32xf32>
    %c0_96 = arith.constant 0 : index
    %c0_97 = arith.constant 0 : index
    %284 = vector.load %arg19[%c0_96, %c0_97] : memref<10x32xf32, #tpu.memory_space<vmem>>, vector<10x32xf32>
    tpu.vector_store %arg19[%c0_96, %c0_97], %283 {strides = array<i32>} : memref<10x32xf32, #tpu.memory_space<vmem>>, vector<10x32xf32>,
    %c1_i32 = arith.constant 1 : i32
    %285 = arith.cmpi eq, %arg0, %c1_i32 : i32
    %286 = arith.extui %285 : i1 to i32
    %c0_i32_98 = arith.constant 0 : i32
    %287 = arith.cmpi ne, %286, %c0_i32_98 : i32
    scf.if %287 {
      %c0_99 = arith.constant 0 : index
      %c0_100 = arith.constant 0 : index
      %288 = vector.load %arg14[%c0_99, %c0_100] : memref<1x32xf32, #tpu.memory_space<vmem>>, vector<1x32xf32>
      %c0_101 = arith.constant 0 : index
      %c0_102 = arith.constant 0 : index
      %289 = vector.load %arg15[%c0_101, %c0_102] : memref<1x32xf32, #tpu.memory_space<vmem>>, vector<1x32xf32>
      %cst_103 = arith.constant dense<0.000000e+00> : vector<10xf32>
      %290 = vector.multi_reduction <add>, %283, %cst_103 [1] : vector<10x32xf32> to vector<10xf32>
      %291 = vector.shape_cast %290 : vector<10xf32> to vector<10x1xf32>
      %cst_104 = arith.constant 3.200000e+01 : f32
      %292 = vector.broadcast %cst_104 : f32 to vector<10x1xf32>
      %293 = arith.divf %291, %292 : vector<10x1xf32>
      %294 = vector.broadcast %293 : vector<10x1xf32> to vector<10x32xf32>
      %295 = arith.subf %283, %294 : vector<10x32xf32>
      %296 = arith.mulf %295, %295 : vector<10x32xf32>
      %cst_105 = arith.constant dense<0.000000e+00> : vector<10xf32>
      %297 = vector.multi_reduction <add>, %296, %cst_105 [1] : vector<10x32xf32> to vector<10xf32>
      %298 = vector.shape_cast %297 : vector<10xf32> to vector<10x1xf32>
      %cst_106 = arith.constant 3.200000e+01 : f32
      %299 = vector.broadcast %cst_106 : f32 to vector<10x1xf32>
      %300 = arith.divf %298, %299 : vector<10x1xf32>
      %cst_107 = arith.constant 9.99999997E-7 : f32
      %301 = vector.broadcast %cst_107 : f32 to vector<10x1xf32>
      %302 = arith.addf %300, %301 : vector<10x1xf32>
      %303 = math.rsqrt %302 : vector<10x1xf32>
      %304 = vector.broadcast %303 : vector<10x1xf32> to vector<10x32xf32>
      %305 = arith.mulf %295, %304 : vector<10x32xf32>
      %306 = vector.broadcast %288 : vector<1x32xf32> to vector<10x32xf32>
      %307 = arith.mulf %305, %306 : vector<10x32xf32>
      %308 = vector.broadcast %289 : vector<1x32xf32> to vector<10x32xf32>
      %309 = arith.addf %307, %308 : vector<10x32xf32>
      %c0_108 = arith.constant 0 : index
      %c0_109 = arith.constant 0 : index
      %310 = vector.load %arg16[%c0_108, %c0_109] : memref<1x32xf32, #tpu.memory_space<vmem>>, vector<1x32xf32>
      %c0_110 = arith.constant 0 : index
      %c0_111 = arith.constant 0 : index
      %311 = vector.load %arg17[%c0_110, %c0_111] : memref<1x32xf32, #tpu.memory_space<vmem>>, vector<1x32xf32>
      %cst_112 = arith.constant dense<0.000000e+00> : vector<10xf32>
      %312 = vector.multi_reduction <add>, %309, %cst_112 [1] : vector<10x32xf32> to vector<10xf32>
      %313 = vector.shape_cast %312 : vector<10xf32> to vector<10x1xf32>
      %cst_113 = arith.constant 3.200000e+01 : f32
      %314 = vector.broadcast %cst_113 : f32 to vector<10x1xf32>
      %315 = arith.divf %313, %314 : vector<10x1xf32>
      %316 = vector.broadcast %315 : vector<10x1xf32> to vector<10x32xf32>
      %317 = arith.subf %309, %316 : vector<10x32xf32>
      %318 = arith.mulf %317, %317 : vector<10x32xf32>
      %cst_114 = arith.constant dense<0.000000e+00> : vector<10xf32>
      %319 = vector.multi_reduction <add>, %318, %cst_114 [1] : vector<10x32xf32> to vector<10xf32>
      %320 = vector.shape_cast %319 : vector<10xf32> to vector<10x1xf32>
      %cst_115 = arith.constant 3.200000e+01 : f32
      %321 = vector.broadcast %cst_115 : f32 to vector<10x1xf32>
      %322 = arith.divf %320, %321 : vector<10x1xf32>
      %cst_116 = arith.constant 9.99999974E-6 : f32
      %323 = vector.broadcast %cst_116 : f32 to vector<10x1xf32>
      %324 = arith.addf %322, %323 : vector<10x1xf32>
      %325 = math.rsqrt %324 : vector<10x1xf32>
      %326 = vector.broadcast %325 : vector<10x1xf32> to vector<10x32xf32>
      %327 = arith.mulf %317, %326 : vector<10x32xf32>
      %328 = vector.broadcast %310 : vector<1x32xf32> to vector<10x32xf32>
      %329 = arith.mulf %327, %328 : vector<10x32xf32>
      %330 = vector.broadcast %311 : vector<1x32xf32> to vector<10x32xf32>
      %331 = arith.addf %329, %330 : vector<10x32xf32>
      %c0_117 = arith.constant 0 : index
      %c0_118 = arith.constant 0 : index
      %332 = vector.load %arg18[%c0_117, %c0_118] : memref<10x32xf32, #tpu.memory_space<vmem>>, vector<10x32xf32>
      tpu.vector_store %arg18[%c0_117, %c0_118], %331 {strides = array<i32>} : memref<10x32xf32, #tpu.memory_space<vmem>>, vector<10x32xf32>,
    } else {
    }
    return
  }
  func.func @transform_0(%arg0: i32) -> (i32, i32) {
    %c0_i32 = arith.constant 0 : i32
    %c0_i32_0 = arith.constant 0 : i32
    %c0_i32_1 = arith.constant 0 : i32
    return %c0_i32, %c0_i32_0 : i32, i32
  }
  func.func @transform_1(%arg0: i32) -> (i32, i32, i32) {
    %c0_i32 = arith.constant 0 : i32
    %c0_i32_0 = arith.constant 0 : i32
    %c0_i32_1 = arith.constant 0 : i32
    return %arg0, %c0_i32, %c0_i32_0 : i32, i32, i32
  }
  func.func @transform_2(%arg0: i32) -> (i32, i32, i32) {
    %c0_i32 = arith.constant 0 : i32
    %c0_i32_0 = arith.constant 0 : i32
    %c0_i32_1 = arith.constant 0 : i32
    return %arg0, %c0_i32, %c0_i32_0 : i32, i32, i32
  }
  func.func @transform_3(%arg0: i32) -> (i32, i32, i32) {
    %c0_i32 = arith.constant 0 : i32
    %c0_i32_0 = arith.constant 0 : i32
    %c0_i32_1 = arith.constant 0 : i32
    return %arg0, %c0_i32, %c0_i32_0 : i32, i32, i32
  }
  func.func @transform_4(%arg0: i32) -> (i32, i32, i32) {
    %c0_i32 = arith.constant 0 : i32
    %c0_i32_0 = arith.constant 0 : i32
    %c0_i32_1 = arith.constant 0 : i32
    return %arg0, %c0_i32, %c0_i32_0 : i32, i32, i32
  }
  func.func @transform_5(%arg0: i32) -> (i32, i32, i32) {
    %c0_i32 = arith.constant 0 : i32
    %c0_i32_0 = arith.constant 0 : i32
    %c0_i32_1 = arith.constant 0 : i32
    return %arg0, %c0_i32, %c0_i32_0 : i32, i32, i32
  }
  func.func @transform_6(%arg0: i32) -> (i32, i32, i32) {
    %c0_i32 = arith.constant 0 : i32
    %c0_i32_0 = arith.constant 0 : i32
    %c0_i32_1 = arith.constant 0 : i32
    return %arg0, %c0_i32, %c0_i32_0 : i32, i32, i32
  }
  func.func @transform_7(%arg0: i32) -> (i32, i32, i32) {
    %c0_i32 = arith.constant 0 : i32
    %c0_i32_0 = arith.constant 0 : i32
    %c0_i32_1 = arith.constant 0 : i32
    return %arg0, %c0_i32, %c0_i32_0 : i32, i32, i32
  }
  func.func @transform_8(%arg0: i32) -> (i32, i32, i32) {
    %c0_i32 = arith.constant 0 : i32
    %c0_i32_0 = arith.constant 0 : i32
    %c0_i32_1 = arith.constant 0 : i32
    return %arg0, %c0_i32, %c0_i32_0 : i32, i32, i32
  }
  func.func @transform_9(%arg0: i32) -> (i32, i32, i32) {
    %c0_i32 = arith.constant 0 : i32
    %c0_i32_0 = arith.constant 0 : i32
    %c0_i32_1 = arith.constant 0 : i32
    return %arg0, %c0_i32, %c0_i32_0 : i32, i32, i32
  }
  func.func @transform_10(%arg0: i32) -> (i32, i32, i32) {
    %c0_i32 = arith.constant 0 : i32
    %c0_i32_0 = arith.constant 0 : i32
    %c0_i32_1 = arith.constant 0 : i32
    return %arg0, %c0_i32, %c0_i32_0 : i32, i32, i32
  }
  func.func @transform_11(%arg0: i32) -> (i32, i32, i32) {
    %c0_i32 = arith.constant 0 : i32
    %c0_i32_0 = arith.constant 0 : i32
    %c0_i32_1 = arith.constant 0 : i32
    return %arg0, %c0_i32, %c0_i32_0 : i32, i32, i32
  }
  func.func @transform_12(%arg0: i32) -> (i32, i32, i32) {
    %c0_i32 = arith.constant 0 : i32
    %c0_i32_0 = arith.constant 0 : i32
    %c0_i32_1 = arith.constant 0 : i32
    return %arg0, %c0_i32, %c0_i32_0 : i32, i32, i32
  }
  func.func @transform_13(%arg0: i32) -> (i32, i32) {
    %c0_i32 = arith.constant 0 : i32
    %c0_i32_0 = arith.constant 0 : i32
    %c0_i32_1 = arith.constant 0 : i32
    return %c0_i32, %c0_i32_0 : i32, i32
  }
  func.func @transform_14(%arg0: i32) -> (i32, i32) {
    %c0_i32 = arith.constant 0 : i32
    %c0_i32_0 = arith.constant 0 : i32
    %c0_i32_1 = arith.constant 0 : i32
    return %c0_i32, %c0_i32_0 : i32, i32
  }
  func.func @transform_15(%arg0: i32) -> (i32, i32) {
    %c0_i32 = arith.constant 0 : i32
    %c0_i32_0 = arith.constant 0 : i32
    %c0_i32_1 = arith.constant 0 : i32
    return %c0_i32, %c0_i32_0 : i32, i32
  }
  func.func @transform_16(%arg0: i32) -> (i32, i32) {
    %c0_i32 = arith.constant 0 : i32
    %c0_i32_0 = arith.constant 0 : i32
    %c0_i32_1 = arith.constant 0 : i32
    return %c0_i32, %c0_i32_0 : i32, i32
  }
  func.func @transform_17(%arg0: i32) -> (i32, i32) {
    %c0_i32 = arith.constant 0 : i32
    %c0_i32_0 = arith.constant 0 : i32
    %c0_i32_1 = arith.constant 0 : i32
    return %c0_i32, %c0_i32_0 : i32, i32
  }
}

module attributes {stable_mosaic.version = 11 : i64} {
  func.func @decoder_stack_kernel(%arg0: i32, %arg1: memref<32x32xf32, #tpu.memory_space<vmem>>, %arg2: memref<32x32xbf16, #tpu.memory_space<vmem>>, %arg3: memref<1x32xf32, #tpu.memory_space<vmem>>, %arg4: memref<32x32xf32, #tpu.memory_space<vmem>>, %arg5: memref<1x1x32xf32, #tpu.memory_space<vmem>>, %arg6: memref<1x1x32xf32, #tpu.memory_space<vmem>>, %arg7: memref<1x32x96xbf16, #tpu.memory_space<vmem>>, %arg8: memref<1x1x96xf32, #tpu.memory_space<vmem>>, %arg9: memref<1x32x32xbf16, #tpu.memory_space<vmem>>, %arg10: memref<1x1x32xf32, #tpu.memory_space<vmem>>, %arg11: memref<1x1x32xf32, #tpu.memory_space<vmem>>, %arg12: memref<1x1x32xf32, #tpu.memory_space<vmem>>, %arg13: memref<1x32x64xbf16, #tpu.memory_space<vmem>>, %arg14: memref<1x1x64xf32, #tpu.memory_space<vmem>>, %arg15: memref<1x64x32xbf16, #tpu.memory_space<vmem>>, %arg16: memref<1x1x32xf32, #tpu.memory_space<vmem>>, %arg17: memref<1x32xf32, #tpu.memory_space<vmem>>, %arg18: memref<1x32xf32, #tpu.memory_space<vmem>>, %arg19: memref<1x32xf32, #tpu.memory_space<vmem>>, %arg20: memref<1x32xf32, #tpu.memory_space<vmem>>, %arg21: memref<32x48xbf16, #tpu.memory_space<vmem>>, %arg22: memref<1x48xf32, #tpu.memory_space<vmem>>, %arg23: memref<32x48xf32, #tpu.memory_space<vmem>>, %arg24: memref<32x32xf32, #tpu.memory_space<vmem>>) attributes {dimension_semantics = [#tpu.dimension_semantics<arbitrary>], iteration_bounds = array<i64: 2>, scalar_prefetch = 0 : i64, scratch_operands = 1 : i64, tpu.core_type = #tpu.core_type<tc>, window_params = [{pipeline_mode = #tpu.pipeline_mode<synchronous>, transform_indices = @transform_0, window_bounds = array<i64: 32, 32>}, {pipeline_mode = #tpu.pipeline_mode<synchronous>, transform_indices = @transform_1, window_bounds = array<i64: 32, 32>}, {pipeline_mode = #tpu.pipeline_mode<synchronous>, transform_indices = @transform_2, window_bounds = array<i64: 1, 32>}, {pipeline_mode = #tpu.pipeline_mode<synchronous>, transform_indices = @transform_3, window_bounds = array<i64: 32, 32>}, {transform_indices = @transform_4, window_bounds = array<i64: 1, 1, 32>}, {transform_indices = @transform_5, window_bounds = array<i64: 1, 1, 32>}, {transform_indices = @transform_6, window_bounds = array<i64: 1, 32, 96>}, {transform_indices = @transform_7, window_bounds = array<i64: 1, 1, 96>}, {transform_indices = @transform_8, window_bounds = array<i64: 1, 32, 32>}, {transform_indices = @transform_9, window_bounds = array<i64: 1, 1, 32>}, {transform_indices = @transform_10, window_bounds = array<i64: 1, 1, 32>}, {transform_indices = @transform_11, window_bounds = array<i64: 1, 1, 32>}, {transform_indices = @transform_12, window_bounds = array<i64: 1, 32, 64>}, {transform_indices = @transform_13, window_bounds = array<i64: 1, 1, 64>}, {transform_indices = @transform_14, window_bounds = array<i64: 1, 64, 32>}, {transform_indices = @transform_15, window_bounds = array<i64: 1, 1, 32>}, {pipeline_mode = #tpu.pipeline_mode<synchronous>, transform_indices = @transform_16, window_bounds = array<i64: 1, 32>}, {pipeline_mode = #tpu.pipeline_mode<synchronous>, transform_indices = @transform_17, window_bounds = array<i64: 1, 32>}, {pipeline_mode = #tpu.pipeline_mode<synchronous>, transform_indices = @transform_18, window_bounds = array<i64: 1, 32>}, {pipeline_mode = #tpu.pipeline_mode<synchronous>, transform_indices = @transform_19, window_bounds = array<i64: 1, 32>}, {pipeline_mode = #tpu.pipeline_mode<synchronous>, transform_indices = @transform_20, window_bounds = array<i64: 32, 48>}, {pipeline_mode = #tpu.pipeline_mode<synchronous>, transform_indices = @transform_21, window_bounds = array<i64: 1, 48>}, {pipeline_mode = #tpu.pipeline_mode<synchronous>, transform_indices = @transform_22, window_bounds = array<i64: 32, 48>}]} {
    %c0_i32 = arith.constant 0 : i32
    %0 = arith.cmpi eq, %arg0, %c0_i32 : i32
    %1 = arith.extui %0 : i1 to i32
    %c0_i32_0 = arith.constant 0 : i32
    %2 = arith.cmpi ne, %1, %c0_i32_0 : i32
    scf.if %2 {
      %c0_99 = arith.constant 0 : index
      %c0_100 = arith.constant 0 : index
      %288 = vector.load %arg1[%c0_99, %c0_100] : memref<32x32xf32, #tpu.memory_space<vmem>>, vector<32x32xf32>
      %289 = arith.truncf %288 : vector<32x32xf32> to vector<32x32xbf16>
      %c0_101 = arith.constant 0 : index
      %c0_102 = arith.constant 0 : index
      %290 = vector.load %arg2[%c0_101, %c0_102] : memref<32x32xbf16, #tpu.memory_space<vmem>>, vector<32x32xbf16>
      %cst_103 = arith.constant dense<0.000000e+00> : vector<32x32xf32>
      %291 = tpu.matmul %289, %290, %cst_103 {dimension_numbers = #tpu.dot_dimension_numbers<[1], [0], [0], [1], [0, 0, 1, 1], [], []>} : vector<32x32xbf16>, vector<32x32xbf16>, vector<32x32xf32> -> vector<32x32xf32>
      %c0_104 = arith.constant 0 : index
      %c0_105 = arith.constant 0 : index
      %292 = vector.load %arg3[%c0_104, %c0_105] : memref<1x32xf32, #tpu.memory_space<vmem>>, vector<1x32xf32>
      %293 = vector.broadcast %292 : vector<1x32xf32> to vector<32x32xf32>
      %294 = arith.addf %291, %293 : vector<32x32xf32>
      %c0_106 = arith.constant 0 : index
      %c0_107 = arith.constant 0 : index
      %295 = vector.load %arg4[%c0_106, %c0_107] : memref<32x32xf32, #tpu.memory_space<vmem>>, vector<32x32xf32>
      %296 = arith.addf %294, %295 : vector<32x32xf32>
      %c0_108 = arith.constant 0 : index
      %c0_109 = arith.constant 0 : index
      %297 = vector.load %arg24[%c0_108, %c0_109] : memref<32x32xf32, #tpu.memory_space<vmem>>, vector<32x32xf32>
      tpu.vector_store %arg24[%c0_108, %c0_109], %296 {strides = array<i32>} : memref<32x32xf32, #tpu.memory_space<vmem>>, vector<32x32xf32>,
    } else {
    }
    %c0 = arith.constant 0 : index
    %c0_1 = arith.constant 0 : index
    %3 = vector.load %arg24[%c0, %c0_1] : memref<32x32xf32, #tpu.memory_space<vmem>>, vector<32x32xf32>
    %c0_2 = arith.constant 0 : index
    %c0_3 = arith.constant 0 : index
    %c0_4 = arith.constant 0 : index
    %4 = vector.load %arg5[%c0_2, %c0_3, %c0_4] : memref<1x1x32xf32, #tpu.memory_space<vmem>>, vector<1x1x32xf32>
    %5 = vector.shape_cast %4 : vector<1x1x32xf32> to vector<1x32xf32>
    %c0_5 = arith.constant 0 : index
    %c0_6 = arith.constant 0 : index
    %c0_7 = arith.constant 0 : index
    %6 = vector.load %arg6[%c0_5, %c0_6, %c0_7] : memref<1x1x32xf32, #tpu.memory_space<vmem>>, vector<1x1x32xf32>
    %7 = vector.shape_cast %6 : vector<1x1x32xf32> to vector<1x32xf32>
    %c0_8 = arith.constant 0 : index
    %c0_9 = arith.constant 0 : index
    %c0_10 = arith.constant 0 : index
    %8 = vector.load %arg7[%c0_8, %c0_9, %c0_10] : memref<1x32x96xbf16, #tpu.memory_space<vmem>>, vector<1x32x96xbf16>
    %9 = vector.shape_cast %8 : vector<1x32x96xbf16> to vector<32x96xbf16>
    %c0_11 = arith.constant 0 : index
    %c0_12 = arith.constant 0 : index
    %c0_13 = arith.constant 0 : index
    %10 = vector.load %arg8[%c0_11, %c0_12, %c0_13] : memref<1x1x96xf32, #tpu.memory_space<vmem>>, vector<1x1x96xf32>
    %11 = vector.shape_cast %10 : vector<1x1x96xf32> to vector<1x96xf32>
    %c0_14 = arith.constant 0 : index
    %c0_15 = arith.constant 0 : index
    %c0_16 = arith.constant 0 : index
    %12 = vector.load %arg9[%c0_14, %c0_15, %c0_16] : memref<1x32x32xbf16, #tpu.memory_space<vmem>>, vector<1x32x32xbf16>
    %13 = vector.shape_cast %12 : vector<1x32x32xbf16> to vector<32x32xbf16>
    %c0_17 = arith.constant 0 : index
    %c0_18 = arith.constant 0 : index
    %c0_19 = arith.constant 0 : index
    %14 = vector.load %arg10[%c0_17, %c0_18, %c0_19] : memref<1x1x32xf32, #tpu.memory_space<vmem>>, vector<1x1x32xf32>
    %15 = vector.shape_cast %14 : vector<1x1x32xf32> to vector<1x32xf32>
    %c0_20 = arith.constant 0 : index
    %c0_21 = arith.constant 0 : index
    %c0_22 = arith.constant 0 : index
    %16 = vector.load %arg11[%c0_20, %c0_21, %c0_22] : memref<1x1x32xf32, #tpu.memory_space<vmem>>, vector<1x1x32xf32>
    %17 = vector.shape_cast %16 : vector<1x1x32xf32> to vector<1x32xf32>
    %c0_23 = arith.constant 0 : index
    %c0_24 = arith.constant 0 : index
    %c0_25 = arith.constant 0 : index
    %18 = vector.load %arg12[%c0_23, %c0_24, %c0_25] : memref<1x1x32xf32, #tpu.memory_space<vmem>>, vector<1x1x32xf32>
    %19 = vector.shape_cast %18 : vector<1x1x32xf32> to vector<1x32xf32>
    %c0_26 = arith.constant 0 : index
    %c0_27 = arith.constant 0 : index
    %c0_28 = arith.constant 0 : index
    %20 = vector.load %arg13[%c0_26, %c0_27, %c0_28] : memref<1x32x64xbf16, #tpu.memory_space<vmem>>, vector<1x32x64xbf16>
    %21 = vector.shape_cast %20 : vector<1x32x64xbf16> to vector<32x64xbf16>
    %c0_29 = arith.constant 0 : index
    %c0_30 = arith.constant 0 : index
    %c0_31 = arith.constant 0 : index
    %22 = vector.load %arg14[%c0_29, %c0_30, %c0_31] : memref<1x1x64xf32, #tpu.memory_space<vmem>>, vector<1x1x64xf32>
    %23 = vector.shape_cast %22 : vector<1x1x64xf32> to vector<1x64xf32>
    %c0_32 = arith.constant 0 : index
    %c0_33 = arith.constant 0 : index
    %c0_34 = arith.constant 0 : index
    %24 = vector.load %arg15[%c0_32, %c0_33, %c0_34] : memref<1x64x32xbf16, #tpu.memory_space<vmem>>, vector<1x64x32xbf16>
    %25 = vector.shape_cast %24 : vector<1x64x32xbf16> to vector<64x32xbf16>
    %c0_35 = arith.constant 0 : index
    %c0_36 = arith.constant 0 : index
    %c0_37 = arith.constant 0 : index
    %26 = vector.load %arg16[%c0_35, %c0_36, %c0_37] : memref<1x1x32xf32, #tpu.memory_space<vmem>>, vector<1x1x32xf32>
    %27 = vector.shape_cast %26 : vector<1x1x32xf32> to vector<1x32xf32>
    %cst = arith.constant dense<0.000000e+00> : vector<32xf32>
    %28 = vector.multi_reduction <add>, %3, %cst [1] : vector<32x32xf32> to vector<32xf32>
    %29 = vector.shape_cast %28 : vector<32xf32> to vector<32x1xf32>
    %cst_38 = arith.constant 3.200000e+01 : f32
    %30 = vector.broadcast %cst_38 : f32 to vector<32x1xf32>
    %31 = arith.divf %29, %30 : vector<32x1xf32>
    %32 = vector.broadcast %31 : vector<32x1xf32> to vector<32x32xf32>
    %33 = arith.subf %3, %32 : vector<32x32xf32>
    %34 = arith.mulf %33, %33 : vector<32x32xf32>
    %cst_39 = arith.constant dense<0.000000e+00> : vector<32xf32>
    %35 = vector.multi_reduction <add>, %34, %cst_39 [1] : vector<32x32xf32> to vector<32xf32>
    %36 = vector.shape_cast %35 : vector<32xf32> to vector<32x1xf32>
    %cst_40 = arith.constant 3.200000e+01 : f32
    %37 = vector.broadcast %cst_40 : f32 to vector<32x1xf32>
    %38 = arith.divf %36, %37 : vector<32x1xf32>
    %cst_41 = arith.constant 9.99999997E-7 : f32
    %39 = vector.broadcast %cst_41 : f32 to vector<32x1xf32>
    %40 = arith.addf %38, %39 : vector<32x1xf32>
    %41 = math.rsqrt %40 : vector<32x1xf32>
    %42 = vector.broadcast %41 : vector<32x1xf32> to vector<32x32xf32>
    %43 = arith.mulf %33, %42 : vector<32x32xf32>
    %44 = vector.broadcast %5 : vector<1x32xf32> to vector<32x32xf32>
    %45 = arith.mulf %43, %44 : vector<32x32xf32>
    %46 = vector.broadcast %7 : vector<1x32xf32> to vector<32x32xf32>
    %47 = arith.addf %45, %46 : vector<32x32xf32>
    %48 = arith.truncf %47 : vector<32x32xf32> to vector<32x32xbf16>
    %cst_42 = arith.constant dense<0.000000e+00> : vector<32x96xf32>
    %49 = tpu.matmul %48, %9, %cst_42 {dimension_numbers = #tpu.dot_dimension_numbers<[1], [0], [0], [1], [0, 0, 1, 1], [], []>} : vector<32x32xbf16>, vector<32x96xbf16>, vector<32x96xf32> -> vector<32x96xf32>
    %50 = vector.broadcast %11 : vector<1x96xf32> to vector<32x96xf32>
    %51 = arith.addf %49, %50 : vector<32x96xf32>
    %cst_43 = arith.constant 0.000000e+00 : f32
    %52 = vector.broadcast %cst_43 : f32 to vector<16x32xf32>
    %53 = vector.extract_strided_slice %51 {offsets = [0, 0], sizes = [16, 8], strides = [1, 1]} : vector<32x96xf32> to vector<16x8xf32>
    %54 = arith.truncf %53 : vector<16x8xf32> to vector<16x8xbf16>
    %55 = vector.extract_strided_slice %51 {offsets = [0, 32], sizes = [16, 8], strides = [1, 1]} : vector<32x96xf32> to vector<16x8xf32>
    %56 = arith.truncf %55 : vector<16x8xf32> to vector<16x8xbf16>
    %57 = vector.extract_strided_slice %51 {offsets = [0, 64], sizes = [16, 8], strides = [1, 1]} : vector<32x96xf32> to vector<16x8xf32>
    %58 = arith.truncf %57 : vector<16x8xf32> to vector<16x8xbf16>
    %cst_44 = arith.constant dense<0.000000e+00> : vector<16x16xf32>
    %59 = tpu.matmul %54, %56, %cst_44 {dimension_numbers = #tpu.dot_dimension_numbers<[1], [1], [0], [0], [0, 0, 1, 0], [], []>} : vector<16x8xbf16>, vector<16x8xbf16>, vector<16x16xf32> -> vector<16x16xf32>
    %cst_45 = arith.constant dense<0xFF800000> : vector<16xf32>
    %60 = vector.multi_reduction <maximumf>, %59, %cst_45 [1] : vector<16x16xf32> to vector<16xf32>
    %61 = vector.shape_cast %60 : vector<16xf32> to vector<16x1xf32>
    %62 = vector.broadcast %61 : vector<16x1xf32> to vector<16x16xf32>
    %63 = arith.subf %59, %62 : vector<16x16xf32>
    %64 = math.exp %63 : vector<16x16xf32>
    %cst_46 = arith.constant dense<0.000000e+00> : vector<16xf32>
    %65 = vector.multi_reduction <add>, %64, %cst_46 [1] : vector<16x16xf32> to vector<16xf32>
    %66 = vector.shape_cast %65 : vector<16xf32> to vector<16x1xf32>
    %67 = tpu.reciprocal %66 {approx = true} : vector<16x1xf32> -> vector<16x1xf32>
    %68 = vector.broadcast %67 : vector<16x1xf32> to vector<16x16xf32>
    %69 = arith.mulf %64, %68 : vector<16x16xf32>
    %70 = arith.truncf %69 : vector<16x16xf32> to vector<16x16xbf16>
    %cst_47 = arith.constant dense<0.000000e+00> : vector<16x8xf32>
    %71 = tpu.matmul %70, %58, %cst_47 {dimension_numbers = #tpu.dot_dimension_numbers<[1], [0], [0], [1], [0, 0, 1, 1], [], []>} : vector<16x16xbf16>, vector<16x8xbf16>, vector<16x8xf32> -> vector<16x8xf32>
    %72 = arith.truncf %71 : vector<16x8xf32> to vector<16x8xbf16>
    %73 = vector.extract_strided_slice %13 {offsets = [0, 0], sizes = [8, 32], strides = [1, 1]} : vector<32x32xbf16> to vector<8x32xbf16>
    %cst_48 = arith.constant dense<0.000000e+00> : vector<16x32xf32>
    %74 = tpu.matmul %72, %73, %cst_48 {dimension_numbers = #tpu.dot_dimension_numbers<[1], [0], [0], [1], [0, 0, 1, 1], [], []>} : vector<16x8xbf16>, vector<8x32xbf16>, vector<16x32xf32> -> vector<16x32xf32>
    %75 = arith.addf %52, %74 : vector<16x32xf32>
    %76 = vector.extract_strided_slice %51 {offsets = [0, 8], sizes = [16, 8], strides = [1, 1]} : vector<32x96xf32> to vector<16x8xf32>
    %77 = arith.truncf %76 : vector<16x8xf32> to vector<16x8xbf16>
    %78 = vector.extract_strided_slice %51 {offsets = [0, 40], sizes = [16, 8], strides = [1, 1]} : vector<32x96xf32> to vector<16x8xf32>
    %79 = arith.truncf %78 : vector<16x8xf32> to vector<16x8xbf16>
    %80 = vector.extract_strided_slice %51 {offsets = [0, 72], sizes = [16, 8], strides = [1, 1]} : vector<32x96xf32> to vector<16x8xf32>
    %81 = arith.truncf %80 : vector<16x8xf32> to vector<16x8xbf16>
    %cst_49 = arith.constant dense<0.000000e+00> : vector<16x16xf32>
    %82 = tpu.matmul %77, %79, %cst_49 {dimension_numbers = #tpu.dot_dimension_numbers<[1], [1], [0], [0], [0, 0, 1, 0], [], []>} : vector<16x8xbf16>, vector<16x8xbf16>, vector<16x16xf32> -> vector<16x16xf32>
    %cst_50 = arith.constant dense<0xFF800000> : vector<16xf32>
    %83 = vector.multi_reduction <maximumf>, %82, %cst_50 [1] : vector<16x16xf32> to vector<16xf32>
    %84 = vector.shape_cast %83 : vector<16xf32> to vector<16x1xf32>
    %85 = vector.broadcast %84 : vector<16x1xf32> to vector<16x16xf32>
    %86 = arith.subf %82, %85 : vector<16x16xf32>
    %87 = math.exp %86 : vector<16x16xf32>
    %cst_51 = arith.constant dense<0.000000e+00> : vector<16xf32>
    %88 = vector.multi_reduction <add>, %87, %cst_51 [1] : vector<16x16xf32> to vector<16xf32>
    %89 = vector.shape_cast %88 : vector<16xf32> to vector<16x1xf32>
    %90 = tpu.reciprocal %89 {approx = true} : vector<16x1xf32> -> vector<16x1xf32>
    %91 = vector.broadcast %90 : vector<16x1xf32> to vector<16x16xf32>
    %92 = arith.mulf %87, %91 : vector<16x16xf32>
    %93 = arith.truncf %92 : vector<16x16xf32> to vector<16x16xbf16>
    %cst_52 = arith.constant dense<0.000000e+00> : vector<16x8xf32>
    %94 = tpu.matmul %93, %81, %cst_52 {dimension_numbers = #tpu.dot_dimension_numbers<[1], [0], [0], [1], [0, 0, 1, 1], [], []>} : vector<16x16xbf16>, vector<16x8xbf16>, vector<16x8xf32> -> vector<16x8xf32>
    %95 = arith.truncf %94 : vector<16x8xf32> to vector<16x8xbf16>
    %96 = vector.extract_strided_slice %13 {offsets = [8, 0], sizes = [8, 32], strides = [1, 1]} : vector<32x32xbf16> to vector<8x32xbf16>
    %cst_53 = arith.constant dense<0.000000e+00> : vector<16x32xf32>
    %97 = tpu.matmul %95, %96, %cst_53 {dimension_numbers = #tpu.dot_dimension_numbers<[1], [0], [0], [1], [0, 0, 1, 1], [], []>} : vector<16x8xbf16>, vector<8x32xbf16>, vector<16x32xf32> -> vector<16x32xf32>
    %98 = arith.addf %75, %97 : vector<16x32xf32>
    %99 = vector.extract_strided_slice %51 {offsets = [0, 16], sizes = [16, 8], strides = [1, 1]} : vector<32x96xf32> to vector<16x8xf32>
    %100 = arith.truncf %99 : vector<16x8xf32> to vector<16x8xbf16>
    %101 = vector.extract_strided_slice %51 {offsets = [0, 48], sizes = [16, 8], strides = [1, 1]} : vector<32x96xf32> to vector<16x8xf32>
    %102 = arith.truncf %101 : vector<16x8xf32> to vector<16x8xbf16>
    %103 = vector.extract_strided_slice %51 {offsets = [0, 80], sizes = [16, 8], strides = [1, 1]} : vector<32x96xf32> to vector<16x8xf32>
    %104 = arith.truncf %103 : vector<16x8xf32> to vector<16x8xbf16>
    %cst_54 = arith.constant dense<0.000000e+00> : vector<16x16xf32>
    %105 = tpu.matmul %100, %102, %cst_54 {dimension_numbers = #tpu.dot_dimension_numbers<[1], [1], [0], [0], [0, 0, 1, 0], [], []>} : vector<16x8xbf16>, vector<16x8xbf16>, vector<16x16xf32> -> vector<16x16xf32>
    %cst_55 = arith.constant dense<0xFF800000> : vector<16xf32>
    %106 = vector.multi_reduction <maximumf>, %105, %cst_55 [1] : vector<16x16xf32> to vector<16xf32>
    %107 = vector.shape_cast %106 : vector<16xf32> to vector<16x1xf32>
    %108 = vector.broadcast %107 : vector<16x1xf32> to vector<16x16xf32>
    %109 = arith.subf %105, %108 : vector<16x16xf32>
    %110 = math.exp %109 : vector<16x16xf32>
    %cst_56 = arith.constant dense<0.000000e+00> : vector<16xf32>
    %111 = vector.multi_reduction <add>, %110, %cst_56 [1] : vector<16x16xf32> to vector<16xf32>
    %112 = vector.shape_cast %111 : vector<16xf32> to vector<16x1xf32>
    %113 = tpu.reciprocal %112 {approx = true} : vector<16x1xf32> -> vector<16x1xf32>
    %114 = vector.broadcast %113 : vector<16x1xf32> to vector<16x16xf32>
    %115 = arith.mulf %110, %114 : vector<16x16xf32>
    %116 = arith.truncf %115 : vector<16x16xf32> to vector<16x16xbf16>
    %cst_57 = arith.constant dense<0.000000e+00> : vector<16x8xf32>
    %117 = tpu.matmul %116, %104, %cst_57 {dimension_numbers = #tpu.dot_dimension_numbers<[1], [0], [0], [1], [0, 0, 1, 1], [], []>} : vector<16x16xbf16>, vector<16x8xbf16>, vector<16x8xf32> -> vector<16x8xf32>
    %118 = arith.truncf %117 : vector<16x8xf32> to vector<16x8xbf16>
    %119 = vector.extract_strided_slice %13 {offsets = [16, 0], sizes = [8, 32], strides = [1, 1]} : vector<32x32xbf16> to vector<8x32xbf16>
    %cst_58 = arith.constant dense<0.000000e+00> : vector<16x32xf32>
    %120 = tpu.matmul %118, %119, %cst_58 {dimension_numbers = #tpu.dot_dimension_numbers<[1], [0], [0], [1], [0, 0, 1, 1], [], []>} : vector<16x8xbf16>, vector<8x32xbf16>, vector<16x32xf32> -> vector<16x32xf32>
    %121 = arith.addf %98, %120 : vector<16x32xf32>
    %122 = vector.extract_strided_slice %51 {offsets = [0, 24], sizes = [16, 8], strides = [1, 1]} : vector<32x96xf32> to vector<16x8xf32>
    %123 = arith.truncf %122 : vector<16x8xf32> to vector<16x8xbf16>
    %124 = vector.extract_strided_slice %51 {offsets = [0, 56], sizes = [16, 8], strides = [1, 1]} : vector<32x96xf32> to vector<16x8xf32>
    %125 = arith.truncf %124 : vector<16x8xf32> to vector<16x8xbf16>
    %126 = vector.extract_strided_slice %51 {offsets = [0, 88], sizes = [16, 8], strides = [1, 1]} : vector<32x96xf32> to vector<16x8xf32>
    %127 = arith.truncf %126 : vector<16x8xf32> to vector<16x8xbf16>
    %cst_59 = arith.constant dense<0.000000e+00> : vector<16x16xf32>
    %128 = tpu.matmul %123, %125, %cst_59 {dimension_numbers = #tpu.dot_dimension_numbers<[1], [1], [0], [0], [0, 0, 1, 0], [], []>} : vector<16x8xbf16>, vector<16x8xbf16>, vector<16x16xf32> -> vector<16x16xf32>
    %cst_60 = arith.constant dense<0xFF800000> : vector<16xf32>
    %129 = vector.multi_reduction <maximumf>, %128, %cst_60 [1] : vector<16x16xf32> to vector<16xf32>
    %130 = vector.shape_cast %129 : vector<16xf32> to vector<16x1xf32>
    %131 = vector.broadcast %130 : vector<16x1xf32> to vector<16x16xf32>
    %132 = arith.subf %128, %131 : vector<16x16xf32>
    %133 = math.exp %132 : vector<16x16xf32>
    %cst_61 = arith.constant dense<0.000000e+00> : vector<16xf32>
    %134 = vector.multi_reduction <add>, %133, %cst_61 [1] : vector<16x16xf32> to vector<16xf32>
    %135 = vector.shape_cast %134 : vector<16xf32> to vector<16x1xf32>
    %136 = tpu.reciprocal %135 {approx = true} : vector<16x1xf32> -> vector<16x1xf32>
    %137 = vector.broadcast %136 : vector<16x1xf32> to vector<16x16xf32>
    %138 = arith.mulf %133, %137 : vector<16x16xf32>
    %139 = arith.truncf %138 : vector<16x16xf32> to vector<16x16xbf16>
    %cst_62 = arith.constant dense<0.000000e+00> : vector<16x8xf32>
    %140 = tpu.matmul %139, %127, %cst_62 {dimension_numbers = #tpu.dot_dimension_numbers<[1], [0], [0], [1], [0, 0, 1, 1], [], []>} : vector<16x16xbf16>, vector<16x8xbf16>, vector<16x8xf32> -> vector<16x8xf32>
    %141 = arith.truncf %140 : vector<16x8xf32> to vector<16x8xbf16>
    %142 = vector.extract_strided_slice %13 {offsets = [24, 0], sizes = [8, 32], strides = [1, 1]} : vector<32x32xbf16> to vector<8x32xbf16>
    %cst_63 = arith.constant dense<0.000000e+00> : vector<16x32xf32>
    %143 = tpu.matmul %141, %142, %cst_63 {dimension_numbers = #tpu.dot_dimension_numbers<[1], [0], [0], [1], [0, 0, 1, 1], [], []>} : vector<16x8xbf16>, vector<8x32xbf16>, vector<16x32xf32> -> vector<16x32xf32>
    %144 = arith.addf %121, %143 : vector<16x32xf32>
    %cst_64 = arith.constant 0.000000e+00 : f32
    %145 = vector.broadcast %cst_64 : f32 to vector<16x32xf32>
    %146 = vector.extract_strided_slice %51 {offsets = [16, 0], sizes = [16, 8], strides = [1, 1]} : vector<32x96xf32> to vector<16x8xf32>
    %147 = arith.truncf %146 : vector<16x8xf32> to vector<16x8xbf16>
    %148 = vector.extract_strided_slice %51 {offsets = [16, 32], sizes = [16, 8], strides = [1, 1]} : vector<32x96xf32> to vector<16x8xf32>
    %149 = arith.truncf %148 : vector<16x8xf32> to vector<16x8xbf16>
    %150 = vector.extract_strided_slice %51 {offsets = [16, 64], sizes = [16, 8], strides = [1, 1]} : vector<32x96xf32> to vector<16x8xf32>
    %151 = arith.truncf %150 : vector<16x8xf32> to vector<16x8xbf16>
    %cst_65 = arith.constant dense<0.000000e+00> : vector<16x16xf32>
    %152 = tpu.matmul %147, %149, %cst_65 {dimension_numbers = #tpu.dot_dimension_numbers<[1], [1], [0], [0], [0, 0, 1, 0], [], []>} : vector<16x8xbf16>, vector<16x8xbf16>, vector<16x16xf32> -> vector<16x16xf32>
    %cst_66 = arith.constant dense<0xFF800000> : vector<16xf32>
    %153 = vector.multi_reduction <maximumf>, %152, %cst_66 [1] : vector<16x16xf32> to vector<16xf32>
    %154 = vector.shape_cast %153 : vector<16xf32> to vector<16x1xf32>
    %155 = vector.broadcast %154 : vector<16x1xf32> to vector<16x16xf32>
    %156 = arith.subf %152, %155 : vector<16x16xf32>
    %157 = math.exp %156 : vector<16x16xf32>
    %cst_67 = arith.constant dense<0.000000e+00> : vector<16xf32>
    %158 = vector.multi_reduction <add>, %157, %cst_67 [1] : vector<16x16xf32> to vector<16xf32>
    %159 = vector.shape_cast %158 : vector<16xf32> to vector<16x1xf32>
    %160 = tpu.reciprocal %159 {approx = true} : vector<16x1xf32> -> vector<16x1xf32>
    %161 = vector.broadcast %160 : vector<16x1xf32> to vector<16x16xf32>
    %162 = arith.mulf %157, %161 : vector<16x16xf32>
    %163 = arith.truncf %162 : vector<16x16xf32> to vector<16x16xbf16>
    %cst_68 = arith.constant dense<0.000000e+00> : vector<16x8xf32>
    %164 = tpu.matmul %163, %151, %cst_68 {dimension_numbers = #tpu.dot_dimension_numbers<[1], [0], [0], [1], [0, 0, 1, 1], [], []>} : vector<16x16xbf16>, vector<16x8xbf16>, vector<16x8xf32> -> vector<16x8xf32>
    %165 = arith.truncf %164 : vector<16x8xf32> to vector<16x8xbf16>
    %166 = vector.extract_strided_slice %13 {offsets = [0, 0], sizes = [8, 32], strides = [1, 1]} : vector<32x32xbf16> to vector<8x32xbf16>
    %cst_69 = arith.constant dense<0.000000e+00> : vector<16x32xf32>
    %167 = tpu.matmul %165, %166, %cst_69 {dimension_numbers = #tpu.dot_dimension_numbers<[1], [0], [0], [1], [0, 0, 1, 1], [], []>} : vector<16x8xbf16>, vector<8x32xbf16>, vector<16x32xf32> -> vector<16x32xf32>
    %168 = arith.addf %145, %167 : vector<16x32xf32>
    %169 = vector.extract_strided_slice %51 {offsets = [16, 8], sizes = [16, 8], strides = [1, 1]} : vector<32x96xf32> to vector<16x8xf32>
    %170 = arith.truncf %169 : vector<16x8xf32> to vector<16x8xbf16>
    %171 = vector.extract_strided_slice %51 {offsets = [16, 40], sizes = [16, 8], strides = [1, 1]} : vector<32x96xf32> to vector<16x8xf32>
    %172 = arith.truncf %171 : vector<16x8xf32> to vector<16x8xbf16>
    %173 = vector.extract_strided_slice %51 {offsets = [16, 72], sizes = [16, 8], strides = [1, 1]} : vector<32x96xf32> to vector<16x8xf32>
    %174 = arith.truncf %173 : vector<16x8xf32> to vector<16x8xbf16>
    %cst_70 = arith.constant dense<0.000000e+00> : vector<16x16xf32>
    %175 = tpu.matmul %170, %172, %cst_70 {dimension_numbers = #tpu.dot_dimension_numbers<[1], [1], [0], [0], [0, 0, 1, 0], [], []>} : vector<16x8xbf16>, vector<16x8xbf16>, vector<16x16xf32> -> vector<16x16xf32>
    %cst_71 = arith.constant dense<0xFF800000> : vector<16xf32>
    %176 = vector.multi_reduction <maximumf>, %175, %cst_71 [1] : vector<16x16xf32> to vector<16xf32>
    %177 = vector.shape_cast %176 : vector<16xf32> to vector<16x1xf32>
    %178 = vector.broadcast %177 : vector<16x1xf32> to vector<16x16xf32>
    %179 = arith.subf %175, %178 : vector<16x16xf32>
    %180 = math.exp %179 : vector<16x16xf32>
    %cst_72 = arith.constant dense<0.000000e+00> : vector<16xf32>
    %181 = vector.multi_reduction <add>, %180, %cst_72 [1] : vector<16x16xf32> to vector<16xf32>
    %182 = vector.shape_cast %181 : vector<16xf32> to vector<16x1xf32>
    %183 = tpu.reciprocal %182 {approx = true} : vector<16x1xf32> -> vector<16x1xf32>
    %184 = vector.broadcast %183 : vector<16x1xf32> to vector<16x16xf32>
    %185 = arith.mulf %180, %184 : vector<16x16xf32>
    %186 = arith.truncf %185 : vector<16x16xf32> to vector<16x16xbf16>
    %cst_73 = arith.constant dense<0.000000e+00> : vector<16x8xf32>
    %187 = tpu.matmul %186, %174, %cst_73 {dimension_numbers = #tpu.dot_dimension_numbers<[1], [0], [0], [1], [0, 0, 1, 1], [], []>} : vector<16x16xbf16>, vector<16x8xbf16>, vector<16x8xf32> -> vector<16x8xf32>
    %188 = arith.truncf %187 : vector<16x8xf32> to vector<16x8xbf16>
    %189 = vector.extract_strided_slice %13 {offsets = [8, 0], sizes = [8, 32], strides = [1, 1]} : vector<32x32xbf16> to vector<8x32xbf16>
    %cst_74 = arith.constant dense<0.000000e+00> : vector<16x32xf32>
    %190 = tpu.matmul %188, %189, %cst_74 {dimension_numbers = #tpu.dot_dimension_numbers<[1], [0], [0], [1], [0, 0, 1, 1], [], []>} : vector<16x8xbf16>, vector<8x32xbf16>, vector<16x32xf32> -> vector<16x32xf32>
    %191 = arith.addf %168, %190 : vector<16x32xf32>
    %192 = vector.extract_strided_slice %51 {offsets = [16, 16], sizes = [16, 8], strides = [1, 1]} : vector<32x96xf32> to vector<16x8xf32>
    %193 = arith.truncf %192 : vector<16x8xf32> to vector<16x8xbf16>
    %194 = vector.extract_strided_slice %51 {offsets = [16, 48], sizes = [16, 8], strides = [1, 1]} : vector<32x96xf32> to vector<16x8xf32>
    %195 = arith.truncf %194 : vector<16x8xf32> to vector<16x8xbf16>
    %196 = vector.extract_strided_slice %51 {offsets = [16, 80], sizes = [16, 8], strides = [1, 1]} : vector<32x96xf32> to vector<16x8xf32>
    %197 = arith.truncf %196 : vector<16x8xf32> to vector<16x8xbf16>
    %cst_75 = arith.constant dense<0.000000e+00> : vector<16x16xf32>
    %198 = tpu.matmul %193, %195, %cst_75 {dimension_numbers = #tpu.dot_dimension_numbers<[1], [1], [0], [0], [0, 0, 1, 0], [], []>} : vector<16x8xbf16>, vector<16x8xbf16>, vector<16x16xf32> -> vector<16x16xf32>
    %cst_76 = arith.constant dense<0xFF800000> : vector<16xf32>
    %199 = vector.multi_reduction <maximumf>, %198, %cst_76 [1] : vector<16x16xf32> to vector<16xf32>
    %200 = vector.shape_cast %199 : vector<16xf32> to vector<16x1xf32>
    %201 = vector.broadcast %200 : vector<16x1xf32> to vector<16x16xf32>
    %202 = arith.subf %198, %201 : vector<16x16xf32>
    %203 = math.exp %202 : vector<16x16xf32>
    %cst_77 = arith.constant dense<0.000000e+00> : vector<16xf32>
    %204 = vector.multi_reduction <add>, %203, %cst_77 [1] : vector<16x16xf32> to vector<16xf32>
    %205 = vector.shape_cast %204 : vector<16xf32> to vector<16x1xf32>
    %206 = tpu.reciprocal %205 {approx = true} : vector<16x1xf32> -> vector<16x1xf32>
    %207 = vector.broadcast %206 : vector<16x1xf32> to vector<16x16xf32>
    %208 = arith.mulf %203, %207 : vector<16x16xf32>
    %209 = arith.truncf %208 : vector<16x16xf32> to vector<16x16xbf16>
    %cst_78 = arith.constant dense<0.000000e+00> : vector<16x8xf32>
    %210 = tpu.matmul %209, %197, %cst_78 {dimension_numbers = #tpu.dot_dimension_numbers<[1], [0], [0], [1], [0, 0, 1, 1], [], []>} : vector<16x16xbf16>, vector<16x8xbf16>, vector<16x8xf32> -> vector<16x8xf32>
    %211 = arith.truncf %210 : vector<16x8xf32> to vector<16x8xbf16>
    %212 = vector.extract_strided_slice %13 {offsets = [16, 0], sizes = [8, 32], strides = [1, 1]} : vector<32x32xbf16> to vector<8x32xbf16>
    %cst_79 = arith.constant dense<0.000000e+00> : vector<16x32xf32>
    %213 = tpu.matmul %211, %212, %cst_79 {dimension_numbers = #tpu.dot_dimension_numbers<[1], [0], [0], [1], [0, 0, 1, 1], [], []>} : vector<16x8xbf16>, vector<8x32xbf16>, vector<16x32xf32> -> vector<16x32xf32>
    %214 = arith.addf %191, %213 : vector<16x32xf32>
    %215 = vector.extract_strided_slice %51 {offsets = [16, 24], sizes = [16, 8], strides = [1, 1]} : vector<32x96xf32> to vector<16x8xf32>
    %216 = arith.truncf %215 : vector<16x8xf32> to vector<16x8xbf16>
    %217 = vector.extract_strided_slice %51 {offsets = [16, 56], sizes = [16, 8], strides = [1, 1]} : vector<32x96xf32> to vector<16x8xf32>
    %218 = arith.truncf %217 : vector<16x8xf32> to vector<16x8xbf16>
    %219 = vector.extract_strided_slice %51 {offsets = [16, 88], sizes = [16, 8], strides = [1, 1]} : vector<32x96xf32> to vector<16x8xf32>
    %220 = arith.truncf %219 : vector<16x8xf32> to vector<16x8xbf16>
    %cst_80 = arith.constant dense<0.000000e+00> : vector<16x16xf32>
    %221 = tpu.matmul %216, %218, %cst_80 {dimension_numbers = #tpu.dot_dimension_numbers<[1], [1], [0], [0], [0, 0, 1, 0], [], []>} : vector<16x8xbf16>, vector<16x8xbf16>, vector<16x16xf32> -> vector<16x16xf32>
    %cst_81 = arith.constant dense<0xFF800000> : vector<16xf32>
    %222 = vector.multi_reduction <maximumf>, %221, %cst_81 [1] : vector<16x16xf32> to vector<16xf32>
    %223 = vector.shape_cast %222 : vector<16xf32> to vector<16x1xf32>
    %224 = vector.broadcast %223 : vector<16x1xf32> to vector<16x16xf32>
    %225 = arith.subf %221, %224 : vector<16x16xf32>
    %226 = math.exp %225 : vector<16x16xf32>
    %cst_82 = arith.constant dense<0.000000e+00> : vector<16xf32>
    %227 = vector.multi_reduction <add>, %226, %cst_82 [1] : vector<16x16xf32> to vector<16xf32>
    %228 = vector.shape_cast %227 : vector<16xf32> to vector<16x1xf32>
    %229 = tpu.reciprocal %228 {approx = true} : vector<16x1xf32> -> vector<16x1xf32>
    %230 = vector.broadcast %229 : vector<16x1xf32> to vector<16x16xf32>
    %231 = arith.mulf %226, %230 : vector<16x16xf32>
    %232 = arith.truncf %231 : vector<16x16xf32> to vector<16x16xbf16>
    %cst_83 = arith.constant dense<0.000000e+00> : vector<16x8xf32>
    %233 = tpu.matmul %232, %220, %cst_83 {dimension_numbers = #tpu.dot_dimension_numbers<[1], [0], [0], [1], [0, 0, 1, 1], [], []>} : vector<16x16xbf16>, vector<16x8xbf16>, vector<16x8xf32> -> vector<16x8xf32>
    %234 = arith.truncf %233 : vector<16x8xf32> to vector<16x8xbf16>
    %235 = vector.extract_strided_slice %13 {offsets = [24, 0], sizes = [8, 32], strides = [1, 1]} : vector<32x32xbf16> to vector<8x32xbf16>
    %cst_84 = arith.constant dense<0.000000e+00> : vector<16x32xf32>
    %236 = tpu.matmul %234, %235, %cst_84 {dimension_numbers = #tpu.dot_dimension_numbers<[1], [0], [0], [1], [0, 0, 1, 1], [], []>} : vector<16x8xbf16>, vector<8x32xbf16>, vector<16x32xf32> -> vector<16x32xf32>
    %237 = arith.addf %214, %236 : vector<16x32xf32>
    %238 = tpu.concatenate %144, %237 in 0 : vector<16x32xf32>, vector<16x32xf32> -> vector<32x32xf32>
    %239 = arith.addf %3, %238 : vector<32x32xf32>
    %240 = vector.broadcast %15 : vector<1x32xf32> to vector<32x32xf32>
    %241 = arith.addf %239, %240 : vector<32x32xf32>
    %cst_85 = arith.constant dense<0.000000e+00> : vector<32xf32>
    %242 = vector.multi_reduction <add>, %241, %cst_85 [1] : vector<32x32xf32> to vector<32xf32>
    %243 = vector.shape_cast %242 : vector<32xf32> to vector<32x1xf32>
    %cst_86 = arith.constant 3.200000e+01 : f32
    %244 = vector.broadcast %cst_86 : f32 to vector<32x1xf32>
    %245 = arith.divf %243, %244 : vector<32x1xf32>
    %246 = vector.broadcast %245 : vector<32x1xf32> to vector<32x32xf32>
    %247 = arith.subf %241, %246 : vector<32x32xf32>
    %248 = arith.mulf %247, %247 : vector<32x32xf32>
    %cst_87 = arith.constant dense<0.000000e+00> : vector<32xf32>
    %249 = vector.multi_reduction <add>, %248, %cst_87 [1] : vector<32x32xf32> to vector<32xf32>
    %250 = vector.shape_cast %249 : vector<32xf32> to vector<32x1xf32>
    %cst_88 = arith.constant 3.200000e+01 : f32
    %251 = vector.broadcast %cst_88 : f32 to vector<32x1xf32>
    %252 = arith.divf %250, %251 : vector<32x1xf32>
    %cst_89 = arith.constant 9.99999997E-7 : f32
    %253 = vector.broadcast %cst_89 : f32 to vector<32x1xf32>
    %254 = arith.addf %252, %253 : vector<32x1xf32>
    %255 = math.rsqrt %254 : vector<32x1xf32>
    %256 = vector.broadcast %255 : vector<32x1xf32> to vector<32x32xf32>
    %257 = arith.mulf %247, %256 : vector<32x32xf32>
    %258 = vector.broadcast %17 : vector<1x32xf32> to vector<32x32xf32>
    %259 = arith.mulf %257, %258 : vector<32x32xf32>
    %260 = vector.broadcast %19 : vector<1x32xf32> to vector<32x32xf32>
    %261 = arith.addf %259, %260 : vector<32x32xf32>
    %262 = arith.truncf %261 : vector<32x32xf32> to vector<32x32xbf16>
    %cst_90 = arith.constant dense<0.000000e+00> : vector<32x64xf32>
    %263 = tpu.matmul %262, %21, %cst_90 {dimension_numbers = #tpu.dot_dimension_numbers<[1], [0], [0], [1], [0, 0, 1, 1], [], []>} : vector<32x32xbf16>, vector<32x64xbf16>, vector<32x64xf32> -> vector<32x64xf32>
    %264 = vector.broadcast %23 : vector<1x64xf32> to vector<32x64xf32>
    %265 = arith.addf %263, %264 : vector<32x64xf32>
    %266 = arith.mulf %265, %265 : vector<32x64xf32>
    %267 = arith.mulf %265, %266 : vector<32x64xf32>
    %cst_91 = arith.constant 4.471500e-02 : f32
    %268 = vector.broadcast %cst_91 : f32 to vector<32x64xf32>
    %269 = arith.mulf %268, %267 : vector<32x64xf32>
    %270 = arith.addf %265, %269 : vector<32x64xf32>
    %cst_92 = arith.constant 0.797884583 : f32
    %271 = vector.broadcast %cst_92 : f32 to vector<32x64xf32>
    %272 = arith.mulf %271, %270 : vector<32x64xf32>
    %273 = math.tanh %272 : vector<32x64xf32>
    %cst_93 = arith.constant 1.000000e+00 : f32
    %274 = vector.broadcast %cst_93 : f32 to vector<32x64xf32>
    %275 = arith.addf %274, %273 : vector<32x64xf32>
    %cst_94 = arith.constant 5.000000e-01 : f32
    %276 = vector.broadcast %cst_94 : f32 to vector<32x64xf32>
    %277 = arith.mulf %276, %275 : vector<32x64xf32>
    %278 = arith.mulf %265, %277 : vector<32x64xf32>
    %279 = arith.truncf %278 : vector<32x64xf32> to vector<32x64xbf16>
    %cst_95 = arith.constant dense<0.000000e+00> : vector<32x32xf32>
    %280 = tpu.matmul %279, %25, %cst_95 {dimension_numbers = #tpu.dot_dimension_numbers<[1], [0], [0], [1], [0, 0, 1, 1], [], []>} : vector<32x64xbf16>, vector<64x32xbf16>, vector<32x32xf32> -> vector<32x32xf32>
    %281 = vector.broadcast %27 : vector<1x32xf32> to vector<32x32xf32>
    %282 = arith.addf %280, %281 : vector<32x32xf32>
    %283 = arith.addf %241, %282 : vector<32x32xf32>
    %c0_96 = arith.constant 0 : index
    %c0_97 = arith.constant 0 : index
    %284 = vector.load %arg24[%c0_96, %c0_97] : memref<32x32xf32, #tpu.memory_space<vmem>>, vector<32x32xf32>
    tpu.vector_store %arg24[%c0_96, %c0_97], %283 {strides = array<i32>} : memref<32x32xf32, #tpu.memory_space<vmem>>, vector<32x32xf32>,
    %c1_i32 = arith.constant 1 : i32
    %285 = arith.cmpi eq, %arg0, %c1_i32 : i32
    %286 = arith.extui %285 : i1 to i32
    %c0_i32_98 = arith.constant 0 : i32
    %287 = arith.cmpi ne, %286, %c0_i32_98 : i32
    scf.if %287 {
      %c0_99 = arith.constant 0 : index
      %c0_100 = arith.constant 0 : index
      %288 = vector.load %arg17[%c0_99, %c0_100] : memref<1x32xf32, #tpu.memory_space<vmem>>, vector<1x32xf32>
      %c0_101 = arith.constant 0 : index
      %c0_102 = arith.constant 0 : index
      %289 = vector.load %arg18[%c0_101, %c0_102] : memref<1x32xf32, #tpu.memory_space<vmem>>, vector<1x32xf32>
      %cst_103 = arith.constant dense<0.000000e+00> : vector<32xf32>
      %290 = vector.multi_reduction <add>, %283, %cst_103 [1] : vector<32x32xf32> to vector<32xf32>
      %291 = vector.shape_cast %290 : vector<32xf32> to vector<32x1xf32>
      %cst_104 = arith.constant 3.200000e+01 : f32
      %292 = vector.broadcast %cst_104 : f32 to vector<32x1xf32>
      %293 = arith.divf %291, %292 : vector<32x1xf32>
      %294 = vector.broadcast %293 : vector<32x1xf32> to vector<32x32xf32>
      %295 = arith.subf %283, %294 : vector<32x32xf32>
      %296 = arith.mulf %295, %295 : vector<32x32xf32>
      %cst_105 = arith.constant dense<0.000000e+00> : vector<32xf32>
      %297 = vector.multi_reduction <add>, %296, %cst_105 [1] : vector<32x32xf32> to vector<32xf32>
      %298 = vector.shape_cast %297 : vector<32xf32> to vector<32x1xf32>
      %cst_106 = arith.constant 3.200000e+01 : f32
      %299 = vector.broadcast %cst_106 : f32 to vector<32x1xf32>
      %300 = arith.divf %298, %299 : vector<32x1xf32>
      %cst_107 = arith.constant 9.99999997E-7 : f32
      %301 = vector.broadcast %cst_107 : f32 to vector<32x1xf32>
      %302 = arith.addf %300, %301 : vector<32x1xf32>
      %303 = math.rsqrt %302 : vector<32x1xf32>
      %304 = vector.broadcast %303 : vector<32x1xf32> to vector<32x32xf32>
      %305 = arith.mulf %295, %304 : vector<32x32xf32>
      %306 = vector.broadcast %288 : vector<1x32xf32> to vector<32x32xf32>
      %307 = arith.mulf %305, %306 : vector<32x32xf32>
      %308 = vector.broadcast %289 : vector<1x32xf32> to vector<32x32xf32>
      %309 = arith.addf %307, %308 : vector<32x32xf32>
      %c0_108 = arith.constant 0 : index
      %c0_109 = arith.constant 0 : index
      %310 = vector.load %arg19[%c0_108, %c0_109] : memref<1x32xf32, #tpu.memory_space<vmem>>, vector<1x32xf32>
      %c0_110 = arith.constant 0 : index
      %c0_111 = arith.constant 0 : index
      %311 = vector.load %arg20[%c0_110, %c0_111] : memref<1x32xf32, #tpu.memory_space<vmem>>, vector<1x32xf32>
      %cst_112 = arith.constant dense<0.000000e+00> : vector<32xf32>
      %312 = vector.multi_reduction <add>, %309, %cst_112 [1] : vector<32x32xf32> to vector<32xf32>
      %313 = vector.shape_cast %312 : vector<32xf32> to vector<32x1xf32>
      %cst_113 = arith.constant 3.200000e+01 : f32
      %314 = vector.broadcast %cst_113 : f32 to vector<32x1xf32>
      %315 = arith.divf %313, %314 : vector<32x1xf32>
      %316 = vector.broadcast %315 : vector<32x1xf32> to vector<32x32xf32>
      %317 = arith.subf %309, %316 : vector<32x32xf32>
      %318 = arith.mulf %317, %317 : vector<32x32xf32>
      %cst_114 = arith.constant dense<0.000000e+00> : vector<32xf32>
      %319 = vector.multi_reduction <add>, %318, %cst_114 [1] : vector<32x32xf32> to vector<32xf32>
      %320 = vector.shape_cast %319 : vector<32xf32> to vector<32x1xf32>
      %cst_115 = arith.constant 3.200000e+01 : f32
      %321 = vector.broadcast %cst_115 : f32 to vector<32x1xf32>
      %322 = arith.divf %320, %321 : vector<32x1xf32>
      %cst_116 = arith.constant 9.99999974E-6 : f32
      %323 = vector.broadcast %cst_116 : f32 to vector<32x1xf32>
      %324 = arith.addf %322, %323 : vector<32x1xf32>
      %325 = math.rsqrt %324 : vector<32x1xf32>
      %326 = vector.broadcast %325 : vector<32x1xf32> to vector<32x32xf32>
      %327 = arith.mulf %317, %326 : vector<32x32xf32>
      %328 = vector.broadcast %310 : vector<1x32xf32> to vector<32x32xf32>
      %329 = arith.mulf %327, %328 : vector<32x32xf32>
      %330 = vector.broadcast %311 : vector<1x32xf32> to vector<32x32xf32>
      %331 = arith.addf %329, %330 : vector<32x32xf32>
      %332 = arith.truncf %331 : vector<32x32xf32> to vector<32x32xbf16>
      %c0_117 = arith.constant 0 : index
      %c0_118 = arith.constant 0 : index
      %333 = vector.load %arg21[%c0_117, %c0_118] : memref<32x48xbf16, #tpu.memory_space<vmem>>, vector<32x48xbf16>
      %cst_119 = arith.constant dense<0.000000e+00> : vector<32x48xf32>
      %334 = tpu.matmul %332, %333, %cst_119 {dimension_numbers = #tpu.dot_dimension_numbers<[1], [0], [0], [1], [0, 0, 1, 1], [], []>} : vector<32x32xbf16>, vector<32x48xbf16>, vector<32x48xf32> -> vector<32x48xf32>
      %c0_120 = arith.constant 0 : index
      %c0_121 = arith.constant 0 : index
      %335 = vector.load %arg22[%c0_120, %c0_121] : memref<1x48xf32, #tpu.memory_space<vmem>>, vector<1x48xf32>
      %336 = vector.broadcast %335 : vector<1x48xf32> to vector<32x48xf32>
      %337 = arith.addf %334, %336 : vector<32x48xf32>
      %c0_122 = arith.constant 0 : index
      %c0_123 = arith.constant 0 : index
      %338 = vector.load %arg23[%c0_122, %c0_123] : memref<32x48xf32, #tpu.memory_space<vmem>>, vector<32x48xf32>
      tpu.vector_store %arg23[%c0_122, %c0_123], %337 {strides = array<i32>} : memref<32x48xf32, #tpu.memory_space<vmem>>, vector<32x48xf32>,
    } else {
    }
    return
  }
  func.func @transform_0(%arg0: i32) -> (i32, i32) {
    %c0_i32 = arith.constant 0 : i32
    %c0_i32_0 = arith.constant 0 : i32
    %c0_i32_1 = arith.constant 0 : i32
    return %c0_i32, %c0_i32_0 : i32, i32
  }
  func.func @transform_1(%arg0: i32) -> (i32, i32) {
    %c0_i32 = arith.constant 0 : i32
    %c0_i32_0 = arith.constant 0 : i32
    %c0_i32_1 = arith.constant 0 : i32
    return %c0_i32, %c0_i32_0 : i32, i32
  }
  func.func @transform_2(%arg0: i32) -> (i32, i32) {
    %c0_i32 = arith.constant 0 : i32
    %c0_i32_0 = arith.constant 0 : i32
    %c0_i32_1 = arith.constant 0 : i32
    return %c0_i32, %c0_i32_0 : i32, i32
  }
  func.func @transform_3(%arg0: i32) -> (i32, i32) {
    %c0_i32 = arith.constant 0 : i32
    %c0_i32_0 = arith.constant 0 : i32
    %c0_i32_1 = arith.constant 0 : i32
    return %c0_i32, %c0_i32_0 : i32, i32
  }
  func.func @transform_4(%arg0: i32) -> (i32, i32, i32) {
    %c0_i32 = arith.constant 0 : i32
    %c0_i32_0 = arith.constant 0 : i32
    %c0_i32_1 = arith.constant 0 : i32
    return %arg0, %c0_i32, %c0_i32_0 : i32, i32, i32
  }
  func.func @transform_5(%arg0: i32) -> (i32, i32, i32) {
    %c0_i32 = arith.constant 0 : i32
    %c0_i32_0 = arith.constant 0 : i32
    %c0_i32_1 = arith.constant 0 : i32
    return %arg0, %c0_i32, %c0_i32_0 : i32, i32, i32
  }
  func.func @transform_6(%arg0: i32) -> (i32, i32, i32) {
    %c0_i32 = arith.constant 0 : i32
    %c0_i32_0 = arith.constant 0 : i32
    %c0_i32_1 = arith.constant 0 : i32
    return %arg0, %c0_i32, %c0_i32_0 : i32, i32, i32
  }
  func.func @transform_7(%arg0: i32) -> (i32, i32, i32) {
    %c0_i32 = arith.constant 0 : i32
    %c0_i32_0 = arith.constant 0 : i32
    %c0_i32_1 = arith.constant 0 : i32
    return %arg0, %c0_i32, %c0_i32_0 : i32, i32, i32
  }
  func.func @transform_8(%arg0: i32) -> (i32, i32, i32) {
    %c0_i32 = arith.constant 0 : i32
    %c0_i32_0 = arith.constant 0 : i32
    %c0_i32_1 = arith.constant 0 : i32
    return %arg0, %c0_i32, %c0_i32_0 : i32, i32, i32
  }
  func.func @transform_9(%arg0: i32) -> (i32, i32, i32) {
    %c0_i32 = arith.constant 0 : i32
    %c0_i32_0 = arith.constant 0 : i32
    %c0_i32_1 = arith.constant 0 : i32
    return %arg0, %c0_i32, %c0_i32_0 : i32, i32, i32
  }
  func.func @transform_10(%arg0: i32) -> (i32, i32, i32) {
    %c0_i32 = arith.constant 0 : i32
    %c0_i32_0 = arith.constant 0 : i32
    %c0_i32_1 = arith.constant 0 : i32
    return %arg0, %c0_i32, %c0_i32_0 : i32, i32, i32
  }
  func.func @transform_11(%arg0: i32) -> (i32, i32, i32) {
    %c0_i32 = arith.constant 0 : i32
    %c0_i32_0 = arith.constant 0 : i32
    %c0_i32_1 = arith.constant 0 : i32
    return %arg0, %c0_i32, %c0_i32_0 : i32, i32, i32
  }
  func.func @transform_12(%arg0: i32) -> (i32, i32, i32) {
    %c0_i32 = arith.constant 0 : i32
    %c0_i32_0 = arith.constant 0 : i32
    %c0_i32_1 = arith.constant 0 : i32
    return %arg0, %c0_i32, %c0_i32_0 : i32, i32, i32
  }
  func.func @transform_13(%arg0: i32) -> (i32, i32, i32) {
    %c0_i32 = arith.constant 0 : i32
    %c0_i32_0 = arith.constant 0 : i32
    %c0_i32_1 = arith.constant 0 : i32
    return %arg0, %c0_i32, %c0_i32_0 : i32, i32, i32
  }
  func.func @transform_14(%arg0: i32) -> (i32, i32, i32) {
    %c0_i32 = arith.constant 0 : i32
    %c0_i32_0 = arith.constant 0 : i32
    %c0_i32_1 = arith.constant 0 : i32
    return %arg0, %c0_i32, %c0_i32_0 : i32, i32, i32
  }
  func.func @transform_15(%arg0: i32) -> (i32, i32, i32) {
    %c0_i32 = arith.constant 0 : i32
    %c0_i32_0 = arith.constant 0 : i32
    %c0_i32_1 = arith.constant 0 : i32
    return %arg0, %c0_i32, %c0_i32_0 : i32, i32, i32
  }
  func.func @transform_16(%arg0: i32) -> (i32, i32) {
    %c0_i32 = arith.constant 0 : i32
    %c0_i32_0 = arith.constant 0 : i32
    %c0_i32_1 = arith.constant 0 : i32
    return %c0_i32, %c0_i32_0 : i32, i32
  }
  func.func @transform_17(%arg0: i32) -> (i32, i32) {
    %c0_i32 = arith.constant 0 : i32
    %c0_i32_0 = arith.constant 0 : i32
    %c0_i32_1 = arith.constant 0 : i32
    return %c0_i32, %c0_i32_0 : i32, i32
  }
  func.func @transform_18(%arg0: i32) -> (i32, i32) {
    %c0_i32 = arith.constant 0 : i32
    %c0_i32_0 = arith.constant 0 : i32
    %c0_i32_1 = arith.constant 0 : i32
    return %c0_i32, %c0_i32_0 : i32, i32
  }
  func.func @transform_19(%arg0: i32) -> (i32, i32) {
    %c0_i32 = arith.constant 0 : i32
    %c0_i32_0 = arith.constant 0 : i32
    %c0_i32_1 = arith.constant 0 : i32
    return %c0_i32, %c0_i32_0 : i32, i32
  }
  func.func @transform_20(%arg0: i32) -> (i32, i32) {
    %c0_i32 = arith.constant 0 : i32
    %c0_i32_0 = arith.constant 0 : i32
    %c0_i32_1 = arith.constant 0 : i32
    return %c0_i32, %c0_i32_0 : i32, i32
  }
  func.func @transform_21(%arg0: i32) -> (i32, i32) {
    %c0_i32 = arith.constant 0 : i32
    %c0_i32_0 = arith.constant 0 : i32
    %c0_i32_1 = arith.constant 0 : i32
    return %c0_i32, %c0_i32_0 : i32, i32
  }
  func.func @transform_22(%arg0: i32) -> (i32, i32) {
    %c0_i32 = arith.constant 0 : i32
    %c0_i32_0 = arith.constant 0 : i32
    %c0_i32_1 = arith.constant 0 : i32
    return %c0_i32, %c0_i32_0 : i32, i32
  }
}

</mosaic_0001>

<llo_original>
// kernel: _lambda_.3
$region0: #{_lambda_.3}
  #allocation0 [shape = 'u32[]', space=smem, size = 0x4, offset = 0x4, fixed_abs, tag = 'smem constant byte address 0x4 - core index']
  #allocation1 [shape = 'u32[72,128]{1,0:T(1,128)}', space=vmem, size = 0x9000, scoped, tag = 'internal scratch']
  %s0 = inlined_call_operand.vmem [shape: f32[32,48], index: 0, kind: input, shape index: {}]
  %s1 = inlined_call_operand.vmem [shape: bf16[48,32], index: 1, kind: input, shape index: {}]
  %s2 = inlined_call_operand.vmem [shape: f32[1,32], index: 2, kind: input, shape index: {}]
  %s3 = inlined_call_operand.vmem [shape: f32[32,32], index: 3, kind: output, shape index: {}]
  %s4 = sld [smem:[#allocation0]]
  $region22: #{_lambda_.3} parent=0
    _
  %s6 = ssub.s32 1, %s4
  %s7 = scalar_select 0, %s6, %s4
  // Predicated region
  $region2: #{_lambda_.3} parent=0 // pred_check
    _
  $region3: #{_lambda_.3} parent=0 // pred_check_branch
    %9 = sbr.rel (0) target = $region5
  $region4: #{_lambda_.3} parent=0 // pred_region
    _
  $region5: #{_lambda_.3} parent=0 // pred_fallthru
    _
  // Predicated region
  $region6: #{_lambda_.3} parent=0 // pred_check
    _
  $region7: #{_lambda_.3} parent=0 // pred_check_branch
    %11 = sbr.rel (0) target = $region9
  $region8: #{_lambda_.3} parent=0 // pred_region
    _
  $region9: #{_lambda_.3} parent=0 // pred_fallthru
    _
  // Predicated region
  $region10: #{_lambda_.3} parent=0 // pred_check
    _
  $region11: #{_lambda_.3} parent=0 // pred_check_branch
    %13 = sbr.rel (0) target = $region13
  $region12: #{_lambda_.3} parent=0 // pred_region
    _
  $region13: #{_lambda_.3} parent=0 // pred_fallthru
    _
  %v15 = vld [vmem:[%s0] sm:$0xff]
  %v16 = vld [vmem:[%s0 + $0x8] sm:$0xff]
  %v17 = vld [vmem:[%s0 + $0x10] sm:$0xff]
  %v18 = vld [vmem:[%s0 + $0x18] sm:$0xff]
  %v19 = vpack.c.bf16 %v16, %v15
  %v20 = vpack.c.bf16 %v18, %v17
  %v21 = vld [vmem:[%s1] sm:$0xf]
  %v22 = vld [vmem:[%s1 + $0x4] sm:$0xf]
  %v23 = vld [vmem:[%s1 + $0x8] sm:$0xf]
  %v24 = vld [vmem:[%s1 + $0xc] sm:$0xf]
  %v25 = vld [vmem:[%s1 + $0x10] sm:$0xf]
  %v26 = vld [vmem:[%s1 + $0x14] sm:$0xf]
  %v27 = vld [vmem:[%s2] sm:$0x1]
  %v29 = vperm.slane %v27, 0
  %v37 = vunpack.c.l.b16 %v21
  %v38 = vunpack.c.l.b16 %v22
  %v39 = vunpack.c.l.b16 %v23
  %v40 = vunpack.c.l.b16 %v24
  %v41 = vunpack.c.l.b16 %v25
  %v42 = vunpack.c.l.b16 %v26
  %v43 = vpack.c.b16 %v38, %v37
  %v44 = vpack.c.b16 %v40, %v39
  %v45 = vpack.c.b16 %v42, %v41
  %vm49 = vcmask 392192
  %v51 = vsel %vm49, %v19, 0
  %v54 = vsel %vm49, %v20, 0
  %56 = vmatpush.bf16.msra.mxu0 0
  %57 = vmatpush.bf16.msra.mxu0 0
  %58 = vmatpush.bf16.msra.mxu0 0
  %59 = vmatpush.bf16.msra.mxu0 0
  %60 = vmatpush.bf16.msra.mxu0 0
  %61 = vmatpush.bf16.msra.mxu0 %v45
  %62 = vmatpush.bf16.msra.mxu0 %v44
  %63 = vmatpush.bf16.msra.mxu0 %v43
  %64 = vmatmul.bf16.gmra.mxu0 %v51
  %v65 = vpop.f32.mrf.mxu0
  %v66 = vadd.f32 %v29, %v65
  %v67 = vpop.f32.mrf.mxu0
  %v68 = vadd.f32 %v29, %v67
  %69 = vmatmul.bf16.gmra.mxu0 %v54
  %v70 = vpop.f32.mrf.mxu0
  %v71 = vadd.f32 %v29, %v70
  %v72 = vpop.f32.mrf.mxu0
  %v73 = vadd.f32 %v29, %v72
  %74 = vdwg.mxu0
  %vm75 = vcmask 261120
  %76 = vst.msk [vmem:[%s3] sm:$0xff] %vm75, %v66
  %77 = vst.msk [vmem:[%s3 + $0x8] sm:$0xff] %vm75, %v68
  %78 = vst.msk [vmem:[%s3 + $0x10] sm:$0xff] %vm75, %v71
  %79 = vst.msk [vmem:[%s3 + $0x18] sm:$0xff] %vm75, %v73
  // Predicated region
  $region14: #{_lambda_.3} parent=0 // pred_check
    _
  $region15: #{_lambda_.3} parent=0 // pred_check_branch
    %81 = sbr.rel (0) target = $region17
  $region16: #{_lambda_.3} parent=0 // pred_region
    _
  $region17: #{_lambda_.3} parent=0 // pred_fallthru
    _
  // Predicated region
  $region18: #{_lambda_.3} parent=0 // pred_check
    _
  $region19: #{_lambda_.3} parent=0 // pred_check_branch
    %83 = sbr.rel (0) target = $region21
  $region20: #{_lambda_.3} parent=0 // pred_region
    _
  $region21: #{_lambda_.3} parent=0 // pred_fallthru
    _

// kernel: _lambda_.4
$region0: #{_lambda_.4}
  #allocation0 [shape = 'u32[]', space=smem, size = 0x4, offset = 0x4, fixed_abs, tag = 'smem constant byte address 0x4 - core index']
  #allocation1 [shape = 'u32[72,128]{1,0:T(1,128)}', space=vmem, size = 0x9000, scoped, tag = 'internal scratch']
  #allocation2 [shape = 'f32[10,32]{1,0:T(8,128)}', space=vmem, size = 0x2000, scoped, tag = 'scratch operand']
  %s0 = inlined_call_operand.vmem [shape: f32[10,32], index: 0, kind: input, shape index: {}]
  %s1 = inlined_call_operand.vmem [shape: f32[2,1,32], index: 1, kind: input, shape index: {}]
  %s2 = inlined_call_operand.vmem [shape: f32[2,1,32], index: 2, kind: input, shape index: {}]
  %s3 = inlined_call_operand.vmem [shape: bf16[2,32,96], index: 3, kind: input, shape index: {}]
  %s4 = inlined_call_operand.vmem [shape: f32[2,1,96], index: 4, kind: input, shape index: {}]
  %s5 = inlined_call_operand.vmem [shape: bf16[2,32,32], index: 5, kind: input, shape index: {}]
  %s6 = inlined_call_operand.vmem [shape: f32[2,1,32], index: 6, kind: input, shape index: {}]
  %s7 = inlined_call_operand.vmem [shape: f32[2,1,32], index: 7, kind: input, shape index: {}]
  %s8 = inlined_call_operand.vmem [shape: f32[2,1,32], index: 8, kind: input, shape index: {}]
  %s9 = inlined_call_operand.vmem [shape: bf16[2,32,64], index: 9, kind: input, shape index: {}]
  %s10 = inlined_call_operand.vmem [shape: f32[2,1,64], index: 10, kind: input, shape index: {}]
  %s11 = inlined_call_operand.vmem [shape: bf16[2,64,32], index: 11, kind: input, shape index: {}]
  %s12 = inlined_call_operand.vmem [shape: f32[2,1,32], index: 12, kind: input, shape index: {}]
  %s13 = inlined_call_operand.vmem [shape: f32[1,32], index: 13, kind: input, shape index: {}]
  %s14 = inlined_call_operand.vmem [shape: f32[1,32], index: 14, kind: input, shape index: {}]
  %s15 = inlined_call_operand.vmem [shape: f32[1,32], index: 15, kind: input, shape index: {}]
  %s16 = inlined_call_operand.vmem [shape: f32[1,32], index: 16, kind: input, shape index: {}]
  %s17 = inlined_call_operand.vmem [shape: f32[10,32], index: 17, kind: output, shape index: {}]
  %s18 = sld [smem:[#allocation0]]
  $region109: #{_lambda_.4} parent=0
    _
  %s20 = ssub.s32 1, %s18
  %s21 = scalar_select 0, %s20, %s18
  loop: start=0, step=1, limit=4
  $region2: #{_lambda_.4} parent=0 // loop_pre_header
    _
  $region3: #{_lambda_.4} parent=0 // loop_header
    %s23 = sphi 0, %s27
    %p24 = scmp.ge.s32.totalorder %s23, 4
    %s31 = sphi 0, %s31
    %s33 = sphi 0, %s31
    %s34 = sphi 0, %s33
    %s48 = sphi 0, %s34
    %s54 = sphi 0, %s56
    %s57 = sphi 0, %s54
    %s58 = sphi 0, %s57
    %s74 = sphi 0, %s58
    %s80 = sphi 0, %s82
    %s83 = sphi 0, %s80
    %s84 = sphi 0, %s83
    %s100 = sphi 0, %s84
    %s106 = sphi 0, %s108
    %s109 = sphi 0, %s106
    %s110 = sphi 0, %s109
    %s126 = sphi 0, %s110
    %s132 = sphi 0, %s134
    %s135 = sphi 0, %s132
    %s136 = sphi 0, %s135
    %s152 = sphi 0, %s136
    %s158 = sphi 0, %s160
    %s161 = sphi 0, %s158
    %s162 = sphi 0, %s161
    %s178 = sphi 0, %s162
    %s184 = sphi 0, %s186
    %s187 = sphi 0, %s184
    %s188 = sphi 0, %s187
    %s204 = sphi 0, %s188
    %s210 = sphi 0, %s212
    %s213 = sphi 0, %s210
    %s214 = sphi 0, %s213
    %s230 = sphi 0, %s214
    %s236 = sphi 0, %s238
    %s239 = sphi 0, %s236
    %s240 = sphi 0, %s239
    %s256 = sphi 0, %s240
    %s262 = sphi 0, %s264
    %s265 = sphi 0, %s262
    %s266 = sphi 0, %s265
    %s282 = sphi 0, %s266
    %s288 = sphi 0, %s290
    %s291 = sphi 0, %s288
    %s292 = sphi 0, %s291
    %s308 = sphi 0, %s292
    %s314 = sphi 0, %s316
    %s317 = sphi 0, %s314
    %s318 = sphi 0, %s317
    %s334 = sphi 0, %s318
    %s340 = sphi 0, %s342
    %s343 = sphi 0, %s340
    %s344 = sphi 0, %s343
    %s360 = sphi 0, %s344
    %s364 = sphi 0, %s364
    %s366 = sphi 0, %s364
    %s367 = sphi 0, %s366
    %s381 = sphi 0, %s367
    %s385 = sphi 0, %s385
    %s387 = sphi 0, %s385
    %s388 = sphi 0, %s387
    %s402 = sphi 0, %s388
    %s406 = sphi 0, %s406
    %s408 = sphi 0, %s406
    %s409 = sphi 0, %s408
    %s423 = sphi 0, %s409
    %s427 = sphi 0, %s427
    %s429 = sphi 0, %s427
    %s430 = sphi 0, %s429
    %s444 = sphi 0, %s430
    %s448 = sphi 0, %s448
    %s450 = sphi 0, %s448
    %s451 = sphi 0, %s450
    %s465 = sphi 0, %s451
  $region4: #{_lambda_.4} parent=0 // loop_header_branch
    %26 = sbr.rel (%p24) target = $region8
  $region5: #{_lambda_.4} parent=0 // loop_body
    %s28 = ssub.s32 %s23, 1
    %s29 = ssub.s32 %s23, 2
    %s30 = sadd.s32 %s23, 1
    %s32 = sadd.s32 %s31, 1
    %p35 = scmp.eq.s32.totalorder %s23, 1
    %p36 = scmp.ne.s32.totalorder %s31, %s33
    %p37 = scmp.eq.s32.totalorder %s23, 0
    %p38 = por %p36, %p37
    %p39 = scmp.ne.s32.totalorder %s31, %s33
    %p40 = scmp.eq.s32.totalorder %s28, 1
    %p41 = por %p39, %p40
    %p42 = scmp.ne.s32.totalorder %s33, %s34
    %p43 = scmp.eq.s32.totalorder %s28, 0
    %p44 = por %p42, %p43
    %p45 = scmp.ne.s32.totalorder %s33, %s34
    %p46 = scmp.eq.s32.totalorder %s29, 1
    %p47 = por %p45, %p46
    %p49 = scmp.ne.s32.totalorder %s34, %s48
    %p50 = scmp.eq.s32.totalorder %s29, 0
    %p51 = por %p49, %p50
    %s52 = ssub.s32 %s23, %s30
    %p53 = scmp.eq.s32.totalorder %s52, 0
    %s55 = sadd.s32 %s54, 1
    %s56 = scalar_select %p53, %s54, %s55
    %p59 = pneg %p53
    %p60 = scmp.eq.s32.totalorder %s23, 1
    %p61 = por %p59, %p60
    %p62 = scmp.ne.s32.totalorder %s54, %s57
    %p63 = scmp.eq.s32.totalorder %s23, 0
    %p64 = por %p62, %p63
    %p65 = scmp.ne.s32.totalorder %s54, %s57
    %p66 = scmp.eq.s32.totalorder %s28, 1
    %p67 = por %p65, %p66
    %p68 = scmp.ne.s32.totalorder %s57, %s58
    %p69 = scmp.eq.s32.totalorder %s28, 0
    %p70 = por %p68, %p69
    %p71 = scmp.ne.s32.totalorder %s57, %s58
    %p72 = scmp.eq.s32.totalorder %s29, 1
    %p73 = por %p71, %p72
    %p75 = scmp.ne.s32.totalorder %s58, %s74
    %p76 = scmp.eq.s32.totalorder %s29, 0
    %p77 = por %p75, %p76
    %s78 = ssub.s32 %s23, %s30
    %p79 = scmp.eq.s32.totalorder %s78, 0
    %s81 = sadd.s32 %s80, 1
    %s82 = scalar_select %p79, %s80, %s81
    %p85 = pneg %p79
    %p86 = scmp.eq.s32.totalorder %s23, 1
    %p87 = por %p85, %p86
    %p88 = scmp.ne.s32.totalorder %s80, %s83
    %p89 = scmp.eq.s32.totalorder %s23, 0
    %p90 = por %p88, %p89
    %p91 = scmp.ne.s32.totalorder %s80, %s83
    %p92 = scmp.eq.s32.totalorder %s28, 1
    %p93 = por %p91, %p92
    %p94 = scmp.ne.s32.totalorder %s83, %s84
    %p95 = scmp.eq.s32.totalorder %s28, 0
    %p96 = por %p94, %p95
    %p97 = scmp.ne.s32.totalorder %s83, %s84
    %p98 = scmp.eq.s32.totalorder %s29, 1
    %p99 = por %p97, %p98
    %p101 = scmp.ne.s32.totalorder %s84, %s100
    %p102 = scmp.eq.s32.totalorder %s29, 0
    %p103 = por %p101, %p102
    %s104 = ssub.s32 %s23, %s30
    %p105 = scmp.eq.s32.totalorder %s104, 0
    %s107 = sadd.s32 %s106, 1
    %s108 = scalar_select %p105, %s106, %s107
    %p111 = pneg %p105
    %p112 = scmp.eq.s32.totalorder %s23, 1
    %p113 = por %p111, %p112
    %p114 = scmp.ne.s32.totalorder %s106, %s109
    %p115 = scmp.eq.s32.totalorder %s23, 0
    %p116 = por %p114, %p115
    %p117 = scmp.ne.s32.totalorder %s106, %s109
    %p118 = scmp.eq.s32.totalorder %s28, 1
    %p119 = por %p117, %p118
    %p120 = scmp.ne.s32.totalorder %s109, %s110
    %p121 = scmp.eq.s32.totalorder %s28, 0
    %p122 = por %p120, %p121
    %p123 = scmp.ne.s32.totalorder %s109, %s110
    %p124 = scmp.eq.s32.totalorder %s29, 1
    %p125 = por %p123, %p124
    %p127 = scmp.ne.s32.totalorder %s110, %s126
    %p128 = scmp.eq.s32.totalorder %s29, 0
    %p129 = por %p127, %p128
    %s130 = ssub.s32 %s23, %s30
    %p131 = scmp.eq.s32.totalorder %s130, 0
    %s133 = sadd.s32 %s132, 1
    %s134 = scalar_select %p131, %s132, %s133
    %p137 = pneg %p131
    %p138 = scmp.eq.s32.totalorder %s23, 1
    %p139 = por %p137, %p138
    %p140 = scmp.ne.s32.totalorder %s132, %s135
    %p141 = scmp.eq.s32.totalorder %s23, 0
    %p142 = por %p140, %p141
    %p143 = scmp.ne.s32.totalorder %s132, %s135
    %p144 = scmp.eq.s32.totalorder %s28, 1
    %p145 = por %p143, %p144
    %p146 = scmp.ne.s32.totalorder %s135, %s136
    %p147 = scmp.eq.s32.totalorder %s28, 0
    %p148 = por %p146, %p147
    %p149 = scmp.ne.s32.totalorder %s135, %s136
    %p150 = scmp.eq.s32.totalorder %s29, 1
    %p151 = por %p149, %p150
    %p153 = scmp.ne.s32.totalorder %s136, %s152
    %p154 = scmp.eq.s32.totalorder %s29, 0
    %p155 = por %p153, %p154
    %s156 = ssub.s32 %s23, %s30
    %p157 = scmp.eq.s32.totalorder %s156, 0
    %s159 = sadd.s32 %s158, 1
    %s160 = scalar_select %p157, %s158, %s159
    %p163 = pneg %p157
    %p164 = scmp.eq.s32.totalorder %s23, 1
    %p165 = por %p163, %p164
    %p166 = scmp.ne.s32.totalorder %s158, %s161
    %p167 = scmp.eq.s32.totalorder %s23, 0
    %p168 = por %p166, %p167
    %p169 = scmp.ne.s32.totalorder %s158, %s161
    %p170 = scmp.eq.s32.totalorder %s28, 1
    %p171 = por %p169, %p170
    %p172 = scmp.ne.s32.totalorder %s161, %s162
    %p173 = scmp.eq.s32.totalorder %s28, 0
    %p174 = por %p172, %p173
    %p175 = scmp.ne.s32.totalorder %s161, %s162
    %p176 = scmp.eq.s32.totalorder %s29, 1
    %p177 = por %p175, %p176
    %p179 = scmp.ne.s32.totalorder %s162, %s178
    %p180 = scmp.eq.s32.totalorder %s29, 0
    %p181 = por %p179, %p180
    %s182 = ssub.s32 %s23, %s30
    %p183 = scmp.eq.s32.totalorder %s182, 0
    %s185 = sadd.s32 %s184, 1
    %s186 = scalar_select %p183, %s184, %s185
    %p189 = pneg %p183
    %p190 = scmp.eq.s32.totalorder %s23, 1
    %p191 = por %p189, %p190
    %p192 = scmp.ne.s32.totalorder %s184, %s187
    %p193 = scmp.eq.s32.totalorder %s23, 0
    %p194 = por %p192, %p193
    %p195 = scmp.ne.s32.totalorder %s184, %s187
    %p196 = scmp.eq.s32.totalorder %s28, 1
    %p197 = por %p195, %p196
    %p198 = scmp.ne.s32.totalorder %s187, %s188
    %p199 = scmp.eq.s32.totalorder %s28, 0
    %p200 = por %p198, %p199
    %p201 = scmp.ne.s32.totalorder %s187, %s188
    %p202 = scmp.eq.s32.totalorder %s29, 1
    %p203 = por %p201, %p202
    %p205 = scmp.ne.s32.totalorder %s188, %s204
    %p206 = scmp.eq.s32.totalorder %s29, 0
    %p207 = por %p205, %p206
    %s208 = ssub.s32 %s23, %s30
    %p209 = scmp.eq.s32.totalorder %s208, 0
    %s211 = sadd.s32 %s210, 1
    %s212 = scalar_select %p209, %s210, %s211
    %p215 = pneg %p209
    %p216 = scmp.eq.s32.totalorder %s23, 1
    %p217 = por %p215, %p216
    %p218 = scmp.ne.s32.totalorder %s210, %s213
    %p219 = scmp.eq.s32.totalorder %s23, 0
    %p220 = por %p218, %p219
    %p221 = scmp.ne.s32.totalorder %s210, %s213
    %p222 = scmp.eq.s32.totalorder %s28, 1
    %p223 = por %p221, %p222
    %p224 = scmp.ne.s32.totalorder %s213, %s214
    %p225 = scmp.eq.s32.totalorder %s28, 0
    %p226 = por %p224, %p225
    %p227 = scmp.ne.s32.totalorder %s213, %s214
    %p228 = scmp.eq.s32.totalorder %s29, 1
    %p229 = por %p227, %p228
    %p231 = scmp.ne.s32.totalorder %s214, %s230
    %p232 = scmp.eq.s32.totalorder %s29, 0
    %p233 = por %p231, %p232
    %s234 = ssub.s32 %s23, %s30
    %p235 = scmp.eq.s32.totalorder %s234, 0
    %s237 = sadd.s32 %s236, 1
    %s238 = scalar_select %p235, %s236, %s237
    %p241 = pneg %p235
    %p242 = scmp.eq.s32.totalorder %s23, 1
    %p243 = por %p241, %p242
    %p244 = scmp.ne.s32.totalorder %s236, %s239
    %p245 = scmp.eq.s32.totalorder %s23, 0
    %p246 = por %p244, %p245
    %p247 = scmp.ne.s32.totalorder %s236, %s239
    %p248 = scmp.eq.s32.totalorder %s28, 1
    %p249 = por %p247, %p248
    %p250 = scmp.ne.s32.totalorder %s239, %s240
    %p251 = scmp.eq.s32.totalorder %s28, 0
    %p252 = por %p250, %p251
    %p253 = scmp.ne.s32.totalorder %s239, %s240
    %p254 = scmp.eq.s32.totalorder %s29, 1
    %p255 = por %p253, %p254
    %p257 = scmp.ne.s32.totalorder %s240, %s256
    %p258 = scmp.eq.s32.totalorder %s29, 0
    %p259 = por %p257, %p258
    %s260 = ssub.s32 %s23, %s30
    %p261 = scmp.eq.s32.totalorder %s260, 0
    %s263 = sadd.s32 %s262, 1
    %s264 = scalar_select %p261, %s262, %s263
    %p267 = pneg %p261
    %p268 = scmp.eq.s32.totalorder %s23, 1
    %p269 = por %p267, %p268
    %p270 = scmp.ne.s32.totalorder %s262, %s265
    %p271 = scmp.eq.s32.totalorder %s23, 0
    %p272 = por %p270, %p271
    %p273 = scmp.ne.s32.totalorder %s262, %s265
    %p274 = scmp.eq.s32.totalorder %s28, 1
    %p275 = por %p273, %p274
    %p276 = scmp.ne.s32.totalorder %s265, %s266
    %p277 = scmp.eq.s32.totalorder %s28, 0
    %p278 = por %p276, %p277
    %p279 = scmp.ne.s32.totalorder %s265, %s266
    %p280 = scmp.eq.s32.totalorder %s29, 1
    %p281 = por %p279, %p280
    %p283 = scmp.ne.s32.totalorder %s266, %s282
    %p284 = scmp.eq.s32.totalorder %s29, 0
    %p285 = por %p283, %p284
    %s286 = ssub.s32 %s23, %s30
    %p287 = scmp.eq.s32.totalorder %s286, 0
    %s289 = sadd.s32 %s288, 1
    %s290 = scalar_select %p287, %s288, %s289
    %p293 = pneg %p287
    %p294 = scmp.eq.s32.totalorder %s23, 1
    %p295 = por %p293, %p294
    %p296 = scmp.ne.s32.totalorder %s288, %s291
    %p297 = scmp.eq.s32.totalorder %s23, 0
    %p298 = por %p296, %p297
    %p299 = scmp.ne.s32.totalorder %s288, %s291
    %p300 = scmp.eq.s32.totalorder %s28, 1
    %p301 = por %p299, %p300
    %p302 = scmp.ne.s32.totalorder %s291, %s292
    %p303 = scmp.eq.s32.totalorder %s28, 0
    %p304 = por %p302, %p303
    %p305 = scmp.ne.s32.totalorder %s291, %s292
    %p306 = scmp.eq.s32.totalorder %s29, 1
    %p307 = por %p305, %p306
    %p309 = scmp.ne.s32.totalorder %s292, %s308
    %p310 = scmp.eq.s32.totalorder %s29, 0
    %p311 = por %p309, %p310
    %s312 = ssub.s32 %s23, %s30
    %p313 = scmp.eq.s32.totalorder %s312, 0
    %s315 = sadd.s32 %s314, 1
    %s316 = scalar_select %p313, %s314, %s315
    %p319 = pneg %p313
    %p320 = scmp.eq.s32.totalorder %s23, 1
    %p321 = por %p319, %p320
    %p322 = scmp.ne.s32.totalorder %s314, %s317
    %p323 = scmp.eq.s32.totalorder %s23, 0
    %p324 = por %p322, %p323
    %p325 = scmp.ne.s32.totalorder %s314, %s317
    %p326 = scmp.eq.s32.totalorder %s28, 1
    %p327 = por %p325, %p326
    %p328 = scmp.ne.s32.totalorder %s317, %s318
    %p329 = scmp.eq.s32.totalorder %s28, 0
    %p330 = por %p328, %p329
    %p331 = scmp.ne.s32.totalorder %s317, %s318
    %p332 = scmp.eq.s32.totalorder %s29, 1
    %p333 = por %p331, %p332
    %p335 = scmp.ne.s32.totalorder %s318, %s334
    %p336 = scmp.eq.s32.totalorder %s29, 0
    %p337 = por %p335, %p336
    %s338 = ssub.s32 %s23, %s30
    %p339 = scmp.eq.s32.totalorder %s338, 0
    %s341 = sadd.s32 %s340, 1
    %s342 = scalar_select %p339, %s340, %s341
    %p345 = pneg %p339
    %p346 = scmp.eq.s32.totalorder %s23, 1
    %p347 = por %p345, %p346
    %p348 = scmp.ne.s32.totalorder %s340, %s343
    %p349 = scmp.eq.s32.totalorder %s23, 0
    %p350 = por %p348, %p349
    %p351 = scmp.ne.s32.totalorder %s340, %s343
    %p352 = scmp.eq.s32.totalorder %s28, 1
    %p353 = por %p351, %p352
    %p354 = scmp.ne.s32.totalorder %s343, %s344
    %p355 = scmp.eq.s32.totalorder %s28, 0
    %p356 = por %p354, %p355
    %p357 = scmp.ne.s32.totalorder %s343, %s344
    %p358 = scmp.eq.s32.totalorder %s29, 1
    %p359 = por %p357, %p358
    %p361 = scmp.ne.s32.totalorder %s344, %s360
    %p362 = scmp.eq.s32.totalorder %s29, 0
    %p363 = por %p361, %p362
    %s365 = sadd.s32 %s364, 1
    %p368 = scmp.eq.s32.totalorder %s23, 1
    %p369 = scmp.ne.s32.totalorder %s364, %s366
    %p370 = scmp.eq.s32.totalorder %s23, 0
    %p371 = por %p369, %p370
    %p372 = scmp.ne.s32.totalorder %s364, %s366
    %p373 = scmp.eq.s32.totalorder %s28, 1
    %p374 = por %p372, %p373
    %p375 = scmp.ne.s32.totalorder %s366, %s367
    %p376 = scmp.eq.s32.totalorder %s28, 0
    %p377 = por %p375, %p376
    %p378 = scmp.ne.s32.totalorder %s366, %s367
    %p379 = scmp.eq.s32.totalorder %s29, 1
    %p380 = por %p378, %p379
    %p382 = scmp.ne.s32.totalorder %s367, %s381
    %p383 = scmp.eq.s32.totalorder %s29, 0
    %p384 = por %p382, %p383
    %s386 = sadd.s32 %s385, 1
    %p389 = scmp.eq.s32.totalorder %s23, 1
    %p390 = scmp.ne.s32.totalorder %s385, %s387
    %p391 = scmp.eq.s32.totalorder %s23, 0
    %p392 = por %p390, %p391
    %p393 = scmp.ne.s32.totalorder %s385, %s387
    %p394 = scmp.eq.s32.totalorder %s28, 1
    %p395 = por %p393, %p394
    %p396 = scmp.ne.s32.totalorder %s387, %s388
    %p397 = scmp.eq.s32.totalorder %s28, 0
    %p398 = por %p396, %p397
    %p399 = scmp.ne.s32.totalorder %s387, %s388
    %p400 = scmp.eq.s32.totalorder %s29, 1
    %p401 = por %p399, %p400
    %p403 = scmp.ne.s32.totalorder %s388, %s402
    %p404 = scmp.eq.s32.totalorder %s29, 0
    %p405 = por %p403, %p404
    %s407 = sadd.s32 %s406, 1
    %p410 = scmp.eq.s32.totalorder %s23, 1
    %p411 = scmp.ne.s32.totalorder %s406, %s408
    %p412 = scmp.eq.s32.totalorder %s23, 0
    %p413 = por %p411, %p412
    %p414 = scmp.ne.s32.totalorder %s406, %s408
    %p415 = scmp.eq.s32.totalorder %s28, 1
    %p416 = por %p414, %p415
    %p417 = scmp.ne.s32.totalorder %s408, %s409
    %p418 = scmp.eq.s32.totalorder %s28, 0
    %p419 = por %p417, %p418
    %p420 = scmp.ne.s32.totalorder %s408, %s409
    %p421 = scmp.eq.s32.totalorder %s29, 1
    %p422 = por %p420, %p421
    %p424 = scmp.ne.s32.totalorder %s409, %s423
    %p425 = scmp.eq.s32.totalorder %s29, 0
    %p426 = por %p424, %p425
    %s428 = sadd.s32 %s427, 1
    %p431 = scmp.eq.s32.totalorder %s23, 1
    %p432 = scmp.ne.s32.totalorder %s427, %s429
    %p433 = scmp.eq.s32.totalorder %s23, 0
    %p434 = por %p432, %p433
    %p435 = scmp.ne.s32.totalorder %s427, %s429
    %p436 = scmp.eq.s32.totalorder %s28, 1
    %p437 = por %p435, %p436
    %p438 = scmp.ne.s32.totalorder %s429, %s430
    %p439 = scmp.eq.s32.totalorder %s28, 0
    %p440 = por %p438, %p439
    %p441 = scmp.ne.s32.totalorder %s429, %s430
    %p442 = scmp.eq.s32.totalorder %s29, 1
    %p443 = por %p441, %p442
    %p445 = scmp.ne.s32.totalorder %s430, %s444
    %p446 = scmp.eq.s32.totalorder %s29, 0
    %p447 = por %p445, %p446
    %s449 = sadd.s32 %s448, 1
    %p452 = scmp.eq.s32.totalorder %s23, 1
    %p453 = scmp.ne.s32.totalorder %s448, %s450
    %p454 = scmp.eq.s32.totalorder %s23, 0
    %p455 = por %p453, %p454
    %p456 = scmp.ne.s32.totalorder %s448, %s450
    %p457 = scmp.eq.s32.totalorder %s28, 1
    %p458 = por %p456, %p457
    %p459 = scmp.ne.s32.totalorder %s450, %s451
    %p460 = scmp.eq.s32.totalorder %s28, 0
    %p461 = por %p459, %p460
    %p462 = scmp.ne.s32.totalorder %s450, %s451
    %p463 = scmp.eq.s32.totalorder %s29, 1
    %p464 = por %p462, %p463
    %p466 = scmp.ne.s32.totalorder %s451, %s465
    %p467 = scmp.eq.s32.totalorder %s29, 0
    %p468 = por %p466, %p467
    %p469 = scmp.le.s32.totalorder 1, %s23
    %p470 = scmp.lt.s32.totalorder %s23, 3
    %p471 = pnand %p469, %p470
    %p472 = pneg %p471
    // Predicated region
    $region9: #{_lambda_.4} parent=5 // pred_check
      _
    $region10: #{_lambda_.4} parent=5 // pred_check_branch
      %474 = sbr.rel (%p471) target = $region12
    $region11: #{_lambda_.4} parent=5 // pred_region
      %s475 = ssub.s32 %s23, 1
      // Predicated region
      $region13: #{_lambda_.4} parent=11 // pred_check
        %p476 = pneg %p44
      $region14: #{_lambda_.4} parent=11 // pred_check_branch
        %478 = sbr.rel (%p476) target = $region16
      $region15: #{_lambda_.4} parent=11 // pred_region
        _
      $region16: #{_lambda_.4} parent=11 // pred_fallthru
        _
      // Predicated region
      $region17: #{_lambda_.4} parent=11 // pred_check
        %p479 = pneg %p377
      $region18: #{_lambda_.4} parent=11 // pred_check_branch
        %481 = sbr.rel (%p479) target = $region20
      $region19: #{_lambda_.4} parent=11 // pred_region
        _
      $region20: #{_lambda_.4} parent=11 // pred_fallthru
        _
      // Predicated region
      $region21: #{_lambda_.4} parent=11 // pred_check
        %p482 = pneg %p398
      $region22: #{_lambda_.4} parent=11 // pred_check_branch
        %484 = sbr.rel (%p482) target = $region24
      $region23: #{_lambda_.4} parent=11 // pred_region
        _
      $region24: #{_lambda_.4} parent=11 // pred_fallthru
        _
      // Predicated region
      $region25: #{_lambda_.4} parent=11 // pred_check
        %p485 = pneg %p419
      $region26: #{_lambda_.4} parent=11 // pred_check_branch
        %487 = sbr.rel (%p485) target = $region28
      $region27: #{_lambda_.4} parent=11 // pred_region
        _
      $region28: #{_lambda_.4} parent=11 // pred_fallthru
        _
      // Predicated region
      $region29: #{_lambda_.4} parent=11 // pred_check
        %p488 = pneg %p440
      $region30: #{_lambda_.4} parent=11 // pred_check_branch
        %490 = sbr.rel (%p488) target = $region32
      $region31: #{_lambda_.4} parent=11 // pred_region
        _
      $region32: #{_lambda_.4} parent=11 // pred_fallthru
        _
    $region12: #{_lambda_.4} parent=5 // pred_fallthru
      _
    %p491 = scmp.lt.s32.totalorder %s23, 2
    // Predicated region
    $region33: #{_lambda_.4} parent=5 // pred_check
      %p492 = pneg %p491
    $region34: #{_lambda_.4} parent=5 // pred_check_branch
      %494 = sbr.rel (%p492) target = $region36
    $region35: #{_lambda_.4} parent=5 // pred_region
      // Predicated region
      $region37: #{_lambda_.4} parent=35 // pred_check
        %p495 = pneg %p64
      $region38: #{_lambda_.4} parent=35 // pred_check_branch
        %497 = sbr.rel (%p495) target = $region40
      $region39: #{_lambda_.4} parent=35 // pred_region
        %p498 = scmp.lt.s32.totalorder %s23, 1
        %s499 = scalar_select %p498, %s23, 1
        %s500 = scalar_lea.vmem %s1, %s499
      $region40: #{_lambda_.4} parent=35 // pred_fallthru
        _
      // Predicated region
      $region41: #{_lambda_.4} parent=35 // pred_check
        %p501 = pneg %p90
      $region42: #{_lambda_.4} parent=35 // pred_check_branch
        %503 = sbr.rel (%p501) target = $region44
      $region43: #{_lambda_.4} parent=35 // pred_region
        %p504 = scmp.lt.s32.totalorder %s23, 1
        %s505 = scalar_select %p504, %s23, 1
        %s506 = scalar_lea.vmem %s2, %s505
      $region44: #{_lambda_.4} parent=35 // pred_fallthru
        _
      // Predicated region
      $region45: #{_lambda_.4} parent=35 // pred_check
        %p507 = pneg %p116
      $region46: #{_lambda_.4} parent=35 // pred_check_branch
        %509 = sbr.rel (%p507) target = $region48
      $region47: #{_lambda_.4} parent=35 // pred_region
        %p510 = scmp.lt.s32.totalorder %s23, 1
        %s511 = scalar_select %p510, %s23, 1
        %s512 = smul.addr %s511, 4
        %s513 = smul.addr %s512, 4
        %s514 = scalar_lea.vmem %s3, %s513
      $region48: #{_lambda_.4} parent=35 // pred_fallthru
        _
      // Predicated region
      $region49: #{_lambda_.4} parent=35 // pred_check
        %p515 = pneg %p142
      $region50: #{_lambda_.4} parent=35 // pred_check_branch
        %517 = sbr.rel (%p515) target = $region52
      $region51: #{_lambda_.4} parent=35 // pred_region
        %p518 = scmp.lt.s32.totalorder %s23, 1
        %s519 = scalar_select %p518, %s23, 1
        %s520 = scalar_lea.vmem %s4, %s519
      $region52: #{_lambda_.4} parent=35 // pred_fallthru
        _
      // Predicated region
      $region53: #{_lambda_.4} parent=35 // pred_check
        %p521 = pneg %p168
      $region54: #{_lambda_.4} parent=35 // pred_check_branch
        %523 = sbr.rel (%p521) target = $region56
      $region55: #{_lambda_.4} parent=35 // pred_region
        %p524 = scmp.lt.s32.totalorder %s23, 1
        %s525 = scalar_select %p524, %s23, 1
        %s526 = smul.addr %s525, 4
        %s527 = smul.addr %s526, 4
        %s528 = scalar_lea.vmem %s5, %s527
      $region56: #{_lambda_.4} parent=35 // pred_fallthru
        _
      // Predicated region
      $region57: #{_lambda_.4} parent=35 // pred_check
        %p529 = pneg %p194
      $region58: #{_lambda_.4} parent=35 // pred_check_branch
        %531 = sbr.rel (%p529) target = $region60
      $region59: #{_lambda_.4} parent=35 // pred_region
        %p532 = scmp.lt.s32.totalorder %s23, 1
        %s533 = scalar_select %p532, %s23, 1
        %s534 = scalar_lea.vmem %s6, %s533
      $region60: #{_lambda_.4} parent=35 // pred_fallthru
        _
      // Predicated region
      $region61: #{_lambda_.4} parent=35 // pred_check
        %p535 = pneg %p220
      $region62: #{_lambda_.4} parent=35 // pred_check_branch
        %537 = sbr.rel (%p535) target = $region64
      $region63: #{_lambda_.4} parent=35 // pred_region
        %p538 = scmp.lt.s32.totalorder %s23, 1
        %s539 = scalar_select %p538, %s23, 1
        %s540 = scalar_lea.vmem %s7, %s539
      $region64: #{_lambda_.4} parent=35 // pred_fallthru
        _
      // Predicated region
      $region65: #{_lambda_.4} parent=35 // pred_check
        %p541 = pneg %p246
      $region66: #{_lambda_.4} parent=35 // pred_check_branch
        %543 = sbr.rel (%p541) target = $region68
      $region67: #{_lambda_.4} parent=35 // pred_region
        %p544 = scmp.lt.s32.totalorder %s23, 1
        %s545 = scalar_select %p544, %s23, 1
        %s546 = scalar_lea.vmem %s8, %s545
      $region68: #{_lambda_.4} parent=35 // pred_fallthru
        _
      // Predicated region
      $region69: #{_lambda_.4} parent=35 // pred_check
        %p547 = pneg %p272
      $region70: #{_lambda_.4} parent=35 // pred_check_branch
        %549 = sbr.rel (%p547) target = $region72
      $region71: #{_lambda_.4} parent=35 // pred_region
        %p550 = scmp.lt.s32.totalorder %s23, 1
        %s551 = scalar_select %p550, %s23, 1
        %s552 = smul.addr %s551, 4
        %s553 = smul.addr %s552, 4
        %s554 = scalar_lea.vmem %s9, %s553
      $region72: #{_lambda_.4} parent=35 // pred_fallthru
        _
      // Predicated region
      $region73: #{_lambda_.4} parent=35 // pred_check
        %p555 = pneg %p298
      $region74: #{_lambda_.4} parent=35 // pred_check_branch
        %557 = sbr.rel (%p555) target = $region76
      $region75: #{_lambda_.4} parent=35 // pred_region
        %p558 = scmp.lt.s32.totalorder %s23, 1
        %s559 = scalar_select %p558, %s23, 1
        %s560 = scalar_lea.vmem %s10, %s559
      $region76: #{_lambda_.4} parent=35 // pred_fallthru
        _
      // Predicated region
      $region77: #{_lambda_.4} parent=35 // pred_check
        %p561 = pneg %p324
      $region78: #{_lambda_.4} parent=35 // pred_check_branch
        %563 = sbr.rel (%p561) target = $region80
      $region79: #{_lambda_.4} parent=35 // pred_region
        %p564 = scmp.lt.s32.totalorder %s23, 1
        %s565 = scalar_select %p564, %s23, 1
        %s566 = smul.addr %s565, 8
        %s567 = smul.addr %s566, 4
        %s568 = scalar_lea.vmem %s11, %s567
      $region80: #{_lambda_.4} parent=35 // pred_fallthru
        _
      // Predicated region
      $region81: #{_lambda_.4} parent=35 // pred_check
        %p569 = pneg %p350
      $region82: #{_lambda_.4} parent=35 // pred_check_branch
        %571 = sbr.rel (%p569) target = $region84
      $region83: #{_lambda_.4} parent=35 // pred_region
        %p572 = scmp.lt.s32.totalorder %s23, 1
        %s573 = scalar_select %p572, %s23, 1
        %s574 = scalar_lea.vmem %s12, %s573
      $region84: #{_lambda_.4} parent=35 // pred_fallthru
        _
    $region36: #{_lambda_.4} parent=5 // pred_fallthru
      _
    %p575 = scmp.le.s32.totalorder 1, %s23
    %p576 = scmp.lt.s32.totalorder %s23, 3
    %p577 = pnand %p575, %p576
    %p578 = pneg %p577
    // Predicated region
    $region85: #{_lambda_.4} parent=5 // pred_check
      _
    $region86: #{_lambda_.4} parent=5 // pred_check_branch
      %580 = sbr.rel (%p577) target = $region88
    $region87: #{_lambda_.4} parent=5 // pred_region
      %s581 = ssub.s32 %s23, 1
      %p582 = pneg %p44
      %p583 = pneg %p41
      %p584 = scmp.lt.s32.totalorder %s28, 1
      %s585 = scalar_select %p584, %s28, 1
      %s586 = scalar_lea.vmem %s1, %s585
      %p587 = pneg %p70
      %p588 = pneg %p67
      %p589 = scmp.lt.s32.totalorder %s28, 1
      %s590 = scalar_select %p589, %s28, 1
      %s591 = scalar_lea.vmem %s2, %s590
      %p592 = pneg %p96
      %p593 = pneg %p93
      %p594 = scmp.lt.s32.totalorder %s28, 1
      %s595 = scalar_select %p594, %s28, 1
      %s596 = smul.addr %s595, 4
      %s597 = smul.addr %s596, 4
      %s598 = scalar_lea.vmem %s3, %s597
      %p599 = pneg %p122
      %p600 = pneg %p119
      %p601 = scmp.lt.s32.totalorder %s28, 1
      %s602 = scalar_select %p601, %s28, 1
      %s603 = scalar_lea.vmem %s4, %s602
      %p604 = pneg %p148
      %p605 = pneg %p145
      %p606 = scmp.lt.s32.totalorder %s28, 1
      %s607 = scalar_select %p606, %s28, 1
      %s608 = smul.addr %s607, 4
      %s609 = smul.addr %s608, 4
      %s610 = scalar_lea.vmem %s5, %s609
      %p611 = pneg %p174
      %p612 = pneg %p171
      %p613 = scmp.lt.s32.totalorder %s28, 1
      %s614 = scalar_select %p613, %s28, 1
      %s615 = scalar_lea.vmem %s6, %s614
      %p616 = pneg %p200
      %p617 = pneg %p197
      %p618 = scmp.lt.s32.totalorder %s28, 1
      %s619 = scalar_select %p618, %s28, 1
      %s620 = scalar_lea.vmem %s7, %s619
      %p621 = pneg %p226
      %p622 = pneg %p223
      %p623 = scmp.lt.s32.totalorder %s28, 1
      %s624 = scalar_select %p623, %s28, 1
      %s625 = scalar_lea.vmem %s8, %s624
      %p626 = pneg %p252
      %p627 = pneg %p249
      %p628 = scmp.lt.s32.totalorder %s28, 1
      %s629 = scalar_select %p628, %s28, 1
      %s630 = smul.addr %s629, 4
      %s631 = smul.addr %s630, 4
      %s632 = scalar_lea.vmem %s9, %s631
      %p633 = pneg %p278
      %p634 = pneg %p275
      %p635 = scmp.lt.s32.totalorder %s28, 1
      %s636 = scalar_select %p635, %s28, 1
      %s637 = scalar_lea.vmem %s10, %s636
      %p638 = pneg %p304
      %p639 = pneg %p301
      %p640 = scmp.lt.s32.totalorder %s28, 1
      %s641 = scalar_select %p640, %s28, 1
      %s642 = smul.addr %s641, 8
      %s643 = smul.addr %s642, 4
      %s644 = scalar_lea.vmem %s11, %s643
      %p645 = pneg %p330
      %p646 = pneg %p327
      %p647 = scmp.lt.s32.totalorder %s28, 1
      %s648 = scalar_select %p647, %s28, 1
      %s649 = scalar_lea.vmem %s12, %s648
      %p650 = pneg %p356
      %p651 = pneg %p353
      %p652 = pneg %p377
      %p653 = pneg %p374
      %p654 = pneg %p398
      %p655 = pneg %p395
      %p656 = pneg %p419
      %p657 = pneg %p416
      %p658 = pneg %p440
      %p659 = pneg %p437
      %p660 = pneg %p461
      %p661 = pneg %p458
      %p662 = scmp.lt.s32.totalorder %s28, 1
      %s663 = scalar_select %p662, %s28, 1
      %s664 = scalar_lea.vmem %s1, %s663
      %p665 = scmp.lt.s32.totalorder %s28, 1
      %s666 = scalar_select %p665, %s28, 1
      %s667 = scalar_lea.vmem %s2, %s666
      %p668 = scmp.lt.s32.totalorder %s28, 1
      %s669 = scalar_select %p668, %s28, 1
      %s670 = smul.addr %s669, 4
      %s671 = smul.addr %s670, 4
      %s672 = scalar_lea.vmem %s3, %s671
      %p673 = scmp.lt.s32.totalorder %s28, 1
      %s674 = scalar_select %p673, %s28, 1
      %s675 = scalar_lea.vmem %s4, %s674
      %p676 = scmp.lt.s32.totalorder %s28, 1
      %s677 = scalar_select %p676, %s28, 1
      %s678 = smul.addr %s677, 4
      %s679 = smul.addr %s678, 4
      %s680 = scalar_lea.vmem %s5, %s679
      %p681 = scmp.lt.s32.totalorder %s28, 1
      %s682 = scalar_select %p681, %s28, 1
      %s683 = scalar_lea.vmem %s6, %s682
      %p684 = scmp.lt.s32.totalorder %s28, 1
      %s685 = scalar_select %p684, %s28, 1
      %s686 = scalar_lea.vmem %s7, %s685
      %p687 = scmp.lt.s32.totalorder %s28, 1
      %s688 = scalar_select %p687, %s28, 1
      %s689 = scalar_lea.vmem %s8, %s688
      %p690 = scmp.lt.s32.totalorder %s28, 1
      %s691 = scalar_select %p690, %s28, 1
      %s692 = smul.addr %s691, 4
      %s693 = smul.addr %s692, 4
      %s694 = scalar_lea.vmem %s9, %s693
      %p695 = scmp.lt.s32.totalorder %s28, 1
      %s696 = scalar_select %p695, %s28, 1
      %s697 = scalar_lea.vmem %s10, %s696
      %p698 = scmp.lt.s32.totalorder %s28, 1
      %s699 = scalar_select %p698, %s28, 1
      %s700 = smul.addr %s699, 8
      %s701 = smul.addr %s700, 4
      %s702 = scalar_lea.vmem %s11, %s701
      %p703 = scmp.lt.s32.totalorder %s28, 1
      %s704 = scalar_select %p703, %s28, 1
      %s705 = scalar_lea.vmem %s12, %s704
      %p707 = scmp.eq.s32.totalorder %s28, 0
      // Predicated region
      $region89: #{_lambda_.4} parent=87 // pred_check
        %p708 = pneg %p707
      $region90: #{_lambda_.4} parent=87 // pred_check_branch
        %710 = sbr.rel (%p708) target = $region92
      $region91: #{_lambda_.4} parent=87 // pred_region
        %v711 = vld [vmem:[%s0] sm:$0xff]
        %v712 = vld [vmem:[%s0 + $0x8] sm:$0x3]
        %vm713 = vcmask 261120
        %714 = vst.msk [vmem:[#allocation2] sm:$0xff] %vm713, %v711
        %vm715 = vcmask 254976
        %716 = vst.msk [vmem:[#allocation2 + $0x8] sm:$0x3] %vm715, %v712
      $region92: #{_lambda_.4} parent=87 // pred_fallthru
        _
      %v717 = vld [vmem:[#allocation2] sm:$0xff]
      %v718 = vld [vmem:[#allocation2 + $0x8] sm:$0x3]
      %v719 = vld [vmem:[%s664] sm:$0x1]
      %v720 = vld [vmem:[%s667] sm:$0x1]
      %v721 = vld [vmem:[%s672] sm:$0xf]
      %v722 = vld [vmem:[%s672 + $0x4] sm:$0xf]
      %v723 = vld [vmem:[%s672 + $0x8] sm:$0xf]
      %v724 = vld [vmem:[%s672 + $0xc] sm:$0xf]
      %v725 = vld [vmem:[%s675] sm:$0x1]
      %v726 = vld [vmem:[%s680] sm:$0xf]
      %v727 = vld [vmem:[%s680 + $0x4] sm:$0xf]
      %v728 = vld [vmem:[%s680 + $0x8] sm:$0xf]
      %v729 = vld [vmem:[%s680 + $0xc] sm:$0xf]
      %v730 = vld [vmem:[%s683] sm:$0x1]
      %v731 = vld [vmem:[%s686] sm:$0x1]
      %v732 = vld [vmem:[%s689] sm:$0x1]
      %v733 = vld [vmem:[%s694] sm:$0xf]
      %v734 = vld [vmem:[%s694 + $0x4] sm:$0xf]
      %v735 = vld [vmem:[%s694 + $0x8] sm:$0xf]
      %v736 = vld [vmem:[%s694 + $0xc] sm:$0xf]
      %v737 = vld [vmem:[%s697] sm:$0x1]
      %v738 = vld [vmem:[%s702] sm:$0xf]
      %v739 = vld [vmem:[%s702 + $0x4] sm:$0xf]
      %v740 = vld [vmem:[%s702 + $0x8] sm:$0xf]
      %v741 = vld [vmem:[%s702 + $0xc] sm:$0xf]
      %v742 = vld [vmem:[%s702 + $0x10] sm:$0xf]
      %v743 = vld [vmem:[%s702 + $0x14] sm:$0xf]
      %v744 = vld [vmem:[%s702 + $0x18] sm:$0xf]
      %v745 = vld [vmem:[%s702 + $0x1c] sm:$0xf]
      %v746 = vld [vmem:[%s705] sm:$0x1]
      %vm747 = vcmask 261120
      %v748 = vsel %vm747, %v717, 0.0
      %749 = vadd.xlane.f32.xlu0 %v748
      %v750 = vpop.xlane.xlu0 %749
      %vm751 = vcmask 254976
      %v752 = vsel %vm751, %v718, 0.0
      %753 = vadd.xlane.f32.xlu0 %v752
      %v754 = vpop.xlane.xlu0 %753
      %v755 = vrcp.pop 32.0
      %v756 = vmul.f32 32.0, %v755
      %v757 = vsub.f32 1.0, %v756
      %v758 = vmul.f32 %v755, %v757
      %v759 = vadd.f32 %v755, %v758
      %vm760 = vweird.f32 %v755
      %v761 = vsel %vm760, %v755, %v759
      %v762 = vmul.f32 %v750, %v761
      %v763 = vmul.f32 %v754, %v761
      %v764 = vsub.f32 %v717, %v762
      %v765 = vsub.f32 %v718, %v763
      %v766 = vmul.f32 %v764, %v764
      %v767 = vmul.f32 %v765, %v765
      %v768 = vsel %vm747, %v766, 0.0
      %769 = vadd.xlane.f32.xlu0 %v768
      %v770 = vpop.xlane.xlu0 %769
      %v771 = vsel %vm751, %v767, 0.0
      %772 = vadd.xlane.f32.xlu0 %v771
      %v773 = vpop.xlane.xlu0 %772
      %v774 = vmul.f32 %v770, %v761
      %v775 = vmul.f32 %v773, %v761
      %v776 = vadd.f32 %v774, 1e-06
      %v777 = vadd.f32 %v775, 1e-06
      %v778 = vrsqrt.pop %v776
      %v779 = vmul.f32 %v778, %v776
      %v780 = vmul.f32 %v779, %v778
      %v781 = vmul.f32 0.5, %v780
      %v782 = vsub.f32 1.5, %v781
      %v783 = vmul.f32 %v778, %v782
      %vm784 = vweird.f32 %v776
      %vm785 = vweird.f32 %v778
      %vm786 = vmor %vm784, %vm785
      %v787 = vsel %vm786, %v778, %v783
      %v788 = vrsqrt.pop %v777
      %v789 = vmul.f32 %v788, %v777
      %v790 = vmul.f32 %v789, %v788
      %v791 = vmul.f32 0.5, %v790
      %v792 = vsub.f32 1.5, %v791
      %v793 = vmul.f32 %v788, %v792
      %vm794 = vweird.f32 %v777
      %vm795 = vweird.f32 %v788
      %vm796 = vmor %vm794, %vm795
      %v797 = vsel %vm796, %v788, %v793
      %v798 = vmul.f32 %v764, %v787
      %v799 = vmul.f32 %v765, %v797
      %v801 = vperm.slane %v719, 0
      %v803 = vmul.f32 %v798, %v801
      %v804 = vmul.f32 %v799, %v801
      %v806 = vperm.slane %v720, 0
      %v808 = vadd.f32 %v803, %v806
      %v809 = vadd.f32 %v804, %v806
      %v810 = vpack.c.bf16 %v809, %v808
      %v812 = vperm.slane %v725, 0
      %v818 = vunpack.c.l.b16 %v721
      %v819 = vunpack.c.l.b16 %v722
      %v820 = vunpack.c.l.b16 %v723
      %v821 = vunpack.c.l.b16 %v724
      %v822 = vpack.c.b16 %v819, %v818
      %v823 = vpack.c.b16 %v821, %v820
      %v827 = vsel %vm747, %v810, 0
      %829 = vmatpush.bf16.msra.mxu0 0
      %830 = vmatpush.bf16.msra.mxu0 0
      %831 = vmatpush.bf16.msra.mxu0 0
      %832 = vmatpush.bf16.msra.mxu0 0
      %833 = vmatpush.bf16.msra.mxu0 0
      %834 = vmatpush.bf16.msra.mxu0 0
      %835 = vmatpush.bf16.msra.mxu0 %v823
      %836 = vmatpush.bf16.msra.mxu0 %v822
      %837 = vmatmul.bf16.gmra.mxu0 %v827
      %v838 = vpop.f32.mrf.mxu0
      %v839 = vadd.f32 %v812, %v838
      %v840 = vpop.f32.mrf.mxu0
      %v841 = vadd.f32 %v812, %v840
      %842 = vdwg.mxu0
      %v843 = vpack.c.bf16 %v839, %v839
      %845 = vrot.lane.b32.xlu0 %v843, 96
      %v846 = vpop.permute.xlu0 %845
      %vm847 = vcmask 64512
      %v849 = vsel %vm847, %v843, 0
      %v852 = vsel %vm847, %v846, 0
      %854 = vmatpush.bf16.xpose.msra.mxu0 0
      %855 = vmatpush.bf16.xpose.msra.mxu0 0
      %856 = vmatpush.bf16.xpose.msra.mxu0 0
      %857 = vmatpush.bf16.xpose.msra.mxu0 0
      %858 = vmatpush.bf16.xpose.msra.mxu0 0
      %859 = vmatpush.bf16.xpose.msra.mxu0 0
      %860 = vmatpush.bf16.xpose.msra.mxu0 0
      %861 = vmatpush.bf16.xpose.msra.mxu0 %v852
      %862 = vmatmul.bf16.gmra.mxu0 %v849
      %v863 = vpop.f32.mrf.mxu0
      %v864 = vadd.f32 0.0, %v863
      %v865 = vpop.f32.mrf.mxu0
      %866 = vdwg.mxu0
      %vm867 = vcmask 36864
      %v868 = vsel %vm867, %v864, -inf
      %869 = vmax.xlane.f32.xlu0 %v868
      %v870 = vpop.xlane.xlu0 %869
      %v871 = vsub.f32 %v864, %v870
      %v872 = vmul.f32 %v871, 1.442695
      %v873 = vpow.pop %v872
      %v874 = vsel %vm867, %v873, 0.0
      %875 = vadd.xlane.f32.xlu0 %v874
      %v876 = vpop.xlane.xlu0 %875
      %v877 = vrcp.pop %v876
      %v878 = vmul.f32 %v873, %v877
      %v879 = vpack.c.bf16 %v878, %v878
      %880 = vrot.lane.b32.xlu0 %v843, 64
      %v881 = vpop.permute.xlu0 %880
      %vm882 = vcmask 39936
      %v884 = vsel %vm882, %v879, 0
      %vm886 = vcmask 1041408
      %vm887 = vcmask 1042432
      %v888 = vsel %vm886, 4294967295, 65535
      %v889 = vsel %vm887, %v888, 0
      %v891 = vand.u32 %v881, %v889
      %893 = vmatpush.bf16.msra.mxu0 0
      %894 = vmatpush.bf16.msra.mxu0 0
      %895 = vmatpush.bf16.msra.mxu0 0
      %896 = vmatpush.bf16.msra.mxu0 0
      %897 = vmatpush.bf16.msra.mxu0 0
      %898 = vmatpush.bf16.msra.mxu0 0
      %899 = vmatpush.bf16.msra.mxu0 0
      %900 = vmatpush.bf16.msra.mxu0 %v891
      %901 = vmatmul.bf16.gmra.mxu0 %v884
      %v902 = vpop.f32.mrf.mxu0
      %v903 = vadd.f32 0.0, %v902
      %v904 = vpop.f32.mrf.mxu0
      %905 = vdwg.mxu0
      %v906 = vpack.c.bf16 %v903, %v903
      %907 = vrot.lane.b32.xlu0 %v843, 120
      %v908 = vpop.permute.xlu0 %907
      %909 = vrot.lane.b32.xlu0 %v843, 88
      %v910 = vpop.permute.xlu0 %909
      %v912 = vsel %vm847, %v908, 0
      %v915 = vsel %vm847, %v910, 0
      %917 = vmatpush.bf16.xpose.msra.mxu0 0
      %918 = vmatpush.bf16.xpose.msra.mxu0 0
      %919 = vmatpush.bf16.xpose.msra.mxu0 0
      %920 = vmatpush.bf16.xpose.msra.mxu0 0
      %921 = vmatpush.bf16.xpose.msra.mxu0 0
      %922 = vmatpush.bf16.xpose.msra.mxu0 0
      %923 = vmatpush.bf16.xpose.msra.mxu0 0
      %924 = vmatpush.bf16.xpose.msra.mxu0 %v915
      %925 = vmatmul.bf16.gmra.mxu0 %v912
      %v926 = vpop.f32.mrf.mxu0
      %v927 = vadd.f32 0.0, %v926
      %v928 = vpop.f32.mrf.mxu0
      %929 = vdwg.mxu0
      %v930 = vsel %vm867, %v927, -inf
      %931 = vmax.xlane.f32.xlu0 %v930
      %v932 = vpop.xlane.xlu0 %931
      %v933 = vsub.f32 %v927, %v932
      %v934 = vmul.f32 %v933, 1.442695
      %v935 = vpow.pop %v934
      %v936 = vsel %vm867, %v935, 0.0
      %937 = vadd.xlane.f32.xlu0 %v936
      %v938 = vpop.xlane.xlu0 %937
      %v939 = vrcp.pop %v938
      %v940 = vmul.f32 %v935, %v939
      %v941 = vpack.c.bf16 %v940, %v940
      %942 = vrot.lane.b32.xlu0 %v843, 56
      %v943 = vpop.permute.xlu0 %942
      %v945 = vsel %vm882, %v941, 0
      %v948 = vand.u32 %v943, %v889
      %950 = vmatpush.bf16.msra.mxu0 0
      %951 = vmatpush.bf16.msra.mxu0 0
      %952 = vmatpush.bf16.msra.mxu0 0
      %953 = vmatpush.bf16.msra.mxu0 0
      %954 = vmatpush.bf16.msra.mxu0 0
      %955 = vmatpush.bf16.msra.mxu0 0
      %956 = vmatpush.bf16.msra.mxu0 0
      %957 = vmatpush.bf16.msra.mxu0 %v948
      %958 = vmatmul.bf16.gmra.mxu0 %v945
      %v959 = vpop.f32.mrf.mxu0
      %v960 = vadd.f32 0.0, %v959
      %v961 = vpop.f32.mrf.mxu0
      %962 = vdwg.mxu0
      %v963 = vpack.c.bf16 %v960, %v960
      %v965 = vsel %vm847, %v963, 0
      %vm967 = vcmask 1043456
      %v969 = vsel %vm967, %v727, 0
      %971 = vmatpush.bf16.msra.mxu0 0
      %972 = vmatpush.bf16.msra.mxu0 0
      %973 = vmatpush.bf16.msra.mxu0 0
      %974 = vmatpush.bf16.msra.mxu0 0
      %975 = vmatpush.bf16.msra.mxu0 0
      %976 = vmatpush.bf16.msra.mxu0 0
      %977 = vmatpush.bf16.msra.mxu0 0
      %978 = vmatpush.bf16.msra.mxu0 %v969
      %979 = vmatmul.bf16.gmra.mxu0 %v965
      %v980 = vpop.f32.mrf.mxu0
      %v981 = vadd.f32 0.0, %v980
      %v982 = vpop.f32.mrf.mxu0
      %983 = vdwg.mxu0
      %v985 = vsel %vm847, %v906, 0
      %v988 = vsel %vm967, %v726, 0
      %990 = vmatpush.bf16.msra.mxu0 0
      %991 = vmatpush.bf16.msra.mxu0 0
      %992 = vmatpush.bf16.msra.mxu0 0
      %993 = vmatpush.bf16.msra.mxu0 0
      %994 = vmatpush.bf16.msra.mxu0 0
      %995 = vmatpush.bf16.msra.mxu0 0
      %996 = vmatpush.bf16.msra.mxu0 0
      %997 = vmatpush.bf16.msra.mxu0 %v988
      %998 = vmatmul.bf16.gmra.mxu0 %v985
      %v999 = vpop.f32.mrf.mxu0
      %v1000 = vadd.f32 %v981, %v999
      %v1001 = vpop.f32.mrf.mxu0
      %1002 = vdwg.mxu0
      %1003 = vrot.lane.b32.xlu0 %v843, 112
      %v1004 = vpop.permute.xlu0 %1003
      %1005 = vrot.lane.b32.xlu0 %v843, 80
      %v1006 = vpop.permute.xlu0 %1005
      %v1008 = vsel %vm847, %v1004, 0
      %v1011 = vsel %vm847, %v1006, 0
      %1013 = vmatpush.bf16.xpose.msra.mxu0 0
      %1014 = vmatpush.bf16.xpose.msra.mxu0 0
      %1015 = vmatpush.bf16.xpose.msra.mxu0 0
      %1016 = vmatpush.bf16.xpose.msra.mxu0 0
      %1017 = vmatpush.bf16.xpose.msra.mxu0 0
      %1018 = vmatpush.bf16.xpose.msra.mxu0 0
      %1019 = vmatpush.bf16.xpose.msra.mxu0 0
      %1020 = vmatpush.bf16.xpose.msra.mxu0 %v1011
      %1021 = vmatmul.bf16.gmra.mxu0 %v1008
      %v1022 = vpop.f32.mrf.mxu0
      %v1023 = vadd.f32 0.0, %v1022
      %v1024 = vpop.f32.mrf.mxu0
      %1025 = vdwg.mxu0
      %v1026 = vsel %vm867, %v1023, -inf
      %1027 = vmax.xlane.f32.xlu0 %v1026
      %v1028 = vpop.xlane.xlu0 %1027
      %v1029 = vsub.f32 %v1023, %v1028
      %v1030 = vmul.f32 %v1029, 1.442695
      %v1031 = vpow.pop %v1030
      %v1032 = vsel %vm867, %v1031, 0.0
      %1033 = vadd.xlane.f32.xlu0 %v1032
      %v1034 = vpop.xlane.xlu0 %1033
      %v1035 = vrcp.pop %v1034
      %v1036 = vmul.f32 %v1031, %v1035
      %v1037 = vpack.c.bf16 %v1036, %v1036
      %1038 = vrot.lane.b32.xlu0 %v843, 48
      %v1039 = vpop.permute.xlu0 %1038
      %v1041 = vsel %vm882, %v1037, 0
      %v1044 = vand.u32 %v1039, %v889
      %1046 = vmatpush.bf16.msra.mxu0 0
      %1047 = vmatpush.bf16.msra.mxu0 0
      %1048 = vmatpush.bf16.msra.mxu0 0
      %1049 = vmatpush.bf16.msra.mxu0 0
      %1050 = vmatpush.bf16.msra.mxu0 0
      %1051 = vmatpush.bf16.msra.mxu0 0
      %1052 = vmatpush.bf16.msra.mxu0 0
      %1053 = vmatpush.bf16.msra.mxu0 %v1044
      %1054 = vmatmul.bf16.gmra.mxu0 %v1041
      %v1055 = vpop.f32.mrf.mxu0
      %v1056 = vadd.f32 0.0, %v1055
      %v1057 = vpop.f32.mrf.mxu0
      %1058 = vdwg.mxu0
      %v1059 = vpack.c.bf16 %v1056, %v1056
      %v1061 = vsel %vm847, %v1059, 0
      %v1064 = vsel %vm967, %v728, 0
      %1066 = vmatpush.bf16.msra.mxu0 0
      %1067 = vmatpush.bf16.msra.mxu0 0
      %1068 = vmatpush.bf16.msra.mxu0 0
      %1069 = vmatpush.bf16.msra.mxu0 0
      %1070 = vmatpush.bf16.msra.mxu0 0
      %1071 = vmatpush.bf16.msra.mxu0 0
      %1072 = vmatpush.bf16.msra.mxu0 0
      %1073 = vmatpush.bf16.msra.mxu0 %v1064
      %1074 = vmatmul.bf16.gmra.mxu0 %v1061
      %v1075 = vpop.f32.mrf.mxu0
      %v1076 = vadd.f32 0.0, %v1075
      %v1077 = vpop.f32.mrf.mxu0
      %1078 = vdwg.mxu0
      %v1079 = vadd.f32 %v1000, %v1076
      %1080 = vrot.lane.b32.xlu0 %v843, 104
      %v1081 = vpop.permute.xlu0 %1080
      %1082 = vrot.lane.b32.xlu0 %v843, 72
      %v1083 = vpop.permute.xlu0 %1082
      %v1085 = vsel %vm847, %v1081, 0
      %v1088 = vsel %vm847, %v1083, 0
      %1090 = vmatpush.bf16.xpose.msra.mxu0 0
      %1091 = vmatpush.bf16.xpose.msra.mxu0 0
      %1092 = vmatpush.bf16.xpose.msra.mxu0 0
      %1093 = vmatpush.bf16.xpose.msra.mxu0 0
      %1094 = vmatpush.bf16.xpose.msra.mxu0 0
      %1095 = vmatpush.bf16.xpose.msra.mxu0 0
      %1096 = vmatpush.bf16.xpose.msra.mxu0 0
      %1097 = vmatpush.bf16.xpose.msra.mxu0 %v1088
      %1098 = vmatmul.bf16.gmra.mxu0 %v1085
      %v1099 = vpop.f32.mrf.mxu0
      %v1100 = vadd.f32 0.0, %v1099
      %v1101 = vpop.f32.mrf.mxu0
      %1102 = vdwg.mxu0
      %v1103 = vsel %vm867, %v1100, -inf
      %1104 = vmax.xlane.f32.xlu0 %v1103
      %v1105 = vpop.xlane.xlu0 %1104
      %v1106 = vsub.f32 %v1100, %v1105
      %v1107 = vmul.f32 %v1106, 1.442695
      %v1108 = vpow.pop %v1107
      %v1109 = vsel %vm867, %v1108, 0.0
      %1110 = vadd.xlane.f32.xlu0 %v1109
      %v1111 = vpop.xlane.xlu0 %1110
      %v1112 = vrcp.pop %v1111
      %v1113 = vmul.f32 %v1108, %v1112
      %v1114 = vpack.c.bf16 %v1113, %v1113
      %1115 = vrot.lane.b32.xlu0 %v843, 40
      %v1116 = vpop.permute.xlu0 %1115
      %v1118 = vsel %vm882, %v1114, 0
      %v1121 = vand.u32 %v1116, %v889
      %1123 = vmatpush.bf16.msra.mxu0 0
      %1124 = vmatpush.bf16.msra.mxu0 0
      %1125 = vmatpush.bf16.msra.mxu0 0
      %1126 = vmatpush.bf16.msra.mxu0 0
      %1127 = vmatpush.bf16.msra.mxu0 0
      %1128 = vmatpush.bf16.msra.mxu0 0
      %1129 = vmatpush.bf16.msra.mxu0 0
      %1130 = vmatpush.bf16.msra.mxu0 %v1121
      %1131 = vmatmul.bf16.gmra.mxu0 %v1118
      %v1132 = vpop.f32.mrf.mxu0
      %v1133 = vadd.f32 0.0, %v1132
      %v1134 = vpop.f32.mrf.mxu0
      %1135 = vdwg.mxu0
      %v1136 = vpack.c.bf16 %v1133, %v1133
      %v1138 = vsel %vm847, %v1136, 0
      %v1141 = vsel %vm967, %v729, 0
      %1143 = vmatpush.bf16.msra.mxu0 0
      %1144 = vmatpush.bf16.msra.mxu0 0
      %1145 = vmatpush.bf16.msra.mxu0 0
      %1146 = vmatpush.bf16.msra.mxu0 0
      %1147 = vmatpush.bf16.msra.mxu0 0
      %1148 = vmatpush.bf16.msra.mxu0 0
      %1149 = vmatpush.bf16.msra.mxu0 0
      %1150 = vmatpush.bf16.msra.mxu0 %v1141
      %1151 = vmatmul.bf16.gmra.mxu0 %v1138
      %v1152 = vpop.f32.mrf.mxu0
      %v1153 = vadd.f32 0.0, %v1152
      %v1154 = vpop.f32.mrf.mxu0
      %1155 = vdwg.mxu0
      %v1156 = vadd.f32 %v1079, %v1153
      %v1157 = vpack.c.bf16 %v841, %v839
      %v1159 = vshrl.u32 %v1157, 16
      %v1161 = vrot.slane %v1159, 2
      %v1162 = vshll.u32 %v1157, 16
      %v1164 = vrot.slane %v1162, 3
      %v1165 = vor.u32 %v1161, %v1164
      %1166 = vrot.lane.b32.xlu0 %v1165, 96
      %v1167 = vpop.permute.xlu0 %1166
      %v1169 = vsel %vm847, %v1165, 0
      %v1172 = vsel %vm847, %v1167, 0
      %1174 = vmatpush.bf16.xpose.msra.mxu0 0
      %1175 = vmatpush.bf16.xpose.msra.mxu0 0
      %1176 = vmatpush.bf16.xpose.msra.mxu0 0
      %1177 = vmatpush.bf16.xpose.msra.mxu0 0
      %1178 = vmatpush.bf16.xpose.msra.mxu0 0
      %1179 = vmatpush.bf16.xpose.msra.mxu0 0
      %1180 = vmatpush.bf16.xpose.msra.mxu0 0
      %1181 = vmatpush.bf16.xpose.msra.mxu0 %v1172
      %1182 = vmatmul.bf16.gmra.mxu0 %v1169
      %v1183 = vpop.f32.mrf.mxu0
      %v1184 = vadd.f32 0.0, %v1183
      %v1185 = vpop.f32.mrf.mxu0
      %1186 = vdwg.mxu0
      %v1187 = vsel %vm867, %v1184, -inf
      %1188 = vmax.xlane.f32.xlu0 %v1187
      %v1189 = vpop.xlane.xlu0 %1188
      %v1190 = vsub.f32 %v1184, %v1189
      %v1191 = vmul.f32 %v1190, 1.442695
      %v1192 = vpow.pop %v1191
      %v1193 = vsel %vm867, %v1192, 0.0
      %1194 = vadd.xlane.f32.xlu0 %v1193
      %v1195 = vpop.xlane.xlu0 %1194
      %v1196 = vrcp.pop %v1195
      %v1197 = vmul.f32 %v1192, %v1196
      %v1198 = vpack.c.bf16 %v1197, %v1197
      %1199 = vrot.lane.b32.xlu0 %v1165, 64
      %v1200 = vpop.permute.xlu0 %1199
      %v1202 = vsel %vm882, %v1198, 0
      %v1205 = vand.u32 %v1200, %v889
      %1207 = vmatpush.bf16.msra.mxu0 0
      %1208 = vmatpush.bf16.msra.mxu0 0
      %1209 = vmatpush.bf16.msra.mxu0 0
      %1210 = vmatpush.bf16.msra.mxu0 0
      %1211 = vmatpush.bf16.msra.mxu0 0
      %1212 = vmatpush.bf16.msra.mxu0 0
      %1213 = vmatpush.bf16.msra.mxu0 0
      %1214 = vmatpush.bf16.msra.mxu0 %v1205
      %1215 = vmatmul.bf16.gmra.mxu0 %v1202
      %v1216 = vpop.f32.mrf.mxu0
      %v1217 = vadd.f32 0.0, %v1216
      %v1218 = vpop.f32.mrf.mxu0
      %1219 = vdwg.mxu0
      %v1220 = vpack.c.bf16 %v1217, %v1217
      %1221 = vrot.lane.b32.xlu0 %v1165, 120
      %v1222 = vpop.permute.xlu0 %1221
      %1223 = vrot.lane.b32.xlu0 %v1165, 88
      %v1224 = vpop.permute.xlu0 %1223
      %v1226 = vsel %vm847, %v1222, 0
      %v1229 = vsel %vm847, %v1224, 0
      %1231 = vmatpush.bf16.xpose.msra.mxu0 0
      %1232 = vmatpush.bf16.xpose.msra.mxu0 0
      %1233 = vmatpush.bf16.xpose.msra.mxu0 0
      %1234 = vmatpush.bf16.xpose.msra.mxu0 0
      %1235 = vmatpush.bf16.xpose.msra.mxu0 0
      %1236 = vmatpush.bf16.xpose.msra.mxu0 0
      %1237 = vmatpush.bf16.xpose.msra.mxu0 0
      %1238 = vmatpush.bf16.xpose.msra.mxu0 %v1229
      %1239 = vmatmul.bf16.gmra.mxu0 %v1226
      %v1240 = vpop.f32.mrf.mxu0
      %v1241 = vadd.f32 0.0, %v1240
      %v1242 = vpop.f32.mrf.mxu0
      %1243 = vdwg.mxu0
      %v1244 = vsel %vm867, %v1241, -inf
      %1245 = vmax.xlane.f32.xlu0 %v1244
      %v1246 = vpop.xlane.xlu0 %1245
      %v1247 = vsub.f32 %v1241, %v1246
      %v1248 = vmul.f32 %v1247, 1.442695
      %v1249 = vpow.pop %v1248
      %v1250 = vsel %vm867, %v1249, 0.0
      %1251 = vadd.xlane.f32.xlu0 %v1250
      %v1252 = vpop.xlane.xlu0 %1251
      %v1253 = vrcp.pop %v1252
      %v1254 = vmul.f32 %v1249, %v1253
      %v1255 = vpack.c.bf16 %v1254, %v1254
      %1256 = vrot.lane.b32.xlu0 %v1165, 56
      %v1257 = vpop.permute.xlu0 %1256
      %v1259 = vsel %vm882, %v1255, 0
      %v1262 = vand.u32 %v1257, %v889
      %1264 = vmatpush.bf16.msra.mxu0 0
      %1265 = vmatpush.bf16.msra.mxu0 0
      %1266 = vmatpush.bf16.msra.mxu0 0
      %1267 = vmatpush.bf16.msra.mxu0 0
      %1268 = vmatpush.bf16.msra.mxu0 0
      %1269 = vmatpush.bf16.msra.mxu0 0
      %1270 = vmatpush.bf16.msra.mxu0 0
      %1271 = vmatpush.bf16.msra.mxu0 %v1262
      %1272 = vmatmul.bf16.gmra.mxu0 %v1259
      %v1273 = vpop.f32.mrf.mxu0
      %v1274 = vadd.f32 0.0, %v1273
      %v1275 = vpop.f32.mrf.mxu0
      %1276 = vdwg.mxu0
      %v1277 = vpack.c.bf16 %v1274, %v1274
      %v1279 = vsel %vm847, %v1277, 0
      %1281 = vmatpush.bf16.msra.mxu0 0
      %1282 = vmatpush.bf16.msra.mxu0 0
      %1283 = vmatpush.bf16.msra.mxu0 0
      %1284 = vmatpush.bf16.msra.mxu0 0
      %1285 = vmatpush.bf16.msra.mxu0 0
      %1286 = vmatpush.bf16.msra.mxu0 0
      %1287 = vmatpush.bf16.msra.mxu0 0
      %1288 = vmatpush.bf16.msra.mxu0 %v969
      %1289 = vmatmul.bf16.gmra.mxu0 %v1279
      %v1290 = vpop.f32.mrf.mxu0
      %v1291 = vadd.f32 0.0, %v1290
      %v1292 = vpop.f32.mrf.mxu0
      %1293 = vdwg.mxu0
      %v1295 = vsel %vm847, %v1220, 0
      %1297 = vmatpush.bf16.msra.mxu0 0
      %1298 = vmatpush.bf16.msra.mxu0 0
      %1299 = vmatpush.bf16.msra.mxu0 0
      %1300 = vmatpush.bf16.msra.mxu0 0
      %1301 = vmatpush.bf16.msra.mxu0 0
      %1302 = vmatpush.bf16.msra.mxu0 0
      %1303 = vmatpush.bf16.msra.mxu0 0
      %1304 = vmatpush.bf16.msra.mxu0 %v988
      %1305 = vmatmul.bf16.gmra.mxu0 %v1295
      %v1306 = vpop.f32.mrf.mxu0
      %v1307 = vadd.f32 %v1291, %v1306
      %v1308 = vpop.f32.mrf.mxu0
      %1309 = vdwg.mxu0
      %1310 = vrot.lane.b32.xlu0 %v1165, 112
      %v1311 = vpop.permute.xlu0 %1310
      %1312 = vrot.lane.b32.xlu0 %v1165, 80
      %v1313 = vpop.permute.xlu0 %1312
      %v1315 = vsel %vm847, %v1311, 0
      %v1318 = vsel %vm847, %v1313, 0
      %1320 = vmatpush.bf16.xpose.msra.mxu0 0
      %1321 = vmatpush.bf16.xpose.msra.mxu0 0
      %1322 = vmatpush.bf16.xpose.msra.mxu0 0
      %1323 = vmatpush.bf16.xpose.msra.mxu0 0
      %1324 = vmatpush.bf16.xpose.msra.mxu0 0
      %1325 = vmatpush.bf16.xpose.msra.mxu0 0
      %1326 = vmatpush.bf16.xpose.msra.mxu0 0
      %1327 = vmatpush.bf16.xpose.msra.mxu0 %v1318
      %1328 = vmatmul.bf16.gmra.mxu0 %v1315
      %v1329 = vpop.f32.mrf.mxu0
      %v1330 = vadd.f32 0.0, %v1329
      %v1331 = vpop.f32.mrf.mxu0
      %1332 = vdwg.mxu0
      %v1333 = vsel %vm867, %v1330, -inf
      %1334 = vmax.xlane.f32.xlu0 %v1333
      %v1335 = vpop.xlane.xlu0 %1334
      %v1336 = vsub.f32 %v1330, %v1335
      %v1337 = vmul.f32 %v1336, 1.442695
      %v1338 = vpow.pop %v1337
      %v1339 = vsel %vm867, %v1338, 0.0
      %1340 = vadd.xlane.f32.xlu0 %v1339
      %v1341 = vpop.xlane.xlu0 %1340
      %v1342 = vrcp.pop %v1341
      %v1343 = vmul.f32 %v1338, %v1342
      %v1344 = vpack.c.bf16 %v1343, %v1343
      %1345 = vrot.lane.b32.xlu0 %v1165, 48
      %v1346 = vpop.permute.xlu0 %1345
      %v1348 = vsel %vm882, %v1344, 0
      %v1351 = vand.u32 %v1346, %v889
      %1353 = vmatpush.bf16.msra.mxu0 0
      %1354 = vmatpush.bf16.msra.mxu0 0
      %1355 = vmatpush.bf16.msra.mxu0 0
      %1356 = vmatpush.bf16.msra.mxu0 0
      %1357 = vmatpush.bf16.msra.mxu0 0
      %1358 = vmatpush.bf16.msra.mxu0 0
      %1359 = vmatpush.bf16.msra.mxu0 0
      %1360 = vmatpush.bf16.msra.mxu0 %v1351
      %1361 = vmatmul.bf16.gmra.mxu0 %v1348
      %v1362 = vpop.f32.mrf.mxu0
      %v1363 = vadd.f32 0.0, %v1362
      %v1364 = vpop.f32.mrf.mxu0
      %1365 = vdwg.mxu0
      %v1366 = vpack.c.bf16 %v1363, %v1363
      %v1368 = vsel %vm847, %v1366, 0
      %1370 = vmatpush.bf16.msra.mxu0 0
      %1371 = vmatpush.bf16.msra.mxu0 0
      %1372 = vmatpush.bf16.msra.mxu0 0
      %1373 = vmatpush.bf16.msra.mxu0 0
      %1374 = vmatpush.bf16.msra.mxu0 0
      %1375 = vmatpush.bf16.msra.mxu0 0
      %1376 = vmatpush.bf16.msra.mxu0 0
      %1377 = vmatpush.bf16.msra.mxu0 %v1064
      %1378 = vmatmul.bf16.gmra.mxu0 %v1368
      %v1379 = vpop.f32.mrf.mxu0
      %v1380 = vadd.f32 0.0, %v1379
      %v1381 = vpop.f32.mrf.mxu0
      %1382 = vdwg.mxu0
      %v1383 = vadd.f32 %v1307, %v1380
      %1384 = vrot.lane.b32.xlu0 %v1165, 104
      %v1385 = vpop.permute.xlu0 %1384
      %1386 = vrot.lane.b32.xlu0 %v1165, 72
      %v1387 = vpop.permute.xlu0 %1386
      %v1389 = vsel %vm847, %v1385, 0
      %v1392 = vsel %vm847, %v1387, 0
      %1394 = vmatpush.bf16.xpose.msra.mxu0 0
      %1395 = vmatpush.bf16.xpose.msra.mxu0 0
      %1396 = vmatpush.bf16.xpose.msra.mxu0 0
      %1397 = vmatpush.bf16.xpose.msra.mxu0 0
      %1398 = vmatpush.bf16.xpose.msra.mxu0 0
      %1399 = vmatpush.bf16.xpose.msra.mxu0 0
      %1400 = vmatpush.bf16.xpose.msra.mxu0 0
      %1401 = vmatpush.bf16.xpose.msra.mxu0 %v1392
      %1402 = vmatmul.bf16.gmra.mxu0 %v1389
      %v1403 = vpop.f32.mrf.mxu0
      %v1404 = vadd.f32 0.0, %v1403
      %v1405 = vpop.f32.mrf.mxu0
      %1406 = vdwg.mxu0
      %v1407 = vsel %vm867, %v1404, -inf
      %1408 = vmax.xlane.f32.xlu0 %v1407
      %v1409 = vpop.xlane.xlu0 %1408
      %v1410 = vsub.f32 %v1404, %v1409
      %v1411 = vmul.f32 %v1410, 1.442695
      %v1412 = vpow.pop %v1411
      %v1413 = vsel %vm867, %v1412, 0.0
      %1414 = vadd.xlane.f32.xlu0 %v1413
      %v1415 = vpop.xlane.xlu0 %1414
      %v1416 = vrcp.pop %v1415
      %v1417 = vmul.f32 %v1412, %v1416
      %v1418 = vpack.c.bf16 %v1417, %v1417
      %1419 = vrot.lane.b32.xlu0 %v1165, 40
      %v1420 = vpop.permute.xlu0 %1419
      %v1422 = vsel %vm882, %v1418, 0
      %v1425 = vand.u32 %v1420, %v889
      %1427 = vmatpush.bf16.msra.mxu0 0
      %1428 = vmatpush.bf16.msra.mxu0 0
      %1429 = vmatpush.bf16.msra.mxu0 0
      %1430 = vmatpush.bf16.msra.mxu0 0
      %1431 = vmatpush.bf16.msra.mxu0 0
      %1432 = vmatpush.bf16.msra.mxu0 0
      %1433 = vmatpush.bf16.msra.mxu0 0
      %1434 = vmatpush.bf16.msra.mxu0 %v1425
      %1435 = vmatmul.bf16.gmra.mxu0 %v1422
      %v1436 = vpop.f32.mrf.mxu0
      %v1437 = vadd.f32 0.0, %v1436
      %v1438 = vpop.f32.mrf.mxu0
      %1439 = vdwg.mxu0
      %v1440 = vpack.c.bf16 %v1437, %v1437
      %v1442 = vsel %vm847, %v1440, 0
      %1444 = vmatpush.bf16.msra.mxu0 0
      %1445 = vmatpush.bf16.msra.mxu0 0
      %1446 = vmatpush.bf16.msra.mxu0 0
      %1447 = vmatpush.bf16.msra.mxu0 0
      %1448 = vmatpush.bf16.msra.mxu0 0
      %1449 = vmatpush.bf16.msra.mxu0 0
      %1450 = vmatpush.bf16.msra.mxu0 0
      %1451 = vmatpush.bf16.msra.mxu0 %v1141
      %1452 = vmatmul.bf16.gmra.mxu0 %v1442
      %v1453 = vpop.f32.mrf.mxu0
      %v1454 = vadd.f32 0.0, %v1453
      %v1455 = vpop.f32.mrf.mxu0
      %1456 = vdwg.mxu0
      %v1457 = vadd.f32 %v1383, %v1454
      %v1459 = vrot.slane %v1457, 3
      %vm1461 = vcmask 1044480
      %v1462 = vsel %vm1461, %v1156, %v1459
      %v1463 = vadd.f32 %v717, %v1462
      %v1464 = vadd.f32 %v718, %v1459
      %v1466 = vperm.slane %v730, 0
      %v1468 = vadd.f32 %v1463, %v1466
      %v1469 = vadd.f32 %v1464, %v1466
      %v1470 = vsel %vm747, %v1468, 0.0
      %1471 = vadd.xlane.f32.xlu0 %v1470
      %v1472 = vpop.xlane.xlu0 %1471
      %v1473 = vsel %vm751, %v1469, 0.0
      %1474 = vadd.xlane.f32.xlu0 %v1473
      %v1475 = vpop.xlane.xlu0 %1474
      %v1476 = vmul.f32 %v1472, %v761
      %v1477 = vmul.f32 %v1475, %v761
      %v1478 = vsub.f32 %v1468, %v1476
      %v1479 = vsub.f32 %v1469, %v1477
      %v1480 = vmul.f32 %v1478, %v1478
      %v1481 = vmul.f32 %v1479, %v1479
      %v1482 = vsel %vm747, %v1480, 0.0
      %1483 = vadd.xlane.f32.xlu0 %v1482
      %v1484 = vpop.xlane.xlu0 %1483
      %v1485 = vsel %vm751, %v1481, 0.0
      %1486 = vadd.xlane.f32.xlu0 %v1485
      %v1487 = vpop.xlane.xlu0 %1486
      %v1488 = vmul.f32 %v1484, %v761
      %v1489 = vmul.f32 %v1487, %v761
      %v1490 = vadd.f32 %v1488, 1e-06
      %v1491 = vadd.f32 %v1489, 1e-06
      %v1492 = vrsqrt.pop %v1490
      %v1493 = vmul.f32 %v1492, %v1490
      %v1494 = vmul.f32 %v1493, %v1492
      %v1495 = vmul.f32 0.5, %v1494
      %v1496 = vsub.f32 1.5, %v1495
      %v1497 = vmul.f32 %v1492, %v1496
      %vm1498 = vweird.f32 %v1490
      %vm1499 = vweird.f32 %v1492
      %vm1500 = vmor %vm1498, %vm1499
      %v1501 = vsel %vm1500, %v1492, %v1497
      %v1502 = vrsqrt.pop %v1491
      %v1503 = vmul.f32 %v1502, %v1491
      %v1504 = vmul.f32 %v1503, %v1502
      %v1505 = vmul.f32 0.5, %v1504
      %v1506 = vsub.f32 1.5, %v1505
      %v1507 = vmul.f32 %v1502, %v1506
      %vm1508 = vweird.f32 %v1491
      %vm1509 = vweird.f32 %v1502
      %vm1510 = vmor %vm1508, %vm1509
      %v1511 = vsel %vm1510, %v1502, %v1507
      %v1512 = vmul.f32 %v1478, %v1501
      %v1513 = vmul.f32 %v1479, %v1511
      %v1515 = vperm.slane %v731, 0
      %v1517 = vmul.f32 %v1512, %v1515
      %v1518 = vmul.f32 %v1513, %v1515
      %v1520 = vperm.slane %v732, 0
      %v1522 = vadd.f32 %v1517, %v1520
      %v1523 = vadd.f32 %v1518, %v1520
      %v1524 = vpack.c.bf16 %v1523, %v1522
      %v1526 = vperm.slane %v737, 0
      %v1532 = vunpack.c.l.b16 %v733
      %v1533 = vunpack.c.l.b16 %v734
      %v1534 = vunpack.c.l.b16 %v735
      %v1535 = vunpack.c.l.b16 %v736
      %v1536 = vpack.c.b16 %v1533, %v1532
      %v1537 = vpack.c.b16 %v1535, %v1534
      %v1541 = vsel %vm747, %v1524, 0
      %1543 = vmatpush.bf16.msra.mxu0 0
      %1544 = vmatpush.bf16.msra.mxu0 0
      %1545 = vmatpush.bf16.msra.mxu0 0
      %1546 = vmatpush.bf16.msra.mxu0 0
      %1547 = vmatpush.bf16.msra.mxu0 0
      %1548 = vmatpush.bf16.msra.mxu0 0
      %1549 = vmatpush.bf16.msra.mxu0 %v1537
      %1550 = vmatpush.bf16.msra.mxu0 %v1536
      %1551 = vmatmul.bf16.gmra.mxu0 %v1541
      %v1552 = vpop.f32.mrf.mxu0
      %v1553 = vadd.f32 %v1526, %v1552
      %v1554 = vpop.f32.mrf.mxu0
      %v1555 = vadd.f32 %v1526, %v1554
      %1556 = vdwg.mxu0
      %v1557 = vmul.f32 %v1553, %v1553
      %v1558 = vmul.f32 %v1555, %v1555
      %v1559 = vmul.f32 %v1553, %v1557
      %v1560 = vmul.f32 %v1555, %v1558
      %v1561 = vmul.f32 %v1559, 0.044715
      %v1562 = vmul.f32 %v1560, 0.044715
      %v1563 = vadd.f32 %v1553, %v1561
      %v1564 = vadd.f32 %v1555, %v1562
      %v1565 = vmul.f32 %v1563, 0.7978846
      %v1566 = vmul.f32 %v1564, 0.7978846
      %v1567 = vtanh.pop %v1565
      %v1568 = vtanh.pop %v1566
      %v1569 = vadd.f32 %v1567, 1.0
      %v1570 = vadd.f32 %v1568, 1.0
      %v1571 = vmul.f32 %v1569, 0.5
      %v1572 = vmul.f32 %v1570, 0.5
      %v1573 = vmul.f32 %v1553, %v1571
      %v1574 = vmul.f32 %v1555, %v1572
      %v1575 = vpack.c.bf16 %v1574, %v1573
      %v1577 = vperm.slane %v746, 0
      %v1587 = vunpack.c.l.b16 %v738
      %v1588 = vunpack.c.l.b16 %v739
      %v1589 = vunpack.c.l.b16 %v740
      %v1590 = vunpack.c.l.b16 %v741
      %v1591 = vunpack.c.l.b16 %v742
      %v1592 = vunpack.c.l.b16 %v743
      %v1593 = vunpack.c.l.b16 %v744
      %v1594 = vunpack.c.l.b16 %v745
      %v1595 = vpack.c.b16 %v1588, %v1587
      %v1596 = vpack.c.b16 %v1590, %v1589
      %v1597 = vpack.c.b16 %v1592, %v1591
      %v1598 = vpack.c.b16 %v1594, %v1593
      %vm1603 = vcmask 523264
      %v1605 = vsel %vm1603, %v1575, 0
      %1607 = vmatpush.bf16.msra.mxu0 0
      %1608 = vmatpush.bf16.msra.mxu0 0
      %1609 = vmatpush.bf16.msra.mxu0 0
      %1610 = vmatpush.bf16.msra.mxu0 0
      %1611 = vmatpush.bf16.msra.mxu0 %v1598
      %1612 = vmatpush.bf16.msra.mxu0 %v1597
      %1613 = vmatpush.bf16.msra.mxu0 %v1596
      %1614 = vmatpush.bf16.msra.mxu0 %v1595
      %1615 = vmatmul.bf16.gmra.mxu0 %v1605
      %v1616 = vpop.f32.mrf.mxu0
      %v1617 = vadd.f32 %v1577, %v1616
      %v1618 = vpop.f32.mrf.mxu0
      %v1619 = vadd.f32 %v1577, %v1618
      %1620 = vdwg.mxu0
      %v1621 = vadd.f32 %v1468, %v1617
      %v1622 = vadd.f32 %v1469, %v1619
      %1623 = vst.msk [vmem:[#allocation2] sm:$0xff] %vm747, %v1621
      %1624 = vst.msk [vmem:[#allocation2 + $0x8] sm:$0x3] %vm751, %v1622
      %p1625 = scmp.eq.s32.totalorder %s28, 1
      // Predicated region
      $region93: #{_lambda_.4} parent=87 // pred_check
        %p1626 = pneg %p1625
      $region94: #{_lambda_.4} parent=87 // pred_check_branch
        %1628 = sbr.rel (%p1626) target = $region96
      $region95: #{_lambda_.4} parent=87 // pred_region
        %v1629 = vld [vmem:[%s13] sm:$0x1]
        %v1630 = vld [vmem:[%s14] sm:$0x1]
        %v1631 = vsel %vm747, %v1621, 0.0
        %1632 = vadd.xlane.f32.xlu0 %v1631
        %v1633 = vpop.xlane.xlu0 %1632
        %v1634 = vsel %vm751, %v1622, 0.0
        %1635 = vadd.xlane.f32.xlu0 %v1634
        %v1636 = vpop.xlane.xlu0 %1635
        %v1637 = vmul.f32 %v1633, %v761
        %v1638 = vmul.f32 %v1636, %v761
        %v1639 = vsub.f32 %v1621, %v1637
        %v1640 = vsub.f32 %v1622, %v1638
        %v1641 = vmul.f32 %v1639, %v1639
        %v1642 = vmul.f32 %v1640, %v1640
        %v1643 = vsel %vm747, %v1641, 0.0
        %1644 = vadd.xlane.f32.xlu0 %v1643
        %v1645 = vpop.xlane.xlu0 %1644
        %v1646 = vsel %vm751, %v1642, 0.0
        %1647 = vadd.xlane.f32.xlu0 %v1646
        %v1648 = vpop.xlane.xlu0 %1647
        %v1649 = vmul.f32 %v1645, %v761
        %v1650 = vmul.f32 %v1648, %v761
        %v1651 = vadd.f32 %v1649, 1e-06
        %v1652 = vadd.f32 %v1650, 1e-06
        %v1653 = vrsqrt.pop %v1651
        %v1654 = vmul.f32 %v1653, %v1651
        %v1655 = vmul.f32 %v1654, %v1653
        %v1656 = vmul.f32 0.5, %v1655
        %v1657 = vsub.f32 1.5, %v1656
        %v1658 = vmul.f32 %v1653, %v1657
        %vm1659 = vweird.f32 %v1651
        %vm1660 = vweird.f32 %v1653
        %vm1661 = vmor %vm1659, %vm1660
        %v1662 = vsel %vm1661, %v1653, %v1658
        %v1663 = vrsqrt.pop %v1652
        %v1664 = vmul.f32 %v1663, %v1652
        %v1665 = vmul.f32 %v1664, %v1663
        %v1666 = vmul.f32 0.5, %v1665
        %v1667 = vsub.f32 1.5, %v1666
        %v1668 = vmul.f32 %v1663, %v1667
        %vm1669 = vweird.f32 %v1652
        %vm1670 = vweird.f32 %v1663
        %vm1671 = vmor %vm1669, %vm1670
        %v1672 = vsel %vm1671, %v1663, %v1668
        %v1673 = vmul.f32 %v1639, %v1662
        %v1674 = vmul.f32 %v1640, %v1672
        %v1676 = vperm.slane %v1629, 0
        %v1678 = vmul.f32 %v1673, %v1676
        %v1679 = vmul.f32 %v1674, %v1676
        %v1681 = vperm.slane %v1630, 0
        %v1683 = vadd.f32 %v1678, %v1681
        %v1684 = vadd.f32 %v1679, %v1681
        %v1685 = vld [vmem:[%s15] sm:$0x1]
        %v1686 = vld [vmem:[%s16] sm:$0x1]
        %v1687 = vsel %vm747, %v1683, 0.0
        %1688 = vadd.xlane.f32.xlu0 %v1687
        %v1689 = vpop.xlane.xlu0 %1688
        %v1690 = vsel %vm751, %v1684, 0.0
        %1691 = vadd.xlane.f32.xlu0 %v1690
        %v1692 = vpop.xlane.xlu0 %1691
        %v1693 = vmul.f32 %v1689, %v761
        %v1694 = vmul.f32 %v1692, %v761
        %v1695 = vsub.f32 %v1683, %v1693
        %v1696 = vsub.f32 %v1684, %v1694
        %v1697 = vmul.f32 %v1695, %v1695
        %v1698 = vmul.f32 %v1696, %v1696
        %v1699 = vsel %vm747, %v1697, 0.0
        %1700 = vadd.xlane.f32.xlu0 %v1699
        %v1701 = vpop.xlane.xlu0 %1700
        %v1702 = vsel %vm751, %v1698, 0.0
        %1703 = vadd.xlane.f32.xlu0 %v1702
        %v1704 = vpop.xlane.xlu0 %1703
        %v1705 = vmul.f32 %v1701, %v761
        %v1706 = vmul.f32 %v1704, %v761
        %v1707 = vadd.f32 %v1705, 1e-05
        %v1708 = vadd.f32 %v1706, 1e-05
        %v1709 = vrsqrt.pop %v1707
        %v1710 = vmul.f32 %v1709, %v1707
        %v1711 = vmul.f32 %v1710, %v1709
        %v1712 = vmul.f32 0.5, %v1711
        %v1713 = vsub.f32 1.5, %v1712
        %v1714 = vmul.f32 %v1709, %v1713
        %vm1715 = vweird.f32 %v1707
        %vm1716 = vweird.f32 %v1709
        %vm1717 = vmor %vm1715, %vm1716
        %v1718 = vsel %vm1717, %v1709, %v1714
        %v1719 = vrsqrt.pop %v1708
        %v1720 = vmul.f32 %v1719, %v1708
        %v1721 = vmul.f32 %v1720, %v1719
        %v1722 = vmul.f32 0.5, %v1721
        %v1723 = vsub.f32 1.5, %v1722
        %v1724 = vmul.f32 %v1719, %v1723
        %vm1725 = vweird.f32 %v1708
        %vm1726 = vweird.f32 %v1719
        %vm1727 = vmor %vm1725, %vm1726
        %v1728 = vsel %vm1727, %v1719, %v1724
        %v1729 = vmul.f32 %v1695, %v1718
        %v1730 = vmul.f32 %v1696, %v1728
        %v1732 = vperm.slane %v1685, 0
        %v1734 = vmul.f32 %v1729, %v1732
        %v1735 = vmul.f32 %v1730, %v1732
        %v1737 = vperm.slane %v1686, 0
        %v1739 = vadd.f32 %v1734, %v1737
        %v1740 = vadd.f32 %v1735, %v1737
        %1741 = vst.msk [vmem:[%s17] sm:$0xff] %vm747, %v1739
        %1742 = vst.msk [vmem:[%s17 + $0x8] sm:$0x3] %vm751, %v1740
      $region96: #{_lambda_.4} parent=87 // pred_fallthru
        _
      // Predicated region
      $region97: #{_lambda_.4} parent=87 // pred_check
        %p1743 = pneg %p458
      $region98: #{_lambda_.4} parent=87 // pred_check_branch
        %1745 = sbr.rel (%p1743) target = $region100
      $region99: #{_lambda_.4} parent=87 // pred_region
        _
      $region100: #{_lambda_.4} parent=87 // pred_fallthru
        _
      // Predicated region
      $region101: #{_lambda_.4} parent=87 // pred_check
        %p1746 = pneg %p458
      $region102: #{_lambda_.4} parent=87 // pred_check_branch
        %1748 = sbr.rel (%p1746) target = $region104
      $region103: #{_lambda_.4} parent=87 // pred_region
        _
      $region104: #{_lambda_.4} parent=87 // pred_fallthru
        _
    $region88: #{_lambda_.4} parent=5 // pred_fallthru
      _
    %p1749 = scmp.le.s32.totalorder 2, %s23
    // Predicated region
    $region105: #{_lambda_.4} parent=5 // pred_check
      %p1750 = pneg %p1749
    $region106: #{_lambda_.4} parent=5 // pred_check_branch
      %1752 = sbr.rel (%p1750) target = $region108
    $region107: #{_lambda_.4} parent=5 // pred_region
      %s1753 = ssub.s32 %s23, 2
    $region108: #{_lambda_.4} parent=5 // pred_fallthru
      _
  $region6: #{_lambda_.4} parent=0 // loop_footer
    %s27 = sadd.s32 1, %s23
  $region7: #{_lambda_.4} parent=0 // loop_footer_branch
    %22 = sbr.rel target = $region3
  $region8: #{_lambda_.4} parent=0 // loop_exit
    _

// kernel: _lambda_.5
$region0: #{_lambda_.5}
  #allocation0 [shape = 'u32[]', space=smem, size = 0x4, offset = 0x4, fixed_abs, tag = 'smem constant byte address 0x4 - core index']
  #allocation1 [shape = 'u32[72,128]{1,0:T(1,128)}', space=vmem, size = 0x9000, scoped, tag = 'internal scratch']
  #allocation2 [shape = 'f32[32,32]{1,0:T(8,128)}', space=vmem, size = 0x4000, scoped, tag = 'scratch operand']
  %s0 = inlined_call_operand.vmem [shape: f32[32,32], index: 0, kind: input, shape index: {}]
  %s1 = inlined_call_operand.vmem [shape: bf16[32,32], index: 1, kind: input, shape index: {}]
  %s2 = inlined_call_operand.vmem [shape: f32[1,32], index: 2, kind: input, shape index: {}]
  %s3 = inlined_call_operand.vmem [shape: f32[32,32], index: 3, kind: input, shape index: {}]
  %s4 = inlined_call_operand.vmem [shape: f32[2,1,32], index: 4, kind: input, shape index: {}]
  %s5 = inlined_call_operand.vmem [shape: f32[2,1,32], index: 5, kind: input, shape index: {}]
  %s6 = inlined_call_operand.vmem [shape: bf16[2,32,96], index: 6, kind: input, shape index: {}]
  %s7 = inlined_call_operand.vmem [shape: f32[2,1,96], index: 7, kind: input, shape index: {}]
  %s8 = inlined_call_operand.vmem [shape: bf16[2,32,32], index: 8, kind: input, shape index: {}]
  %s9 = inlined_call_operand.vmem [shape: f32[2,1,32], index: 9, kind: input, shape index: {}]
  %s10 = inlined_call_operand.vmem [shape: f32[2,1,32], index: 10, kind: input, shape index: {}]
  %s11 = inlined_call_operand.vmem [shape: f32[2,1,32], index: 11, kind: input, shape index: {}]
  %s12 = inlined_call_operand.vmem [shape: bf16[2,32,64], index: 12, kind: input, shape index: {}]
  %s13 = inlined_call_operand.vmem [shape: f32[2,1,64], index: 13, kind: input, shape index: {}]
  %s14 = inlined_call_operand.vmem [shape: bf16[2,64,32], index: 14, kind: input, shape index: {}]
  %s15 = inlined_call_operand.vmem [shape: f32[2,1,32], index: 15, kind: input, shape index: {}]
  %s16 = inlined_call_operand.vmem [shape: f32[1,32], index: 16, kind: input, shape index: {}]
  %s17 = inlined_call_operand.vmem [shape: f32[1,32], index: 17, kind: input, shape index: {}]
  %s18 = inlined_call_operand.vmem [shape: f32[1,32], index: 18, kind: input, shape index: {}]
  %s19 = inlined_call_operand.vmem [shape: f32[1,32], index: 19, kind: input, shape index: {}]
  %s20 = inlined_call_operand.vmem [shape: bf16[32,48], index: 20, kind: input, shape index: {}]
  %s21 = inlined_call_operand.vmem [shape: f32[1,48], index: 21, kind: input, shape index: {}]
  %s22 = inlined_call_operand.hbm [shape: f32[32,48], index: 22, kind: output, shape index: {}]
  %s23 = sld [smem:[#allocation0]]
  $region129: #{_lambda_.5} parent=0
    _
  %s25 = ssub.s32 1, %s23
  %s26 = scalar_select 0, %s25, %s23
  $region1: #{_lambda_.5} parent=0
    #allocation3 [shape = 'u8[16384]{0}', space=vmem, size = 0x4000, scoped, tag = 'output window, operand 0, single buffered']
    #allocation4 [shape = 's32[2]{0}', space=sflag, size = 0x8, scoped, tag = 'scoped memory for _lambda_.5']
    %27 = vsyncpa [#allocation4], 0
    loop: start=0, step=1, limit=4
    $region2: #{_lambda_.5} parent=1 // loop_pre_header
      _
    $region3: #{_lambda_.5} parent=1 // loop_header
      %s29 = sphi 0, %s33
      %p30 = scmp.ge.s32.totalorder %s29, 4
      %s37 = sphi 0, %s37
      %s39 = sphi 0, %s37
      %s40 = sphi 0, %s39
      %s54 = sphi 0, %s40
      %s58 = sphi 0, %s58
      %s60 = sphi 0, %s58
      %s61 = sphi 0, %s60
      %s75 = sphi 0, %s61
      %s79 = sphi 0, %s79
      %s81 = sphi 0, %s79
      %s82 = sphi 0, %s81
      %s96 = sphi 0, %s82
      %s100 = sphi 0, %s100
      %s102 = sphi 0, %s100
      %s103 = sphi 0, %s102
      %s117 = sphi 0, %s103
      %s123 = sphi 0, %s125
      %s126 = sphi 0, %s123
      %s127 = sphi 0, %s126
      %s143 = sphi 0, %s127
      %s149 = sphi 0, %s151
      %s152 = sphi 0, %s149
      %s153 = sphi 0, %s152
      %s169 = sphi 0, %s153
      %s175 = sphi 0, %s177
      %s178 = sphi 0, %s175
      %s179 = sphi 0, %s178
      %s195 = sphi 0, %s179
      %s201 = sphi 0, %s203
      %s204 = sphi 0, %s201
      %s205 = sphi 0, %s204
      %s221 = sphi 0, %s205
      %s227 = sphi 0, %s229
      %s230 = sphi 0, %s227
      %s231 = sphi 0, %s230
      %s247 = sphi 0, %s231
      %s253 = sphi 0, %s255
      %s256 = sphi 0, %s253
      %s257 = sphi 0, %s256
      %s273 = sphi 0, %s257
      %s279 = sphi 0, %s281
      %s282 = sphi 0, %s279
      %s283 = sphi 0, %s282
      %s299 = sphi 0, %s283
      %s305 = sphi 0, %s307
      %s308 = sphi 0, %s305
      %s309 = sphi 0, %s308
      %s325 = sphi 0, %s309
      %s331 = sphi 0, %s333
      %s334 = sphi 0, %s331
      %s335 = sphi 0, %s334
      %s351 = sphi 0, %s335
      %s357 = sphi 0, %s359
      %s360 = sphi 0, %s357
      %s361 = sphi 0, %s360
      %s377 = sphi 0, %s361
      %s383 = sphi 0, %s385
      %s386 = sphi 0, %s383
      %s387 = sphi 0, %s386
      %s403 = sphi 0, %s387
      %s409 = sphi 0, %s411
      %s412 = sphi 0, %s409
      %s413 = sphi 0, %s412
      %s429 = sphi 0, %s413
      %s433 = sphi 0, %s433
      %s435 = sphi 0, %s433
      %s436 = sphi 0, %s435
      %s450 = sphi 0, %s436
      %s454 = sphi 0, %s454
      %s456 = sphi 0, %s454
      %s457 = sphi 0, %s456
      %s471 = sphi 0, %s457
      %s475 = sphi 0, %s475
      %s477 = sphi 0, %s475
      %s478 = sphi 0, %s477
      %s492 = sphi 0, %s478
      %s496 = sphi 0, %s496
      %s498 = sphi 0, %s496
      %s499 = sphi 0, %s498
      %s513 = sphi 0, %s499
      %s517 = sphi 0, %s517
      %s519 = sphi 0, %s517
      %s520 = sphi 0, %s519
      %s534 = sphi 0, %s520
      %s538 = sphi 0, %s538
      %s540 = sphi 0, %s538
      %s541 = sphi 0, %s540
      %s555 = sphi 0, %s541
      %s559 = sphi 0, %s559
      %s561 = sphi 0, %s559
      %s562 = sphi 0, %s561
      %s576 = sphi 0, %s562
    $region4: #{_lambda_.5} parent=1 // loop_header_branch
      %32 = sbr.rel (%p30) target = $region8
    $region5: #{_lambda_.5} parent=1 // loop_body
      %s34 = ssub.s32 %s29, 1
      %s35 = ssub.s32 %s29, 2
      %s36 = sadd.s32 %s29, 1
      %s38 = sadd.s32 %s37, 1
      %p41 = scmp.eq.s32.totalorder %s29, 1
      %p42 = scmp.ne.s32.totalorder %s37, %s39
      %p43 = scmp.eq.s32.totalorder %s29, 0
      %p44 = por %p42, %p43
      %p45 = scmp.ne.s32.totalorder %s37, %s39
      %p46 = scmp.eq.s32.totalorder %s34, 1
      %p47 = por %p45, %p46
      %p48 = scmp.ne.s32.totalorder %s39, %s40
      %p49 = scmp.eq.s32.totalorder %s34, 0
      %p50 = por %p48, %p49
      %p51 = scmp.ne.s32.totalorder %s39, %s40
      %p52 = scmp.eq.s32.totalorder %s35, 1
      %p53 = por %p51, %p52
      %p55 = scmp.ne.s32.totalorder %s40, %s54
      %p56 = scmp.eq.s32.totalorder %s35, 0
      %p57 = por %p55, %p56
      %s59 = sadd.s32 %s58, 1
      %p62 = scmp.eq.s32.totalorder %s29, 1
      %p63 = scmp.ne.s32.totalorder %s58, %s60
      %p64 = scmp.eq.s32.totalorder %s29, 0
      %p65 = por %p63, %p64
      %p66 = scmp.ne.s32.totalorder %s58, %s60
      %p67 = scmp.eq.s32.totalorder %s34, 1
      %p68 = por %p66, %p67
      %p69 = scmp.ne.s32.totalorder %s60, %s61
      %p70 = scmp.eq.s32.totalorder %s34, 0
      %p71 = por %p69, %p70
      %p72 = scmp.ne.s32.totalorder %s60, %s61
      %p73 = scmp.eq.s32.totalorder %s35, 1
      %p74 = por %p72, %p73
      %p76 = scmp.ne.s32.totalorder %s61, %s75
      %p77 = scmp.eq.s32.totalorder %s35, 0
      %p78 = por %p76, %p77
      %s80 = sadd.s32 %s79, 1
      %p83 = scmp.eq.s32.totalorder %s29, 1
      %p84 = scmp.ne.s32.totalorder %s79, %s81
      %p85 = scmp.eq.s32.totalorder %s29, 0
      %p86 = por %p84, %p85
      %p87 = scmp.ne.s32.totalorder %s79, %s81
      %p88 = scmp.eq.s32.totalorder %s34, 1
      %p89 = por %p87, %p88
      %p90 = scmp.ne.s32.totalorder %s81, %s82
      %p91 = scmp.eq.s32.totalorder %s34, 0
      %p92 = por %p90, %p91
      %p93 = scmp.ne.s32.totalorder %s81, %s82
      %p94 = scmp.eq.s32.totalorder %s35, 1
      %p95 = por %p93, %p94
      %p97 = scmp.ne.s32.totalorder %s82, %s96
      %p98 = scmp.eq.s32.totalorder %s35, 0
      %p99 = por %p97, %p98
      %s101 = sadd.s32 %s100, 1
      %p104 = scmp.eq.s32.totalorder %s29, 1
      %p105 = scmp.ne.s32.totalorder %s100, %s102
      %p106 = scmp.eq.s32.totalorder %s29, 0
      %p107 = por %p105, %p106
      %p108 = scmp.ne.s32.totalorder %s100, %s102
      %p109 = scmp.eq.s32.totalorder %s34, 1
      %p110 = por %p108, %p109
      %p111 = scmp.ne.s32.totalorder %s102, %s103
      %p112 = scmp.eq.s32.totalorder %s34, 0
      %p113 = por %p111, %p112
      %p114 = scmp.ne.s32.totalorder %s102, %s103
      %p115 = scmp.eq.s32.totalorder %s35, 1
      %p116 = por %p114, %p115
      %p118 = scmp.ne.s32.totalorder %s103, %s117
      %p119 = scmp.eq.s32.totalorder %s35, 0
      %p120 = por %p118, %p119
      %s121 = ssub.s32 %s29, %s36
      %p122 = scmp.eq.s32.totalorder %s121, 0
      %s124 = sadd.s32 %s123, 1
      %s125 = scalar_select %p122, %s123, %s124
      %p128 = pneg %p122
      %p129 = scmp.eq.s32.totalorder %s29, 1
      %p130 = por %p128, %p129
      %p131 = scmp.ne.s32.totalorder %s123, %s126
      %p132 = scmp.eq.s32.totalorder %s29, 0
      %p133 = por %p131, %p132
      %p134 = scmp.ne.s32.totalorder %s123, %s126
      %p135 = scmp.eq.s32.totalorder %s34, 1
      %p136 = por %p134, %p135
      %p137 = scmp.ne.s32.totalorder %s126, %s127
      %p138 = scmp.eq.s32.totalorder %s34, 0
      %p139 = por %p137, %p138
      %p140 = scmp.ne.s32.totalorder %s126, %s127
      %p141 = scmp.eq.s32.totalorder %s35, 1
      %p142 = por %p140, %p141
      %p144 = scmp.ne.s32.totalorder %s127, %s143
      %p145 = scmp.eq.s32.totalorder %s35, 0
      %p146 = por %p144, %p145
      %s147 = ssub.s32 %s29, %s36
      %p148 = scmp.eq.s32.totalorder %s147, 0
      %s150 = sadd.s32 %s149, 1
      %s151 = scalar_select %p148, %s149, %s150
      %p154 = pneg %p148
      %p155 = scmp.eq.s32.totalorder %s29, 1
      %p156 = por %p154, %p155
      %p157 = scmp.ne.s32.totalorder %s149, %s152
      %p158 = scmp.eq.s32.totalorder %s29, 0
      %p159 = por %p157, %p158
      %p160 = scmp.ne.s32.totalorder %s149, %s152
      %p161 = scmp.eq.s32.totalorder %s34, 1
      %p162 = por %p160, %p161
      %p163 = scmp.ne.s32.totalorder %s152, %s153
      %p164 = scmp.eq.s32.totalorder %s34, 0
      %p165 = por %p163, %p164
      %p166 = scmp.ne.s32.totalorder %s152, %s153
      %p167 = scmp.eq.s32.totalorder %s35, 1
      %p168 = por %p166, %p167
      %p170 = scmp.ne.s32.totalorder %s153, %s169
      %p171 = scmp.eq.s32.totalorder %s35, 0
      %p172 = por %p170, %p171
      %s173 = ssub.s32 %s29, %s36
      %p174 = scmp.eq.s32.totalorder %s173, 0
      %s176 = sadd.s32 %s175, 1
      %s177 = scalar_select %p174, %s175, %s176
      %p180 = pneg %p174
      %p181 = scmp.eq.s32.totalorder %s29, 1
      %p182 = por %p180, %p181
      %p183 = scmp.ne.s32.totalorder %s175, %s178
      %p184 = scmp.eq.s32.totalorder %s29, 0
      %p185 = por %p183, %p184
      %p186 = scmp.ne.s32.totalorder %s175, %s178
      %p187 = scmp.eq.s32.totalorder %s34, 1
      %p188 = por %p186, %p187
      %p189 = scmp.ne.s32.totalorder %s178, %s179
      %p190 = scmp.eq.s32.totalorder %s34, 0
      %p191 = por %p189, %p190
      %p192 = scmp.ne.s32.totalorder %s178, %s179
      %p193 = scmp.eq.s32.totalorder %s35, 1
      %p194 = por %p192, %p193
      %p196 = scmp.ne.s32.totalorder %s179, %s195
      %p197 = scmp.eq.s32.totalorder %s35, 0
      %p198 = por %p196, %p197
      %s199 = ssub.s32 %s29, %s36
      %p200 = scmp.eq.s32.totalorder %s199, 0
      %s202 = sadd.s32 %s201, 1
      %s203 = scalar_select %p200, %s201, %s202
      %p206 = pneg %p200
      %p207 = scmp.eq.s32.totalorder %s29, 1
      %p208 = por %p206, %p207
      %p209 = scmp.ne.s32.totalorder %s201, %s204
      %p210 = scmp.eq.s32.totalorder %s29, 0
      %p211 = por %p209, %p210
      %p212 = scmp.ne.s32.totalorder %s201, %s204
      %p213 = scmp.eq.s32.totalorder %s34, 1
      %p214 = por %p212, %p213
      %p215 = scmp.ne.s32.totalorder %s204, %s205
      %p216 = scmp.eq.s32.totalorder %s34, 0
      %p217 = por %p215, %p216
      %p218 = scmp.ne.s32.totalorder %s204, %s205
      %p219 = scmp.eq.s32.totalorder %s35, 1
      %p220 = por %p218, %p219
      %p222 = scmp.ne.s32.totalorder %s205, %s221
      %p223 = scmp.eq.s32.totalorder %s35, 0
      %p224 = por %p222, %p223
      %s225 = ssub.s32 %s29, %s36
      %p226 = scmp.eq.s32.totalorder %s225, 0
      %s228 = sadd.s32 %s227, 1
      %s229 = scalar_select %p226, %s227, %s228
      %p232 = pneg %p226
      %p233 = scmp.eq.s32.totalorder %s29, 1
      %p234 = por %p232, %p233
      %p235 = scmp.ne.s32.totalorder %s227, %s230
      %p236 = scmp.eq.s32.totalorder %s29, 0
      %p237 = por %p235, %p236
      %p238 = scmp.ne.s32.totalorder %s227, %s230
      %p239 = scmp.eq.s32.totalorder %s34, 1
      %p240 = por %p238, %p239
      %p241 = scmp.ne.s32.totalorder %s230, %s231
      %p242 = scmp.eq.s32.totalorder %s34, 0
      %p243 = por %p241, %p242
      %p244 = scmp.ne.s32.totalorder %s230, %s231
      %p245 = scmp.eq.s32.totalorder %s35, 1
      %p246 = por %p244, %p245
      %p248 = scmp.ne.s32.totalorder %s231, %s247
      %p249 = scmp.eq.s32.totalorder %s35, 0
      %p250 = por %p248, %p249
      %s251 = ssub.s32 %s29, %s36
      %p252 = scmp.eq.s32.totalorder %s251, 0
      %s254 = sadd.s32 %s253, 1
      %s255 = scalar_select %p252, %s253, %s254
      %p258 = pneg %p252
      %p259 = scmp.eq.s32.totalorder %s29, 1
      %p260 = por %p258, %p259
      %p261 = scmp.ne.s32.totalorder %s253, %s256
      %p262 = scmp.eq.s32.totalorder %s29, 0
      %p263 = por %p261, %p262
      %p264 = scmp.ne.s32.totalorder %s253, %s256
      %p265 = scmp.eq.s32.totalorder %s34, 1
      %p266 = por %p264, %p265
      %p267 = scmp.ne.s32.totalorder %s256, %s257
      %p268 = scmp.eq.s32.totalorder %s34, 0
      %p269 = por %p267, %p268
      %p270 = scmp.ne.s32.totalorder %s256, %s257
      %p271 = scmp.eq.s32.totalorder %s35, 1
      %p272 = por %p270, %p271
      %p274 = scmp.ne.s32.totalorder %s257, %s273
      %p275 = scmp.eq.s32.totalorder %s35, 0
      %p276 = por %p274, %p275
      %s277 = ssub.s32 %s29, %s36
      %p278 = scmp.eq.s32.totalorder %s277, 0
      %s280 = sadd.s32 %s279, 1
      %s281 = scalar_select %p278, %s279, %s280
      %p284 = pneg %p278
      %p285 = scmp.eq.s32.totalorder %s29, 1
      %p286 = por %p284, %p285
      %p287 = scmp.ne.s32.totalorder %s279, %s282
      %p288 = scmp.eq.s32.totalorder %s29, 0
      %p289 = por %p287, %p288
      %p290 = scmp.ne.s32.totalorder %s279, %s282
      %p291 = scmp.eq.s32.totalorder %s34, 1
      %p292 = por %p290, %p291
      %p293 = scmp.ne.s32.totalorder %s282, %s283
      %p294 = scmp.eq.s32.totalorder %s34, 0
      %p295 = por %p293, %p294
      %p296 = scmp.ne.s32.totalorder %s282, %s283
      %p297 = scmp.eq.s32.totalorder %s35, 1
      %p298 = por %p296, %p297
      %p300 = scmp.ne.s32.totalorder %s283, %s299
      %p301 = scmp.eq.s32.totalorder %s35, 0
      %p302 = por %p300, %p301
      %s303 = ssub.s32 %s29, %s36
      %p304 = scmp.eq.s32.totalorder %s303, 0
      %s306 = sadd.s32 %s305, 1
      %s307 = scalar_select %p304, %s305, %s306
      %p310 = pneg %p304
      %p311 = scmp.eq.s32.totalorder %s29, 1
      %p312 = por %p310, %p311
      %p313 = scmp.ne.s32.totalorder %s305, %s308
      %p314 = scmp.eq.s32.totalorder %s29, 0
      %p315 = por %p313, %p314
      %p316 = scmp.ne.s32.totalorder %s305, %s308
      %p317 = scmp.eq.s32.totalorder %s34, 1
      %p318 = por %p316, %p317
      %p319 = scmp.ne.s32.totalorder %s308, %s309
      %p320 = scmp.eq.s32.totalorder %s34, 0
      %p321 = por %p319, %p320
      %p322 = scmp.ne.s32.totalorder %s308, %s309
      %p323 = scmp.eq.s32.totalorder %s35, 1
      %p324 = por %p322, %p323
      %p326 = scmp.ne.s32.totalorder %s309, %s325
      %p327 = scmp.eq.s32.totalorder %s35, 0
      %p328 = por %p326, %p327
      %s329 = ssub.s32 %s29, %s36
      %p330 = scmp.eq.s32.totalorder %s329, 0
      %s332 = sadd.s32 %s331, 1
      %s333 = scalar_select %p330, %s331, %s332
      %p336 = pneg %p330
      %p337 = scmp.eq.s32.totalorder %s29, 1
      %p338 = por %p336, %p337
      %p339 = scmp.ne.s32.totalorder %s331, %s334
      %p340 = scmp.eq.s32.totalorder %s29, 0
      %p341 = por %p339, %p340
      %p342 = scmp.ne.s32.totalorder %s331, %s334
      %p343 = scmp.eq.s32.totalorder %s34, 1
      %p344 = por %p342, %p343
      %p345 = scmp.ne.s32.totalorder %s334, %s335
      %p346 = scmp.eq.s32.totalorder %s34, 0
      %p347 = por %p345, %p346
      %p348 = scmp.ne.s32.totalorder %s334, %s335
      %p349 = scmp.eq.s32.totalorder %s35, 1
      %p350 = por %p348, %p349
      %p352 = scmp.ne.s32.totalorder %s335, %s351
      %p353 = scmp.eq.s32.totalorder %s35, 0
      %p354 = por %p352, %p353
      %s355 = ssub.s32 %s29, %s36
      %p356 = scmp.eq.s32.totalorder %s355, 0
      %s358 = sadd.s32 %s357, 1
      %s359 = scalar_select %p356, %s357, %s358
      %p362 = pneg %p356
      %p363 = scmp.eq.s32.totalorder %s29, 1
      %p364 = por %p362, %p363
      %p365 = scmp.ne.s32.totalorder %s357, %s360
      %p366 = scmp.eq.s32.totalorder %s29, 0
      %p367 = por %p365, %p366
      %p368 = scmp.ne.s32.totalorder %s357, %s360
      %p369 = scmp.eq.s32.totalorder %s34, 1
      %p370 = por %p368, %p369
      %p371 = scmp.ne.s32.totalorder %s360, %s361
      %p372 = scmp.eq.s32.totalorder %s34, 0
      %p373 = por %p371, %p372
      %p374 = scmp.ne.s32.totalorder %s360, %s361
      %p375 = scmp.eq.s32.totalorder %s35, 1
      %p376 = por %p374, %p375
      %p378 = scmp.ne.s32.totalorder %s361, %s377
      %p379 = scmp.eq.s32.totalorder %s35, 0
      %p380 = por %p378, %p379
      %s381 = ssub.s32 %s29, %s36
      %p382 = scmp.eq.s32.totalorder %s381, 0
      %s384 = sadd.s32 %s383, 1
      %s385 = scalar_select %p382, %s383, %s384
      %p388 = pneg %p382
      %p389 = scmp.eq.s32.totalorder %s29, 1
      %p390 = por %p388, %p389
      %p391 = scmp.ne.s32.totalorder %s383, %s386
      %p392 = scmp.eq.s32.totalorder %s29, 0
      %p393 = por %p391, %p392
      %p394 = scmp.ne.s32.totalorder %s383, %s386
      %p395 = scmp.eq.s32.totalorder %s34, 1
      %p396 = por %p394, %p395
      %p397 = scmp.ne.s32.totalorder %s386, %s387
      %p398 = scmp.eq.s32.totalorder %s34, 0
      %p399 = por %p397, %p398
      %p400 = scmp.ne.s32.totalorder %s386, %s387
      %p401 = scmp.eq.s32.totalorder %s35, 1
      %p402 = por %p400, %p401
      %p404 = scmp.ne.s32.totalorder %s387, %s403
      %p405 = scmp.eq.s32.totalorder %s35, 0
      %p406 = por %p404, %p405
      %s407 = ssub.s32 %s29, %s36
      %p408 = scmp.eq.s32.totalorder %s407, 0
      %s410 = sadd.s32 %s409, 1
      %s411 = scalar_select %p408, %s409, %s410
      %p414 = pneg %p408
      %p415 = scmp.eq.s32.totalorder %s29, 1
      %p416 = por %p414, %p415
      %p417 = scmp.ne.s32.totalorder %s409, %s412
      %p418 = scmp.eq.s32.totalorder %s29, 0
      %p419 = por %p417, %p418
      %p420 = scmp.ne.s32.totalorder %s409, %s412
      %p421 = scmp.eq.s32.totalorder %s34, 1
      %p422 = por %p420, %p421
      %p423 = scmp.ne.s32.totalorder %s412, %s413
      %p424 = scmp.eq.s32.totalorder %s34, 0
      %p425 = por %p423, %p424
      %p426 = scmp.ne.s32.totalorder %s412, %s413
      %p427 = scmp.eq.s32.totalorder %s35, 1
      %p428 = por %p426, %p427
      %p430 = scmp.ne.s32.totalorder %s413, %s429
      %p431 = scmp.eq.s32.totalorder %s35, 0
      %p432 = por %p430, %p431
      %s434 = sadd.s32 %s433, 1
      %p437 = scmp.eq.s32.totalorder %s29, 1
      %p438 = scmp.ne.s32.totalorder %s433, %s435
      %p439 = scmp.eq.s32.totalorder %s29, 0
      %p440 = por %p438, %p439
      %p441 = scmp.ne.s32.totalorder %s433, %s435
      %p442 = scmp.eq.s32.totalorder %s34, 1
      %p443 = por %p441, %p442
      %p444 = scmp.ne.s32.totalorder %s435, %s436
      %p445 = scmp.eq.s32.totalorder %s34, 0
      %p446 = por %p444, %p445
      %p447 = scmp.ne.s32.totalorder %s435, %s436
      %p448 = scmp.eq.s32.totalorder %s35, 1
      %p449 = por %p447, %p448
      %p451 = scmp.ne.s32.totalorder %s436, %s450
      %p452 = scmp.eq.s32.totalorder %s35, 0
      %p453 = por %p451, %p452
      %s455 = sadd.s32 %s454, 1
      %p458 = scmp.eq.s32.totalorder %s29, 1
      %p459 = scmp.ne.s32.totalorder %s454, %s456
      %p460 = scmp.eq.s32.totalorder %s29, 0
      %p461 = por %p459, %p460
      %p462 = scmp.ne.s32.totalorder %s454, %s456
      %p463 = scmp.eq.s32.totalorder %s34, 1
      %p464 = por %p462, %p463
      %p465 = scmp.ne.s32.totalorder %s456, %s457
      %p466 = scmp.eq.s32.totalorder %s34, 0
      %p467 = por %p465, %p466
      %p468 = scmp.ne.s32.totalorder %s456, %s457
      %p469 = scmp.eq.s32.totalorder %s35, 1
      %p470 = por %p468, %p469
      %p472 = scmp.ne.s32.totalorder %s457, %s471
      %p473 = scmp.eq.s32.totalorder %s35, 0
      %p474 = por %p472, %p473
      %s476 = sadd.s32 %s475, 1
      %p479 = scmp.eq.s32.totalorder %s29, 1
      %p480 = scmp.ne.s32.totalorder %s475, %s477
      %p481 = scmp.eq.s32.totalorder %s29, 0
      %p482 = por %p480, %p481
      %p483 = scmp.ne.s32.totalorder %s475, %s477
      %p484 = scmp.eq.s32.totalorder %s34, 1
      %p485 = por %p483, %p484
      %p486 = scmp.ne.s32.totalorder %s477, %s478
      %p487 = scmp.eq.s32.totalorder %s34, 0
      %p488 = por %p486, %p487
      %p489 = scmp.ne.s32.totalorder %s477, %s478
      %p490 = scmp.eq.s32.totalorder %s35, 1
      %p491 = por %p489, %p490
      %p493 = scmp.ne.s32.totalorder %s478, %s492
      %p494 = scmp.eq.s32.totalorder %s35, 0
      %p495 = por %p493, %p494
      %s497 = sadd.s32 %s496, 1
      %p500 = scmp.eq.s32.totalorder %s29, 1
      %p501 = scmp.ne.s32.totalorder %s496, %s498
      %p502 = scmp.eq.s32.totalorder %s29, 0
      %p503 = por %p501, %p502
      %p504 = scmp.ne.s32.totalorder %s496, %s498
      %p505 = scmp.eq.s32.totalorder %s34, 1
      %p506 = por %p504, %p505
      %p507 = scmp.ne.s32.totalorder %s498, %s499
      %p508 = scmp.eq.s32.totalorder %s34, 0
      %p509 = por %p507, %p508
      %p510 = scmp.ne.s32.totalorder %s498, %s499
      %p511 = scmp.eq.s32.totalorder %s35, 1
      %p512 = por %p510, %p511
      %p514 = scmp.ne.s32.totalorder %s499, %s513
      %p515 = scmp.eq.s32.totalorder %s35, 0
      %p516 = por %p514, %p515
      %s518 = sadd.s32 %s517, 1
      %p521 = scmp.eq.s32.totalorder %s29, 1
      %p522 = scmp.ne.s32.totalorder %s517, %s519
      %p523 = scmp.eq.s32.totalorder %s29, 0
      %p524 = por %p522, %p523
      %p525 = scmp.ne.s32.totalorder %s517, %s519
      %p526 = scmp.eq.s32.totalorder %s34, 1
      %p527 = por %p525, %p526
      %p528 = scmp.ne.s32.totalorder %s519, %s520
      %p529 = scmp.eq.s32.totalorder %s34, 0
      %p530 = por %p528, %p529
      %p531 = scmp.ne.s32.totalorder %s519, %s520
      %p532 = scmp.eq.s32.totalorder %s35, 1
      %p533 = por %p531, %p532
      %p535 = scmp.ne.s32.totalorder %s520, %s534
      %p536 = scmp.eq.s32.totalorder %s35, 0
      %p537 = por %p535, %p536
      %s539 = sadd.s32 %s538, 1
      %p542 = scmp.eq.s32.totalorder %s29, 1
      %p543 = scmp.ne.s32.totalorder %s538, %s540
      %p544 = scmp.eq.s32.totalorder %s29, 0
      %p545 = por %p543, %p544
      %p546 = scmp.ne.s32.totalorder %s538, %s540
      %p547 = scmp.eq.s32.totalorder %s34, 1
      %p548 = por %p546, %p547
      %p549 = scmp.ne.s32.totalorder %s540, %s541
      %p550 = scmp.eq.s32.totalorder %s34, 0
      %p551 = por %p549, %p550
      %p552 = scmp.ne.s32.totalorder %s540, %s541
      %p553 = scmp.eq.s32.totalorder %s35, 1
      %p554 = por %p552, %p553
      %p556 = scmp.ne.s32.totalorder %s541, %s555
      %p557 = scmp.eq.s32.totalorder %s35, 0
      %p558 = por %p556, %p557
      %s560 = sadd.s32 %s559, 1
      %p563 = scmp.eq.s32.totalorder %s29, 1
      %p564 = scmp.ne.s32.totalorder %s559, %s561
      %p565 = scmp.eq.s32.totalorder %s29, 0
      %p566 = por %p564, %p565
      %p567 = scmp.ne.s32.totalorder %s559, %s561
      %p568 = scmp.eq.s32.totalorder %s34, 1
      %p569 = por %p567, %p568
      %p570 = scmp.ne.s32.totalorder %s561, %s562
      %p571 = scmp.eq.s32.totalorder %s34, 0
      %p572 = por %p570, %p571
      %p573 = scmp.ne.s32.totalorder %s561, %s562
      %p574 = scmp.eq.s32.totalorder %s35, 1
      %p575 = por %p573, %p574
      %p577 = scmp.ne.s32.totalorder %s562, %s576
      %p578 = scmp.eq.s32.totalorder %s35, 0
      %p579 = por %p577, %p578
      %p580 = scmp.le.s32.totalorder 1, %s29
      %p581 = scmp.lt.s32.totalorder %s29, 3
      %p582 = pnand %p580, %p581
      %p583 = pneg %p582
      // Predicated region
      $region9: #{_lambda_.5} parent=5 // pred_check
        _
      $region10: #{_lambda_.5} parent=5 // pred_check_branch
        %585 = sbr.rel (%p582) target = $region12
      $region11: #{_lambda_.5} parent=5 // pred_region
        %s586 = ssub.s32 %s29, 1
        // Predicated region
        $region13: #{_lambda_.5} parent=11 // pred_check
          %p587 = pneg %p50
        $region14: #{_lambda_.5} parent=11 // pred_check_branch
          %589 = sbr.rel (%p587) target = $region16
        $region15: #{_lambda_.5} parent=11 // pred_region
          _
        $region16: #{_lambda_.5} parent=11 // pred_fallthru
          _
        // Predicated region
        $region17: #{_lambda_.5} parent=11 // pred_check
          %p590 = pneg %p71
        $region18: #{_lambda_.5} parent=11 // pred_check_branch
          %592 = sbr.rel (%p590) target = $region20
        $region19: #{_lambda_.5} parent=11 // pred_region
          _
        $region20: #{_lambda_.5} parent=11 // pred_fallthru
          _
        // Predicated region
        $region21: #{_lambda_.5} parent=11 // pred_check
          %p593 = pneg %p92
        $region22: #{_lambda_.5} parent=11 // pred_check_branch
          %595 = sbr.rel (%p593) target = $region24
        $region23: #{_lambda_.5} parent=11 // pred_region
          _
        $region24: #{_lambda_.5} parent=11 // pred_fallthru
          _
        // Predicated region
        $region25: #{_lambda_.5} parent=11 // pred_check
          %p596 = pneg %p113
        $region26: #{_lambda_.5} parent=11 // pred_check_branch
          %598 = sbr.rel (%p596) target = $region28
        $region27: #{_lambda_.5} parent=11 // pred_region
          _
        $region28: #{_lambda_.5} parent=11 // pred_fallthru
          _
        // Predicated region
        $region29: #{_lambda_.5} parent=11 // pred_check
          %p599 = pneg %p446
        $region30: #{_lambda_.5} parent=11 // pred_check_branch
          %601 = sbr.rel (%p599) target = $region32
        $region31: #{_lambda_.5} parent=11 // pred_region
          _
        $region32: #{_lambda_.5} parent=11 // pred_fallthru
          _
        // Predicated region
        $region33: #{_lambda_.5} parent=11 // pred_check
          %p602 = pneg %p467
        $region34: #{_lambda_.5} parent=11 // pred_check_branch
          %604 = sbr.rel (%p602) target = $region36
        $region35: #{_lambda_.5} parent=11 // pred_region
          _
        $region36: #{_lambda_.5} parent=11 // pred_fallthru
          _
        // Predicated region
        $region37: #{_lambda_.5} parent=11 // pred_check
          %p605 = pneg %p488
        $region38: #{_lambda_.5} parent=11 // pred_check_branch
          %607 = sbr.rel (%p605) target = $region40
        $region39: #{_lambda_.5} parent=11 // pred_region
          _
        $region40: #{_lambda_.5} parent=11 // pred_fallthru
          _
        // Predicated region
        $region41: #{_lambda_.5} parent=11 // pred_check
          %p608 = pneg %p509
        $region42: #{_lambda_.5} parent=11 // pred_check_branch
          %610 = sbr.rel (%p608) target = $region44
        $region43: #{_lambda_.5} parent=11 // pred_region
          _
        $region44: #{_lambda_.5} parent=11 // pred_fallthru
          _
        // Predicated region
        $region45: #{_lambda_.5} parent=11 // pred_check
          %p611 = pneg %p530
        $region46: #{_lambda_.5} parent=11 // pred_check_branch
          %613 = sbr.rel (%p611) target = $region48
        $region47: #{_lambda_.5} parent=11 // pred_region
          _
        $region48: #{_lambda_.5} parent=11 // pred_fallthru
          _
        // Predicated region
        $region49: #{_lambda_.5} parent=11 // pred_check
          %p614 = pneg %p551
        $region50: #{_lambda_.5} parent=11 // pred_check_branch
          %616 = sbr.rel (%p614) target = $region52
        $region51: #{_lambda_.5} parent=11 // pred_region
          _
        $region52: #{_lambda_.5} parent=11 // pred_fallthru
          _
      $region12: #{_lambda_.5} parent=5 // pred_fallthru
        _
      %p617 = scmp.lt.s32.totalorder %s29, 2
      // Predicated region
      $region53: #{_lambda_.5} parent=5 // pred_check
        %p618 = pneg %p617
      $region54: #{_lambda_.5} parent=5 // pred_check_branch
        %620 = sbr.rel (%p618) target = $region56
      $region55: #{_lambda_.5} parent=5 // pred_region
        // Predicated region
        $region57: #{_lambda_.5} parent=55 // pred_check
          %p621 = pneg %p133
        $region58: #{_lambda_.5} parent=55 // pred_check_branch
          %623 = sbr.rel (%p621) target = $region60
        $region59: #{_lambda_.5} parent=55 // pred_region
          %p624 = scmp.lt.s32.totalorder %s29, 1
          %s625 = scalar_select %p624, %s29, 1
          %s626 = scalar_lea.vmem %s4, %s625
        $region60: #{_lambda_.5} parent=55 // pred_fallthru
          _
        // Predicated region
        $region61: #{_lambda_.5} parent=55 // pred_check
          %p627 = pneg %p159
        $region62: #{_lambda_.5} parent=55 // pred_check_branch
          %629 = sbr.rel (%p627) target = $region64
        $region63: #{_lambda_.5} parent=55 // pred_region
          %p630 = scmp.lt.s32.totalorder %s29, 1
          %s631 = scalar_select %p630, %s29, 1
          %s632 = scalar_lea.vmem %s5, %s631
        $region64: #{_lambda_.5} parent=55 // pred_fallthru
          _
        // Predicated region
        $region65: #{_lambda_.5} parent=55 // pred_check
          %p633 = pneg %p185
        $region66: #{_lambda_.5} parent=55 // pred_check_branch
          %635 = sbr.rel (%p633) target = $region68
        $region67: #{_lambda_.5} parent=55 // pred_region
          %p636 = scmp.lt.s32.totalorder %s29, 1
          %s637 = scalar_select %p636, %s29, 1
          %s638 = smul.addr %s637, 4
          %s639 = smul.addr %s638, 4
          %s640 = scalar_lea.vmem %s6, %s639
        $region68: #{_lambda_.5} parent=55 // pred_fallthru
          _
        // Predicated region
        $region69: #{_lambda_.5} parent=55 // pred_check
          %p641 = pneg %p211
        $region70: #{_lambda_.5} parent=55 // pred_check_branch
          %643 = sbr.rel (%p641) target = $region72
        $region71: #{_lambda_.5} parent=55 // pred_region
          %p644 = scmp.lt.s32.totalorder %s29, 1
          %s645 = scalar_select %p644, %s29, 1
          %s646 = scalar_lea.vmem %s7, %s645
        $region72: #{_lambda_.5} parent=55 // pred_fallthru
          _
        // Predicated region
        $region73: #{_lambda_.5} parent=55 // pred_check
          %p647 = pneg %p237
        $region74: #{_lambda_.5} parent=55 // pred_check_branch
          %649 = sbr.rel (%p647) target = $region76
        $region75: #{_lambda_.5} parent=55 // pred_region
          %p650 = scmp.lt.s32.totalorder %s29, 1
          %s651 = scalar_select %p650, %s29, 1
          %s652 = smul.addr %s651, 4
          %s653 = smul.addr %s652, 4
          %s654 = scalar_lea.vmem %s8, %s653
        $region76: #{_lambda_.5} parent=55 // pred_fallthru
          _
        // Predicated region
        $region77: #{_lambda_.5} parent=55 // pred_check
          %p655 = pneg %p263
        $region78: #{_lambda_.5} parent=55 // pred_check_branch
          %657 = sbr.rel (%p655) target = $region80
        $region79: #{_lambda_.5} parent=55 // pred_region
          %p658 = scmp.lt.s32.totalorder %s29, 1
          %s659 = scalar_select %p658, %s29, 1
          %s660 = scalar_lea.vmem %s9, %s659
        $region80: #{_lambda_.5} parent=55 // pred_fallthru
          _
        // Predicated region
        $region81: #{_lambda_.5} parent=55 // pred_check
          %p661 = pneg %p289
        $region82: #{_lambda_.5} parent=55 // pred_check_branch
          %663 = sbr.rel (%p661) target = $region84
        $region83: #{_lambda_.5} parent=55 // pred_region
          %p664 = scmp.lt.s32.totalorder %s29, 1
          %s665 = scalar_select %p664, %s29, 1
          %s666 = scalar_lea.vmem %s10, %s665
        $region84: #{_lambda_.5} parent=55 // pred_fallthru
          _
        // Predicated region
        $region85: #{_lambda_.5} parent=55 // pred_check
          %p667 = pneg %p315
        $region86: #{_lambda_.5} parent=55 // pred_check_branch
          %669 = sbr.rel (%p667) target = $region88
        $region87: #{_lambda_.5} parent=55 // pred_region
          %p670 = scmp.lt.s32.totalorder %s29, 1
          %s671 = scalar_select %p670, %s29, 1
          %s672 = scalar_lea.vmem %s11, %s671
        $region88: #{_lambda_.5} parent=55 // pred_fallthru
          _
        // Predicated region
        $region89: #{_lambda_.5} parent=55 // pred_check
          %p673 = pneg %p341
        $region90: #{_lambda_.5} parent=55 // pred_check_branch
          %675 = sbr.rel (%p673) target = $region92
        $region91: #{_lambda_.5} parent=55 // pred_region
          %p676 = scmp.lt.s32.totalorder %s29, 1
          %s677 = scalar_select %p676, %s29, 1
          %s678 = smul.addr %s677, 4
          %s679 = smul.addr %s678, 4
          %s680 = scalar_lea.vmem %s12, %s679
        $region92: #{_lambda_.5} parent=55 // pred_fallthru
          _
        // Predicated region
        $region93: #{_lambda_.5} parent=55 // pred_check
          %p681 = pneg %p367
        $region94: #{_lambda_.5} parent=55 // pred_check_branch
          %683 = sbr.rel (%p681) target = $region96
        $region95: #{_lambda_.5} parent=55 // pred_region
          %p684 = scmp.lt.s32.totalorder %s29, 1
          %s685 = scalar_select %p684, %s29, 1
          %s686 = scalar_lea.vmem %s13, %s685
        $region96: #{_lambda_.5} parent=55 // pred_fallthru
          _
        // Predicated region
        $region97: #{_lambda_.5} parent=55 // pred_check
          %p687 = pneg %p393
        $region98: #{_lambda_.5} parent=55 // pred_check_branch
          %689 = sbr.rel (%p687) target = $region100
        $region99: #{_lambda_.5} parent=55 // pred_region
          %p690 = scmp.lt.s32.totalorder %s29, 1
          %s691 = scalar_select %p690, %s29, 1
          %s692 = smul.addr %s691, 8
          %s693 = smul.addr %s692, 4
          %s694 = scalar_lea.vmem %s14, %s693
        $region100: #{_lambda_.5} parent=55 // pred_fallthru
          _
        // Predicated region
        $region101: #{_lambda_.5} parent=55 // pred_check
          %p695 = pneg %p419
        $region102: #{_lambda_.5} parent=55 // pred_check_branch
          %697 = sbr.rel (%p695) target = $region104
        $region103: #{_lambda_.5} parent=55 // pred_region
          %p698 = scmp.lt.s32.totalorder %s29, 1
          %s699 = scalar_select %p698, %s29, 1
          %s700 = scalar_lea.vmem %s15, %s699
        $region104: #{_lambda_.5} parent=55 // pred_fallthru
          _
      $region56: #{_lambda_.5} parent=5 // pred_fallthru
        _
      %p701 = scmp.le.s32.totalorder 1, %s29
      %p702 = scmp.lt.s32.totalorder %s29, 3
      %p703 = pnand %p701, %p702
      %p704 = pneg %p703
      // Predicated region
      $region105: #{_lambda_.5} parent=5 // pred_check
        _
      $region106: #{_lambda_.5} parent=5 // pred_check_branch
        %706 = sbr.rel (%p703) target = $region108
      $region107: #{_lambda_.5} parent=5 // pred_region
        %s707 = ssub.s32 %s29, 1
        %p708 = pneg %p50
        %p709 = pneg %p47
        %p710 = pneg %p71
        %p711 = pneg %p68
        %p712 = pneg %p92
        %p713 = pneg %p89
        %p714 = pneg %p113
        %p715 = pneg %p110
        %p716 = scmp.lt.s32.totalorder %s34, 1
        %s717 = scalar_select %p716, %s34, 1
        %s718 = scalar_lea.vmem %s4, %s717
        %p719 = pneg %p139
        %p720 = pneg %p136
        %p721 = scmp.lt.s32.totalorder %s34, 1
        %s722 = scalar_select %p721, %s34, 1
        %s723 = scalar_lea.vmem %s5, %s722
        %p724 = pneg %p165
        %p725 = pneg %p162
        %p726 = scmp.lt.s32.totalorder %s34, 1
        %s727 = scalar_select %p726, %s34, 1
        %s728 = smul.addr %s727, 4
        %s729 = smul.addr %s728, 4
        %s730 = scalar_lea.vmem %s6, %s729
        %p731 = pneg %p191
        %p732 = pneg %p188
        %p733 = scmp.lt.s32.totalorder %s34, 1
        %s734 = scalar_select %p733, %s34, 1
        %s735 = scalar_lea.vmem %s7, %s734
        %p736 = pneg %p217
        %p737 = pneg %p214
        %p738 = scmp.lt.s32.totalorder %s34, 1
        %s739 = scalar_select %p738, %s34, 1
        %s740 = smul.addr %s739, 4
        %s741 = smul.addr %s740, 4
        %s742 = scalar_lea.vmem %s8, %s741
        %p743 = pneg %p243
        %p744 = pneg %p240
        %p745 = scmp.lt.s32.totalorder %s34, 1
        %s746 = scalar_select %p745, %s34, 1
        %s747 = scalar_lea.vmem %s9, %s746
        %p748 = pneg %p269
        %p749 = pneg %p266
        %p750 = scmp.lt.s32.totalorder %s34, 1
        %s751 = scalar_select %p750, %s34, 1
        %s752 = scalar_lea.vmem %s10, %s751
        %p753 = pneg %p295
        %p754 = pneg %p292
        %p755 = scmp.lt.s32.totalorder %s34, 1
        %s756 = scalar_select %p755, %s34, 1
        %s757 = scalar_lea.vmem %s11, %s756
        %p758 = pneg %p321
        %p759 = pneg %p318
        %p760 = scmp.lt.s32.totalorder %s34, 1
        %s761 = scalar_select %p760, %s34, 1
        %s762 = smul.addr %s761, 4
        %s763 = smul.addr %s762, 4
        %s764 = scalar_lea.vmem %s12, %s763
        %p765 = pneg %p347
        %p766 = pneg %p344
        %p767 = scmp.lt.s32.totalorder %s34, 1
        %s768 = scalar_select %p767, %s34, 1
        %s769 = scalar_lea.vmem %s13, %s768
        %p770 = pneg %p373
        %p771 = pneg %p370
        %p772 = scmp.lt.s32.totalorder %s34, 1
        %s773 = scalar_select %p772, %s34, 1
        %s774 = smul.addr %s773, 8
        %s775 = smul.addr %s774, 4
        %s776 = scalar_lea.vmem %s14, %s775
        %p777 = pneg %p399
        %p778 = pneg %p396
        %p779 = scmp.lt.s32.totalorder %s34, 1
        %s780 = scalar_select %p779, %s34, 1
        %s781 = scalar_lea.vmem %s15, %s780
        %p782 = pneg %p425
        %p783 = pneg %p422
        %p784 = pneg %p446
        %p785 = pneg %p443
        %p786 = pneg %p467
        %p787 = pneg %p464
        %p788 = pneg %p488
        %p789 = pneg %p485
        %p790 = pneg %p509
        %p791 = pneg %p506
        %p792 = pneg %p530
        %p793 = pneg %p527
        %p794 = pneg %p551
        %p795 = pneg %p548
        %p796 = pneg %p572
        %p797 = pneg %p569
        %p798 = scmp.lt.s32.totalorder %s34, 1
        %s799 = scalar_select %p798, %s34, 1
        %s800 = scalar_lea.vmem %s4, %s799
        %p801 = scmp.lt.s32.totalorder %s34, 1
        %s802 = scalar_select %p801, %s34, 1
        %s803 = scalar_lea.vmem %s5, %s802
        %p804 = scmp.lt.s32.totalorder %s34, 1
        %s805 = scalar_select %p804, %s34, 1
        %s806 = smul.addr %s805, 4
        %s807 = smul.addr %s806, 4
        %s808 = scalar_lea.vmem %s6, %s807
        %p809 = scmp.lt.s32.totalorder %s34, 1
        %s810 = scalar_select %p809, %s34, 1
        %s811 = scalar_lea.vmem %s7, %s810
        %p812 = scmp.lt.s32.totalorder %s34, 1
        %s813 = scalar_select %p812, %s34, 1
        %s814 = smul.addr %s813, 4
        %s815 = smul.addr %s814, 4
        %s816 = scalar_lea.vmem %s8, %s815
        %p817 = scmp.lt.s32.totalorder %s34, 1
        %s818 = scalar_select %p817, %s34, 1
        %s819 = scalar_lea.vmem %s9, %s818
        %p820 = scmp.lt.s32.totalorder %s34, 1
        %s821 = scalar_select %p820, %s34, 1
        %s822 = scalar_lea.vmem %s10, %s821
        %p823 = scmp.lt.s32.totalorder %s34, 1
        %s824 = scalar_select %p823, %s34, 1
        %s825 = scalar_lea.vmem %s11, %s824
        %p826 = scmp.lt.s32.totalorder %s34, 1
        %s827 = scalar_select %p826, %s34, 1
        %s828 = smul.addr %s827, 4
        %s829 = smul.addr %s828, 4
        %s830 = scalar_lea.vmem %s12, %s829
        %p831 = scmp.lt.s32.totalorder %s34, 1
        %s832 = scalar_select %p831, %s34, 1
        %s833 = scalar_lea.vmem %s13, %s832
        %p834 = scmp.lt.s32.totalorder %s34, 1
        %s835 = scalar_select %p834, %s34, 1
        %s836 = smul.addr %s835, 8
        %s837 = smul.addr %s836, 4
        %s838 = scalar_lea.vmem %s14, %s837
        %p839 = scmp.lt.s32.totalorder %s34, 1
        %s840 = scalar_select %p839, %s34, 1
        %s841 = scalar_lea.vmem %s15, %s840
        %p843 = scmp.eq.s32.totalorder %s34, 0
        // Predicated region
        $region109: #{_lambda_.5} parent=107 // pred_check
          %p844 = pneg %p843
        $region110: #{_lambda_.5} parent=107 // pred_check_branch
          %846 = sbr.rel (%p844) target = $region112
        $region111: #{_lambda_.5} parent=107 // pred_region
          %v847 = vld [vmem:[%s0] sm:$0xff]
          %v848 = vld [vmem:[%s0 + $0x8] sm:$0xff]
          %v849 = vld [vmem:[%s0 + $0x10] sm:$0xff]
          %v850 = vld [vmem:[%s0 + $0x18] sm:$0xff]
          %v851 = vpack.c.bf16 %v848, %v847
          %v852 = vpack.c.bf16 %v850, %v849
          %v853 = vld [vmem:[%s1] sm:$0xf]
          %v854 = vld [vmem:[%s1 + $0x4] sm:$0xf]
          %v855 = vld [vmem:[%s1 + $0x8] sm:$0xf]
          %v856 = vld [vmem:[%s1 + $0xc] sm:$0xf]
          %v857 = vld [vmem:[%s2] sm:$0x1]
          %v859 = vperm.slane %v857, 0
          %v865 = vunpack.c.l.b16 %v853
          %v866 = vunpack.c.l.b16 %v854
          %v867 = vunpack.c.l.b16 %v855
          %v868 = vunpack.c.l.b16 %v856
          %v869 = vpack.c.b16 %v866, %v865
          %v870 = vpack.c.b16 %v868, %v867
          %vm873 = vcmask 261120
          %v875 = vsel %vm873, %v851, 0
          %v878 = vsel %vm873, %v852, 0
          %880 = vmatpush.bf16.msra.mxu0 0
          %881 = vmatpush.bf16.msra.mxu0 0
          %882 = vmatpush.bf16.msra.mxu0 0
          %883 = vmatpush.bf16.msra.mxu0 0
          %884 = vmatpush.bf16.msra.mxu0 0
          %885 = vmatpush.bf16.msra.mxu0 0
          %886 = vmatpush.bf16.msra.mxu0 %v870
          %887 = vmatpush.bf16.msra.mxu0 %v869
          %888 = vmatmul.bf16.gmra.mxu0 %v875
          %v889 = vpop.f32.mrf.mxu0
          %v890 = vadd.f32 %v859, %v889
          %v891 = vpop.f32.mrf.mxu0
          %v892 = vadd.f32 %v859, %v891
          %893 = vmatmul.bf16.gmra.mxu0 %v878
          %v894 = vpop.f32.mrf.mxu0
          %v895 = vadd.f32 %v859, %v894
          %v896 = vpop.f32.mrf.mxu0
          %v897 = vadd.f32 %v859, %v896
          %898 = vdwg.mxu0
          %v899 = vld [vmem:[%s3] sm:$0xff]
          %v900 = vld [vmem:[%s3 + $0x8] sm:$0xff]
          %v901 = vld [vmem:[%s3 + $0x10] sm:$0xff]
          %v902 = vld [vmem:[%s3 + $0x18] sm:$0xff]
          %v903 = vadd.f32 %v890, %v899
          %v904 = vadd.f32 %v892, %v900
          %v905 = vadd.f32 %v895, %v901
          %v906 = vadd.f32 %v897, %v902
          %907 = vst.msk [vmem:[#allocation2] sm:$0xff] %vm873, %v903
          %908 = vst.msk [vmem:[#allocation2 + $0x8] sm:$0xff] %vm873, %v904
          %909 = vst.msk [vmem:[#allocation2 + $0x10] sm:$0xff] %vm873, %v905
          %910 = vst.msk [vmem:[#allocation2 + $0x18] sm:$0xff] %vm873, %v906
        $region112: #{_lambda_.5} parent=107 // pred_fallthru
          _
        %v911 = vld [vmem:[#allocation2] sm:$0xff]
        %v912 = vld [vmem:[#allocation2 + $0x8] sm:$0xff]
        %v913 = vld [vmem:[#allocation2 + $0x10] sm:$0xff]
        %v914 = vld [vmem:[#allocation2 + $0x18] sm:$0xff]
        %v915 = vld [vmem:[%s800] sm:$0x1]
        %v916 = vld [vmem:[%s803] sm:$0x1]
        %v917 = vld [vmem:[%s808] sm:$0xf]
        %v918 = vld [vmem:[%s808 + $0x4] sm:$0xf]
        %v919 = vld [vmem:[%s808 + $0x8] sm:$0xf]
        %v920 = vld [vmem:[%s808 + $0xc] sm:$0xf]
        %v921 = vld [vmem:[%s811] sm:$0x1]
        %v922 = vld [vmem:[%s816] sm:$0xf]
        %v923 = vld [vmem:[%s816 + $0x4] sm:$0xf]
        %v924 = vld [vmem:[%s816 + $0x8] sm:$0xf]
        %v925 = vld [vmem:[%s816 + $0xc] sm:$0xf]
        %v926 = vld [vmem:[%s819] sm:$0x1]
        %v927 = vld [vmem:[%s822] sm:$0x1]
        %v928 = vld [vmem:[%s825] sm:$0x1]
        %v929 = vld [vmem:[%s830] sm:$0xf]
        %v930 = vld [vmem:[%s830 + $0x4] sm:$0xf]
        %v931 = vld [vmem:[%s830 + $0x8] sm:$0xf]
        %v932 = vld [vmem:[%s830 + $0xc] sm:$0xf]
        %v933 = vld [vmem:[%s833] sm:$0x1]
        %v934 = vld [vmem:[%s838] sm:$0xf]
        %v935 = vld [vmem:[%s838 + $0x4] sm:$0xf]
        %v936 = vld [vmem:[%s838 + $0x8] sm:$0xf]
        %v937 = vld [vmem:[%s838 + $0xc] sm:$0xf]
        %v938 = vld [vmem:[%s838 + $0x10] sm:$0xf]
        %v939 = vld [vmem:[%s838 + $0x14] sm:$0xf]
        %v940 = vld [vmem:[%s838 + $0x18] sm:$0xf]
        %v941 = vld [vmem:[%s838 + $0x1c] sm:$0xf]
        %v942 = vld [vmem:[%s841] sm:$0x1]
        %vm943 = vcmask 261120
        %v944 = vsel %vm943, %v911, 0.0
        %945 = vadd.xlane.f32.xlu0 %v944
        %v946 = vpop.xlane.xlu0 %945
        %v947 = vsel %vm943, %v912, 0.0
        %948 = vadd.xlane.f32.xlu0 %v947
        %v949 = vpop.xlane.xlu0 %948
        %v950 = vsel %vm943, %v913, 0.0
        %951 = vadd.xlane.f32.xlu0 %v950
        %v952 = vpop.xlane.xlu0 %951
        %v953 = vsel %vm943, %v914, 0.0
        %954 = vadd.xlane.f32.xlu0 %v953
        %v955 = vpop.xlane.xlu0 %954
        %v956 = vrcp.pop 32.0
        %v957 = vmul.f32 32.0, %v956
        %v958 = vsub.f32 1.0, %v957
        %v959 = vmul.f32 %v956, %v958
        %v960 = vadd.f32 %v956, %v959
        %vm961 = vweird.f32 %v956
        %v962 = vsel %vm961, %v956, %v960
        %v963 = vmul.f32 %v946, %v962
        %v964 = vmul.f32 %v949, %v962
        %v965 = vmul.f32 %v952, %v962
        %v966 = vmul.f32 %v955, %v962
        %v967 = vsub.f32 %v911, %v963
        %v968 = vsub.f32 %v912, %v964
        %v969 = vsub.f32 %v913, %v965
        %v970 = vsub.f32 %v914, %v966
        %v971 = vmul.f32 %v967, %v967
        %v972 = vmul.f32 %v968, %v968
        %v973 = vmul.f32 %v969, %v969
        %v974 = vmul.f32 %v970, %v970
        %v975 = vsel %vm943, %v971, 0.0
        %976 = vadd.xlane.f32.xlu0 %v975
        %v977 = vpop.xlane.xlu0 %976
        %v978 = vsel %vm943, %v972, 0.0
        %979 = vadd.xlane.f32.xlu0 %v978
        %v980 = vpop.xlane.xlu0 %979
        %v981 = vsel %vm943, %v973, 0.0
        %982 = vadd.xlane.f32.xlu0 %v981
        %v983 = vpop.xlane.xlu0 %982
        %v984 = vsel %vm943, %v974, 0.0
        %985 = vadd.xlane.f32.xlu0 %v984
        %v986 = vpop.xlane.xlu0 %985
        %v987 = vmul.f32 %v977, %v962
        %v988 = vmul.f32 %v980, %v962
        %v989 = vmul.f32 %v983, %v962
        %v990 = vmul.f32 %v986, %v962
        %v991 = vadd.f32 %v987, 1e-06
        %v992 = vadd.f32 %v988, 1e-06
        %v993 = vadd.f32 %v989, 1e-06
        %v994 = vadd.f32 %v990, 1e-06
        %v995 = vrsqrt.pop %v991
        %v996 = vmul.f32 %v995, %v991
        %v997 = vmul.f32 %v996, %v995
        %v998 = vmul.f32 0.5, %v997
        %v999 = vsub.f32 1.5, %v998
        %v1000 = vmul.f32 %v995, %v999
        %vm1001 = vweird.f32 %v991
        %vm1002 = vweird.f32 %v995
        %vm1003 = vmor %vm1001, %vm1002
        %v1004 = vsel %vm1003, %v995, %v1000
        %v1005 = vrsqrt.pop %v992
        %v1006 = vmul.f32 %v1005, %v992
        %v1007 = vmul.f32 %v1006, %v1005
        %v1008 = vmul.f32 0.5, %v1007
        %v1009 = vsub.f32 1.5, %v1008
        %v1010 = vmul.f32 %v1005, %v1009
        %vm1011 = vweird.f32 %v992
        %vm1012 = vweird.f32 %v1005
        %vm1013 = vmor %vm1011, %vm1012
        %v1014 = vsel %vm1013, %v1005, %v1010
        %v1015 = vrsqrt.pop %v993
        %v1016 = vmul.f32 %v1015, %v993
        %v1017 = vmul.f32 %v1016, %v1015
        %v1018 = vmul.f32 0.5, %v1017
        %v1019 = vsub.f32 1.5, %v1018
        %v1020 = vmul.f32 %v1015, %v1019
        %vm1021 = vweird.f32 %v993
        %vm1022 = vweird.f32 %v1015
        %vm1023 = vmor %vm1021, %vm1022
        %v1024 = vsel %vm1023, %v1015, %v1020
        %v1025 = vrsqrt.pop %v994
        %v1026 = vmul.f32 %v1025, %v994
        %v1027 = vmul.f32 %v1026, %v1025
        %v1028 = vmul.f32 0.5, %v1027
        %v1029 = vsub.f32 1.5, %v1028
        %v1030 = vmul.f32 %v1025, %v1029
        %vm1031 = vweird.f32 %v994
        %vm1032 = vweird.f32 %v1025
        %vm1033 = vmor %vm1031, %vm1032
        %v1034 = vsel %vm1033, %v1025, %v1030
        %v1035 = vmul.f32 %v967, %v1004
        %v1036 = vmul.f32 %v968, %v1014
        %v1037 = vmul.f32 %v969, %v1024
        %v1038 = vmul.f32 %v970, %v1034
        %v1040 = vperm.slane %v915, 0
        %v1042 = vmul.f32 %v1035, %v1040
        %v1043 = vmul.f32 %v1036, %v1040
        %v1044 = vmul.f32 %v1037, %v1040
        %v1045 = vmul.f32 %v1038, %v1040
        %v1047 = vperm.slane %v916, 0
        %v1049 = vadd.f32 %v1042, %v1047
        %v1050 = vadd.f32 %v1043, %v1047
        %v1051 = vadd.f32 %v1044, %v1047
        %v1052 = vadd.f32 %v1045, %v1047
        %v1053 = vpack.c.bf16 %v1050, %v1049
        %v1054 = vpack.c.bf16 %v1052, %v1051
        %v1056 = vperm.slane %v921, 0
        %v1062 = vunpack.c.l.b16 %v917
        %v1063 = vunpack.c.l.b16 %v918
        %v1064 = vunpack.c.l.b16 %v919
        %v1065 = vunpack.c.l.b16 %v920
        %v1066 = vpack.c.b16 %v1063, %v1062
        %v1067 = vpack.c.b16 %v1065, %v1064
        %v1071 = vsel %vm943, %v1053, 0
        %v1074 = vsel %vm943, %v1054, 0
        %1076 = vmatpush.bf16.msra.mxu0 0
        %1077 = vmatpush.bf16.msra.mxu0 0
        %1078 = vmatpush.bf16.msra.mxu0 0
        %1079 = vmatpush.bf16.msra.mxu0 0
        %1080 = vmatpush.bf16.msra.mxu0 0
        %1081 = vmatpush.bf16.msra.mxu0 0
        %1082 = vmatpush.bf16.msra.mxu0 %v1067
        %1083 = vmatpush.bf16.msra.mxu0 %v1066
        %1084 = vmatmul.bf16.gmra.mxu0 %v1071
        %v1085 = vpop.f32.mrf.mxu0
        %v1086 = vadd.f32 %v1056, %v1085
        %v1087 = vpop.f32.mrf.mxu0
        %v1088 = vadd.f32 %v1056, %v1087
        %1089 = vmatmul.bf16.gmra.mxu0 %v1074
        %v1090 = vpop.f32.mrf.mxu0
        %v1091 = vadd.f32 %v1056, %v1090
        %v1092 = vpop.f32.mrf.mxu0
        %v1093 = vadd.f32 %v1056, %v1092
        %1094 = vdwg.mxu0
        %v1095 = vpack.c.bf16 %v1088, %v1086
        %1097 = vrot.lane.b32.xlu0 %v1095, 96
        %v1098 = vpop.permute.xlu0 %1097
        %vm1099 = vcmask 64512
        %v1101 = vsel %vm1099, %v1095, 0
        %v1104 = vsel %vm1099, %v1098, 0
        %1106 = vmatpush.bf16.xpose.msra.mxu0 0
        %1107 = vmatpush.bf16.xpose.msra.mxu0 0
        %1108 = vmatpush.bf16.xpose.msra.mxu0 0
        %1109 = vmatpush.bf16.xpose.msra.mxu0 0
        %1110 = vmatpush.bf16.xpose.msra.mxu0 0
        %1111 = vmatpush.bf16.xpose.msra.mxu0 0
        %1112 = vmatpush.bf16.xpose.msra.mxu0 0
        %1113 = vmatpush.bf16.xpose.msra.mxu0 %v1104
        %1114 = vmatmul.bf16.gmra.mxu0 %v1101
        %v1115 = vpop.f32.mrf.mxu0
        %v1116 = vadd.f32 0.0, %v1115
        %v1117 = vpop.f32.mrf.mxu0
        %v1118 = vadd.f32 0.0, %v1117
        %1119 = vdwg.mxu0
        %vm1120 = vcmask 130048
        %v1121 = vsel %vm1120, %v1116, -inf
        %1122 = vmax.xlane.f32.xlu0 %v1121
        %v1123 = vpop.xlane.xlu0 %1122
        %v1124 = vsel %vm1120, %v1118, -inf
        %1125 = vmax.xlane.f32.xlu0 %v1124
        %v1126 = vpop.xlane.xlu0 %1125
        %v1127 = vsub.f32 %v1116, %v1123
        %v1128 = vsub.f32 %v1118, %v1126
        %v1129 = vmul.f32 %v1127, 1.442695
        %v1130 = vpow.pop %v1129
        %v1131 = vmul.f32 %v1128, 1.442695
        %v1132 = vpow.pop %v1131
        %v1133 = vsel %vm1120, %v1130, 0.0
        %1134 = vadd.xlane.f32.xlu0 %v1133
        %v1135 = vpop.xlane.xlu0 %1134
        %v1136 = vsel %vm1120, %v1132, 0.0
        %1137 = vadd.xlane.f32.xlu0 %v1136
        %v1138 = vpop.xlane.xlu0 %1137
        %v1139 = vrcp.pop %v1135
        %v1140 = vrcp.pop %v1138
        %v1141 = vmul.f32 %v1130, %v1139
        %v1142 = vmul.f32 %v1132, %v1140
        %v1143 = vpack.c.bf16 %v1142, %v1141
        %1144 = vrot.lane.b32.xlu0 %v1095, 64
        %v1145 = vpop.permute.xlu0 %1144
        %v1148 = vsel %vm1120, %v1143, 0
        %1150 = vmatpush.bf16.msra.mxu0 0
        %1151 = vmatpush.bf16.msra.mxu0 0
        %1152 = vmatpush.bf16.msra.mxu0 0
        %1153 = vmatpush.bf16.msra.mxu0 0
        %1154 = vmatpush.bf16.msra.mxu0 0
        %1155 = vmatpush.bf16.msra.mxu0 0
        %1156 = vmatpush.bf16.msra.mxu0 0
        %1157 = vmatpush.bf16.msra.mxu0 %v1145
        %1158 = vmatmul.bf16.gmra.mxu0 %v1148
        %v1159 = vpop.f32.mrf.mxu0
        %v1160 = vadd.f32 0.0, %v1159
        %v1161 = vpop.f32.mrf.mxu0
        %v1162 = vadd.f32 0.0, %v1161
        %1163 = vdwg.mxu0
        %v1164 = vpack.c.bf16 %v1162, %v1160
        %1165 = vrot.lane.b32.xlu0 %v1095, 120
        %v1166 = vpop.permute.xlu0 %1165
        %1167 = vrot.lane.b32.xlu0 %v1095, 88
        %v1168 = vpop.permute.xlu0 %1167
        %v1170 = vsel %vm1099, %v1166, 0
        %v1173 = vsel %vm1099, %v1168, 0
        %1175 = vmatpush.bf16.xpose.msra.mxu0 0
        %1176 = vmatpush.bf16.xpose.msra.mxu0 0
        %1177 = vmatpush.bf16.xpose.msra.mxu0 0
        %1178 = vmatpush.bf16.xpose.msra.mxu0 0
        %1179 = vmatpush.bf16.xpose.msra.mxu0 0
        %1180 = vmatpush.bf16.xpose.msra.mxu0 0
        %1181 = vmatpush.bf16.xpose.msra.mxu0 0
        %1182 = vmatpush.bf16.xpose.msra.mxu0 %v1173
        %1183 = vmatmul.bf16.gmra.mxu0 %v1170
        %v1184 = vpop.f32.mrf.mxu0
        %v1185 = vadd.f32 0.0, %v1184
        %v1186 = vpop.f32.mrf.mxu0
        %v1187 = vadd.f32 0.0, %v1186
        %1188 = vdwg.mxu0
        %v1189 = vsel %vm1120, %v1185, -inf
        %1190 = vmax.xlane.f32.xlu0 %v1189
        %v1191 = vpop.xlane.xlu0 %1190
        %v1192 = vsel %vm1120, %v1187, -inf
        %1193 = vmax.xlane.f32.xlu0 %v1192
        %v1194 = vpop.xlane.xlu0 %1193
        %v1195 = vsub.f32 %v1185, %v1191
        %v1196 = vsub.f32 %v1187, %v1194
        %v1197 = vmul.f32 %v1195, 1.442695
        %v1198 = vpow.pop %v1197
        %v1199 = vmul.f32 %v1196, 1.442695
        %v1200 = vpow.pop %v1199
        %v1201 = vsel %vm1120, %v1198, 0.0
        %1202 = vadd.xlane.f32.xlu0 %v1201
        %v1203 = vpop.xlane.xlu0 %1202
        %v1204 = vsel %vm1120, %v1200, 0.0
        %1205 = vadd.xlane.f32.xlu0 %v1204
        %v1206 = vpop.xlane.xlu0 %1205
        %v1207 = vrcp.pop %v1203
        %v1208 = vrcp.pop %v1206
        %v1209 = vmul.f32 %v1198, %v1207
        %v1210 = vmul.f32 %v1200, %v1208
        %v1211 = vpack.c.bf16 %v1210, %v1209
        %1212 = vrot.lane.b32.xlu0 %v1095, 56
        %v1213 = vpop.permute.xlu0 %1212
        %v1216 = vsel %vm1120, %v1211, 0
        %1218 = vmatpush.bf16.msra.mxu0 0
        %1219 = vmatpush.bf16.msra.mxu0 0
        %1220 = vmatpush.bf16.msra.mxu0 0
        %1221 = vmatpush.bf16.msra.mxu0 0
        %1222 = vmatpush.bf16.msra.mxu0 0
        %1223 = vmatpush.bf16.msra.mxu0 0
        %1224 = vmatpush.bf16.msra.mxu0 0
        %1225 = vmatpush.bf16.msra.mxu0 %v1213
        %1226 = vmatmul.bf16.gmra.mxu0 %v1216
        %v1227 = vpop.f32.mrf.mxu0
        %v1228 = vadd.f32 0.0, %v1227
        %v1229 = vpop.f32.mrf.mxu0
        %v1230 = vadd.f32 0.0, %v1229
        %1231 = vdwg.mxu0
        %v1232 = vpack.c.bf16 %v1230, %v1228
        %v1234 = vsel %vm1099, %v1232, 0
        %vm1236 = vcmask 1043456
        %v1238 = vsel %vm1236, %v923, 0
        %1240 = vmatpush.bf16.msra.mxu0 0
        %1241 = vmatpush.bf16.msra.mxu0 0
        %1242 = vmatpush.bf16.msra.mxu0 0
        %1243 = vmatpush.bf16.msra.mxu0 0
        %1244 = vmatpush.bf16.msra.mxu0 0
        %1245 = vmatpush.bf16.msra.mxu0 0
        %1246 = vmatpush.bf16.msra.mxu0 0
        %1247 = vmatpush.bf16.msra.mxu0 %v1238
        %1248 = vmatmul.bf16.gmra.mxu0 %v1234
        %v1249 = vpop.f32.mrf.mxu0
        %v1250 = vadd.f32 0.0, %v1249
        %v1251 = vpop.f32.mrf.mxu0
        %v1252 = vadd.f32 0.0, %v1251
        %1253 = vdwg.mxu0
        %v1255 = vsel %vm1099, %v1164, 0
        %v1258 = vsel %vm1236, %v922, 0
        %1260 = vmatpush.bf16.msra.mxu0 0
        %1261 = vmatpush.bf16.msra.mxu0 0
        %1262 = vmatpush.bf16.msra.mxu0 0
        %1263 = vmatpush.bf16.msra.mxu0 0
        %1264 = vmatpush.bf16.msra.mxu0 0
        %1265 = vmatpush.bf16.msra.mxu0 0
        %1266 = vmatpush.bf16.msra.mxu0 0
        %1267 = vmatpush.bf16.msra.mxu0 %v1258
        %1268 = vmatmul.bf16.gmra.mxu0 %v1255
        %v1269 = vpop.f32.mrf.mxu0
        %v1270 = vadd.f32 %v1250, %v1269
        %v1271 = vpop.f32.mrf.mxu0
        %v1272 = vadd.f32 %v1252, %v1271
        %1273 = vdwg.mxu0
        %1274 = vrot.lane.b32.xlu0 %v1095, 112
        %v1275 = vpop.permute.xlu0 %1274
        %1276 = vrot.lane.b32.xlu0 %v1095, 80
        %v1277 = vpop.permute.xlu0 %1276
        %v1279 = vsel %vm1099, %v1275, 0
        %v1282 = vsel %vm1099, %v1277, 0
        %1284 = vmatpush.bf16.xpose.msra.mxu0 0
        %1285 = vmatpush.bf16.xpose.msra.mxu0 0
        %1286 = vmatpush.bf16.xpose.msra.mxu0 0
        %1287 = vmatpush.bf16.xpose.msra.mxu0 0
        %1288 = vmatpush.bf16.xpose.msra.mxu0 0
        %1289 = vmatpush.bf16.xpose.msra.mxu0 0
        %1290 = vmatpush.bf16.xpose.msra.mxu0 0
        %1291 = vmatpush.bf16.xpose.msra.mxu0 %v1282
        %1292 = vmatmul.bf16.gmra.mxu0 %v1279
        %v1293 = vpop.f32.mrf.mxu0
        %v1294 = vadd.f32 0.0, %v1293
        %v1295 = vpop.f32.mrf.mxu0
        %v1296 = vadd.f32 0.0, %v1295
        %1297 = vdwg.mxu0
        %v1298 = vsel %vm1120, %v1294, -inf
        %1299 = vmax.xlane.f32.xlu0 %v1298
        %v1300 = vpop.xlane.xlu0 %1299
        %v1301 = vsel %vm1120, %v1296, -inf
        %1302 = vmax.xlane.f32.xlu0 %v1301
        %v1303 = vpop.xlane.xlu0 %1302
        %v1304 = vsub.f32 %v1294, %v1300
        %v1305 = vsub.f32 %v1296, %v1303
        %v1306 = vmul.f32 %v1304, 1.442695
        %v1307 = vpow.pop %v1306
        %v1308 = vmul.f32 %v1305, 1.442695
        %v1309 = vpow.pop %v1308
        %v1310 = vsel %vm1120, %v1307, 0.0
        %1311 = vadd.xlane.f32.xlu0 %v1310
        %v1312 = vpop.xlane.xlu0 %1311
        %v1313 = vsel %vm1120, %v1309, 0.0
        %1314 = vadd.xlane.f32.xlu0 %v1313
        %v1315 = vpop.xlane.xlu0 %1314
        %v1316 = vrcp.pop %v1312
        %v1317 = vrcp.pop %v1315
        %v1318 = vmul.f32 %v1307, %v1316
        %v1319 = vmul.f32 %v1309, %v1317
        %v1320 = vpack.c.bf16 %v1319, %v1318
        %1321 = vrot.lane.b32.xlu0 %v1095, 48
        %v1322 = vpop.permute.xlu0 %1321
        %v1325 = vsel %vm1120, %v1320, 0
        %1327 = vmatpush.bf16.msra.mxu0 0
        %1328 = vmatpush.bf16.msra.mxu0 0
        %1329 = vmatpush.bf16.msra.mxu0 0
        %1330 = vmatpush.bf16.msra.mxu0 0
        %1331 = vmatpush.bf16.msra.mxu0 0
        %1332 = vmatpush.bf16.msra.mxu0 0
        %1333 = vmatpush.bf16.msra.mxu0 0
        %1334 = vmatpush.bf16.msra.mxu0 %v1322
        %1335 = vmatmul.bf16.gmra.mxu0 %v1325
        %v1336 = vpop.f32.mrf.mxu0
        %v1337 = vadd.f32 0.0, %v1336
        %v1338 = vpop.f32.mrf.mxu0
        %v1339 = vadd.f32 0.0, %v1338
        %1340 = vdwg.mxu0
        %v1341 = vpack.c.bf16 %v1339, %v1337
        %v1343 = vsel %vm1099, %v1341, 0
        %v1346 = vsel %vm1236, %v924, 0
        %1348 = vmatpush.bf16.msra.mxu0 0
        %1349 = vmatpush.bf16.msra.mxu0 0
        %1350 = vmatpush.bf16.msra.mxu0 0
        %1351 = vmatpush.bf16.msra.mxu0 0
        %1352 = vmatpush.bf16.msra.mxu0 0
        %1353 = vmatpush.bf16.msra.mxu0 0
        %1354 = vmatpush.bf16.msra.mxu0 0
        %1355 = vmatpush.bf16.msra.mxu0 %v1346
        %1356 = vmatmul.bf16.gmra.mxu0 %v1343
        %v1357 = vpop.f32.mrf.mxu0
        %v1358 = vadd.f32 0.0, %v1357
        %v1359 = vpop.f32.mrf.mxu0
        %v1360 = vadd.f32 0.0, %v1359
        %1361 = vdwg.mxu0
        %v1362 = vadd.f32 %v1270, %v1358
        %v1363 = vadd.f32 %v1272, %v1360
        %1364 = vrot.lane.b32.xlu0 %v1095, 104
        %v1365 = vpop.permute.xlu0 %1364
        %1366 = vrot.lane.b32.xlu0 %v1095, 72
        %v1367 = vpop.permute.xlu0 %1366
        %v1369 = vsel %vm1099, %v1365, 0
        %v1372 = vsel %vm1099, %v1367, 0
        %1374 = vmatpush.bf16.xpose.msra.mxu0 0
        %1375 = vmatpush.bf16.xpose.msra.mxu0 0
        %1376 = vmatpush.bf16.xpose.msra.mxu0 0
        %1377 = vmatpush.bf16.xpose.msra.mxu0 0
        %1378 = vmatpush.bf16.xpose.msra.mxu0 0
        %1379 = vmatpush.bf16.xpose.msra.mxu0 0
        %1380 = vmatpush.bf16.xpose.msra.mxu0 0
        %1381 = vmatpush.bf16.xpose.msra.mxu0 %v1372
        %1382 = vmatmul.bf16.gmra.mxu0 %v1369
        %v1383 = vpop.f32.mrf.mxu0
        %v1384 = vadd.f32 0.0, %v1383
        %v1385 = vpop.f32.mrf.mxu0
        %v1386 = vadd.f32 0.0, %v1385
        %1387 = vdwg.mxu0
        %v1388 = vsel %vm1120, %v1384, -inf
        %1389 = vmax.xlane.f32.xlu0 %v1388
        %v1390 = vpop.xlane.xlu0 %1389
        %v1391 = vsel %vm1120, %v1386, -inf
        %1392 = vmax.xlane.f32.xlu0 %v1391
        %v1393 = vpop.xlane.xlu0 %1392
        %v1394 = vsub.f32 %v1384, %v1390
        %v1395 = vsub.f32 %v1386, %v1393
        %v1396 = vmul.f32 %v1394, 1.442695
        %v1397 = vpow.pop %v1396
        %v1398 = vmul.f32 %v1395, 1.442695
        %v1399 = vpow.pop %v1398
        %v1400 = vsel %vm1120, %v1397, 0.0
        %1401 = vadd.xlane.f32.xlu0 %v1400
        %v1402 = vpop.xlane.xlu0 %1401
        %v1403 = vsel %vm1120, %v1399, 0.0
        %1404 = vadd.xlane.f32.xlu0 %v1403
        %v1405 = vpop.xlane.xlu0 %1404
        %v1406 = vrcp.pop %v1402
        %v1407 = vrcp.pop %v1405
        %v1408 = vmul.f32 %v1397, %v1406
        %v1409 = vmul.f32 %v1399, %v1407
        %v1410 = vpack.c.bf16 %v1409, %v1408
        %1411 = vrot.lane.b32.xlu0 %v1095, 40
        %v1412 = vpop.permute.xlu0 %1411
        %v1415 = vsel %vm1120, %v1410, 0
        %1417 = vmatpush.bf16.msra.mxu0 0
        %1418 = vmatpush.bf16.msra.mxu0 0
        %1419 = vmatpush.bf16.msra.mxu0 0
        %1420 = vmatpush.bf16.msra.mxu0 0
        %1421 = vmatpush.bf16.msra.mxu0 0
        %1422 = vmatpush.bf16.msra.mxu0 0
        %1423 = vmatpush.bf16.msra.mxu0 0
        %1424 = vmatpush.bf16.msra.mxu0 %v1412
        %1425 = vmatmul.bf16.gmra.mxu0 %v1415
        %v1426 = vpop.f32.mrf.mxu0
        %v1427 = vadd.f32 0.0, %v1426
        %v1428 = vpop.f32.mrf.mxu0
        %v1429 = vadd.f32 0.0, %v1428
        %1430 = vdwg.mxu0
        %v1431 = vpack.c.bf16 %v1429, %v1427
        %v1433 = vsel %vm1099, %v1431, 0
        %v1436 = vsel %vm1236, %v925, 0
        %1438 = vmatpush.bf16.msra.mxu0 0
        %1439 = vmatpush.bf16.msra.mxu0 0
        %1440 = vmatpush.bf16.msra.mxu0 0
        %1441 = vmatpush.bf16.msra.mxu0 0
        %1442 = vmatpush.bf16.msra.mxu0 0
        %1443 = vmatpush.bf16.msra.mxu0 0
        %1444 = vmatpush.bf16.msra.mxu0 0
        %1445 = vmatpush.bf16.msra.mxu0 %v1436
        %1446 = vmatmul.bf16.gmra.mxu0 %v1433
        %v1447 = vpop.f32.mrf.mxu0
        %v1448 = vadd.f32 0.0, %v1447
        %v1449 = vpop.f32.mrf.mxu0
        %v1450 = vadd.f32 0.0, %v1449
        %1451 = vdwg.mxu0
        %v1452 = vadd.f32 %v1362, %v1448
        %v1453 = vadd.f32 %v1363, %v1450
        %v1454 = vpack.c.bf16 %v1093, %v1091
        %1456 = vrot.lane.b32.xlu0 %v1454, 96
        %v1457 = vpop.permute.xlu0 %1456
        %v1459 = vsel %vm1099, %v1454, 0
        %v1462 = vsel %vm1099, %v1457, 0
        %1464 = vmatpush.bf16.xpose.msra.mxu0 0
        %1465 = vmatpush.bf16.xpose.msra.mxu0 0
        %1466 = vmatpush.bf16.xpose.msra.mxu0 0
        %1467 = vmatpush.bf16.xpose.msra.mxu0 0
        %1468 = vmatpush.bf16.xpose.msra.mxu0 0
        %1469 = vmatpush.bf16.xpose.msra.mxu0 0
        %1470 = vmatpush.bf16.xpose.msra.mxu0 0
        %1471 = vmatpush.bf16.xpose.msra.mxu0 %v1462
        %1472 = vmatmul.bf16.gmra.mxu0 %v1459
        %v1473 = vpop.f32.mrf.mxu0
        %v1474 = vadd.f32 0.0, %v1473
        %v1475 = vpop.f32.mrf.mxu0
        %v1476 = vadd.f32 0.0, %v1475
        %1477 = vdwg.mxu0
        %v1478 = vsel %vm1120, %v1474, -inf
        %1479 = vmax.xlane.f32.xlu0 %v1478
        %v1480 = vpop.xlane.xlu0 %1479
        %v1481 = vsel %vm1120, %v1476, -inf
        %1482 = vmax.xlane.f32.xlu0 %v1481
        %v1483 = vpop.xlane.xlu0 %1482
        %v1484 = vsub.f32 %v1474, %v1480
        %v1485 = vsub.f32 %v1476, %v1483
        %v1486 = vmul.f32 %v1484, 1.442695
        %v1487 = vpow.pop %v1486
        %v1488 = vmul.f32 %v1485, 1.442695
        %v1489 = vpow.pop %v1488
        %v1490 = vsel %vm1120, %v1487, 0.0
        %1491 = vadd.xlane.f32.xlu0 %v1490
        %v1492 = vpop.xlane.xlu0 %1491
        %v1493 = vsel %vm1120, %v1489, 0.0
        %1494 = vadd.xlane.f32.xlu0 %v1493
        %v1495 = vpop.xlane.xlu0 %1494
        %v1496 = vrcp.pop %v1492
        %v1497 = vrcp.pop %v1495
        %v1498 = vmul.f32 %v1487, %v1496
        %v1499 = vmul.f32 %v1489, %v1497
        %v1500 = vpack.c.bf16 %v1499, %v1498
        %1501 = vrot.lane.b32.xlu0 %v1454, 64
        %v1502 = vpop.permute.xlu0 %1501
        %v1505 = vsel %vm1120, %v1500, 0
        %1507 = vmatpush.bf16.msra.mxu0 0
        %1508 = vmatpush.bf16.msra.mxu0 0
        %1509 = vmatpush.bf16.msra.mxu0 0
        %1510 = vmatpush.bf16.msra.mxu0 0
        %1511 = vmatpush.bf16.msra.mxu0 0
        %1512 = vmatpush.bf16.msra.mxu0 0
        %1513 = vmatpush.bf16.msra.mxu0 0
        %1514 = vmatpush.bf16.msra.mxu0 %v1502
        %1515 = vmatmul.bf16.gmra.mxu0 %v1505
        %v1516 = vpop.f32.mrf.mxu0
        %v1517 = vadd.f32 0.0, %v1516
        %v1518 = vpop.f32.mrf.mxu0
        %v1519 = vadd.f32 0.0, %v1518
        %1520 = vdwg.mxu0
        %v1521 = vpack.c.bf16 %v1519, %v1517
        %1522 = vrot.lane.b32.xlu0 %v1454, 120
        %v1523 = vpop.permute.xlu0 %1522
        %1524 = vrot.lane.b32.xlu0 %v1454, 88
        %v1525 = vpop.permute.xlu0 %1524
        %v1527 = vsel %vm1099, %v1523, 0
        %v1530 = vsel %vm1099, %v1525, 0
        %1532 = vmatpush.bf16.xpose.msra.mxu0 0
        %1533 = vmatpush.bf16.xpose.msra.mxu0 0
        %1534 = vmatpush.bf16.xpose.msra.mxu0 0
        %1535 = vmatpush.bf16.xpose.msra.mxu0 0
        %1536 = vmatpush.bf16.xpose.msra.mxu0 0
        %1537 = vmatpush.bf16.xpose.msra.mxu0 0
        %1538 = vmatpush.bf16.xpose.msra.mxu0 0
        %1539 = vmatpush.bf16.xpose.msra.mxu0 %v1530
        %1540 = vmatmul.bf16.gmra.mxu0 %v1527
        %v1541 = vpop.f32.mrf.mxu0
        %v1542 = vadd.f32 0.0, %v1541
        %v1543 = vpop.f32.mrf.mxu0
        %v1544 = vadd.f32 0.0, %v1543
        %1545 = vdwg.mxu0
        %v1546 = vsel %vm1120, %v1542, -inf
        %1547 = vmax.xlane.f32.xlu0 %v1546
        %v1548 = vpop.xlane.xlu0 %1547
        %v1549 = vsel %vm1120, %v1544, -inf
        %1550 = vmax.xlane.f32.xlu0 %v1549
        %v1551 = vpop.xlane.xlu0 %1550
        %v1552 = vsub.f32 %v1542, %v1548
        %v1553 = vsub.f32 %v1544, %v1551
        %v1554 = vmul.f32 %v1552, 1.442695
        %v1555 = vpow.pop %v1554
        %v1556 = vmul.f32 %v1553, 1.442695
        %v1557 = vpow.pop %v1556
        %v1558 = vsel %vm1120, %v1555, 0.0
        %1559 = vadd.xlane.f32.xlu0 %v1558
        %v1560 = vpop.xlane.xlu0 %1559
        %v1561 = vsel %vm1120, %v1557, 0.0
        %1562 = vadd.xlane.f32.xlu0 %v1561
        %v1563 = vpop.xlane.xlu0 %1562
        %v1564 = vrcp.pop %v1560
        %v1565 = vrcp.pop %v1563
        %v1566 = vmul.f32 %v1555, %v1564
        %v1567 = vmul.f32 %v1557, %v1565
        %v1568 = vpack.c.bf16 %v1567, %v1566
        %1569 = vrot.lane.b32.xlu0 %v1454, 56
        %v1570 = vpop.permute.xlu0 %1569
        %v1573 = vsel %vm1120, %v1568, 0
        %1575 = vmatpush.bf16.msra.mxu0 0
        %1576 = vmatpush.bf16.msra.mxu0 0
        %1577 = vmatpush.bf16.msra.mxu0 0
        %1578 = vmatpush.bf16.msra.mxu0 0
        %1579 = vmatpush.bf16.msra.mxu0 0
        %1580 = vmatpush.bf16.msra.mxu0 0
        %1581 = vmatpush.bf16.msra.mxu0 0
        %1582 = vmatpush.bf16.msra.mxu0 %v1570
        %1583 = vmatmul.bf16.gmra.mxu0 %v1573
        %v1584 = vpop.f32.mrf.mxu0
        %v1585 = vadd.f32 0.0, %v1584
        %v1586 = vpop.f32.mrf.mxu0
        %v1587 = vadd.f32 0.0, %v1586
        %1588 = vdwg.mxu0
        %v1589 = vpack.c.bf16 %v1587, %v1585
        %v1591 = vsel %vm1099, %v1589, 0
        %1593 = vmatpush.bf16.msra.mxu0 0
        %1594 = vmatpush.bf16.msra.mxu0 0
        %1595 = vmatpush.bf16.msra.mxu0 0
        %1596 = vmatpush.bf16.msra.mxu0 0
        %1597 = vmatpush.bf16.msra.mxu0 0
        %1598 = vmatpush.bf16.msra.mxu0 0
        %1599 = vmatpush.bf16.msra.mxu0 0
        %1600 = vmatpush.bf16.msra.mxu0 %v1238
        %1601 = vmatmul.bf16.gmra.mxu0 %v1591
        %v1602 = vpop.f32.mrf.mxu0
        %v1603 = vadd.f32 0.0, %v1602
        %v1604 = vpop.f32.mrf.mxu0
        %v1605 = vadd.f32 0.0, %v1604
        %1606 = vdwg.mxu0
        %v1608 = vsel %vm1099, %v1521, 0
        %1610 = vmatpush.bf16.msra.mxu0 0
        %1611 = vmatpush.bf16.msra.mxu0 0
        %1612 = vmatpush.bf16.msra.mxu0 0
        %1613 = vmatpush.bf16.msra.mxu0 0
        %1614 = vmatpush.bf16.msra.mxu0 0
        %1615 = vmatpush.bf16.msra.mxu0 0
        %1616 = vmatpush.bf16.msra.mxu0 0
        %1617 = vmatpush.bf16.msra.mxu0 %v1258
        %1618 = vmatmul.bf16.gmra.mxu0 %v1608
        %v1619 = vpop.f32.mrf.mxu0
        %v1620 = vadd.f32 %v1603, %v1619
        %v1621 = vpop.f32.mrf.mxu0
        %v1622 = vadd.f32 %v1605, %v1621
        %1623 = vdwg.mxu0
        %1624 = vrot.lane.b32.xlu0 %v1454, 112
        %v1625 = vpop.permute.xlu0 %1624
        %1626 = vrot.lane.b32.xlu0 %v1454, 80
        %v1627 = vpop.permute.xlu0 %1626
        %v1629 = vsel %vm1099, %v1625, 0
        %v1632 = vsel %vm1099, %v1627, 0
        %1634 = vmatpush.bf16.xpose.msra.mxu0 0
        %1635 = vmatpush.bf16.xpose.msra.mxu0 0
        %1636 = vmatpush.bf16.xpose.msra.mxu0 0
        %1637 = vmatpush.bf16.xpose.msra.mxu0 0
        %1638 = vmatpush.bf16.xpose.msra.mxu0 0
        %1639 = vmatpush.bf16.xpose.msra.mxu0 0
        %1640 = vmatpush.bf16.xpose.msra.mxu0 0
        %1641 = vmatpush.bf16.xpose.msra.mxu0 %v1632
        %1642 = vmatmul.bf16.gmra.mxu0 %v1629
        %v1643 = vpop.f32.mrf.mxu0
        %v1644 = vadd.f32 0.0, %v1643
        %v1645 = vpop.f32.mrf.mxu0
        %v1646 = vadd.f32 0.0, %v1645
        %1647 = vdwg.mxu0
        %v1648 = vsel %vm1120, %v1644, -inf
        %1649 = vmax.xlane.f32.xlu0 %v1648
        %v1650 = vpop.xlane.xlu0 %1649
        %v1651 = vsel %vm1120, %v1646, -inf
        %1652 = vmax.xlane.f32.xlu0 %v1651
        %v1653 = vpop.xlane.xlu0 %1652
        %v1654 = vsub.f32 %v1644, %v1650
        %v1655 = vsub.f32 %v1646, %v1653
        %v1656 = vmul.f32 %v1654, 1.442695
        %v1657 = vpow.pop %v1656
        %v1658 = vmul.f32 %v1655, 1.442695
        %v1659 = vpow.pop %v1658
        %v1660 = vsel %vm1120, %v1657, 0.0
        %1661 = vadd.xlane.f32.xlu0 %v1660
        %v1662 = vpop.xlane.xlu0 %1661
        %v1663 = vsel %vm1120, %v1659, 0.0
        %1664 = vadd.xlane.f32.xlu0 %v1663
        %v1665 = vpop.xlane.xlu0 %1664
        %v1666 = vrcp.pop %v1662
        %v1667 = vrcp.pop %v1665
        %v1668 = vmul.f32 %v1657, %v1666
        %v1669 = vmul.f32 %v1659, %v1667
        %v1670 = vpack.c.bf16 %v1669, %v1668
        %1671 = vrot.lane.b32.xlu0 %v1454, 48
        %v1672 = vpop.permute.xlu0 %1671
        %v1675 = vsel %vm1120, %v1670, 0
        %1677 = vmatpush.bf16.msra.mxu0 0
        %1678 = vmatpush.bf16.msra.mxu0 0
        %1679 = vmatpush.bf16.msra.mxu0 0
        %1680 = vmatpush.bf16.msra.mxu0 0
        %1681 = vmatpush.bf16.msra.mxu0 0
        %1682 = vmatpush.bf16.msra.mxu0 0
        %1683 = vmatpush.bf16.msra.mxu0 0
        %1684 = vmatpush.bf16.msra.mxu0 %v1672
        %1685 = vmatmul.bf16.gmra.mxu0 %v1675
        %v1686 = vpop.f32.mrf.mxu0
        %v1687 = vadd.f32 0.0, %v1686
        %v1688 = vpop.f32.mrf.mxu0
        %v1689 = vadd.f32 0.0, %v1688
        %1690 = vdwg.mxu0
        %v1691 = vpack.c.bf16 %v1689, %v1687
        %v1693 = vsel %vm1099, %v1691, 0
        %1695 = vmatpush.bf16.msra.mxu0 0
        %1696 = vmatpush.bf16.msra.mxu0 0
        %1697 = vmatpush.bf16.msra.mxu0 0
        %1698 = vmatpush.bf16.msra.mxu0 0
        %1699 = vmatpush.bf16.msra.mxu0 0
        %1700 = vmatpush.bf16.msra.mxu0 0
        %1701 = vmatpush.bf16.msra.mxu0 0
        %1702 = vmatpush.bf16.msra.mxu0 %v1346
        %1703 = vmatmul.bf16.gmra.mxu0 %v1693
        %v1704 = vpop.f32.mrf.mxu0
        %v1705 = vadd.f32 0.0, %v1704
        %v1706 = vpop.f32.mrf.mxu0
        %v1707 = vadd.f32 0.0, %v1706
        %1708 = vdwg.mxu0
        %v1709 = vadd.f32 %v1620, %v1705
        %v1710 = vadd.f32 %v1622, %v1707
        %1711 = vrot.lane.b32.xlu0 %v1454, 104
        %v1712 = vpop.permute.xlu0 %1711
        %1713 = vrot.lane.b32.xlu0 %v1454, 72
        %v1714 = vpop.permute.xlu0 %1713
        %v1716 = vsel %vm1099, %v1712, 0
        %v1719 = vsel %vm1099, %v1714, 0
        %1721 = vmatpush.bf16.xpose.msra.mxu0 0
        %1722 = vmatpush.bf16.xpose.msra.mxu0 0
        %1723 = vmatpush.bf16.xpose.msra.mxu0 0
        %1724 = vmatpush.bf16.xpose.msra.mxu0 0
        %1725 = vmatpush.bf16.xpose.msra.mxu0 0
        %1726 = vmatpush.bf16.xpose.msra.mxu0 0
        %1727 = vmatpush.bf16.xpose.msra.mxu0 0
        %1728 = vmatpush.bf16.xpose.msra.mxu0 %v1719
        %1729 = vmatmul.bf16.gmra.mxu0 %v1716
        %v1730 = vpop.f32.mrf.mxu0
        %v1731 = vadd.f32 0.0, %v1730
        %v1732 = vpop.f32.mrf.mxu0
        %v1733 = vadd.f32 0.0, %v1732
        %1734 = vdwg.mxu0
        %v1735 = vsel %vm1120, %v1731, -inf
        %1736 = vmax.xlane.f32.xlu0 %v1735
        %v1737 = vpop.xlane.xlu0 %1736
        %v1738 = vsel %vm1120, %v1733, -inf
        %1739 = vmax.xlane.f32.xlu0 %v1738
        %v1740 = vpop.xlane.xlu0 %1739
        %v1741 = vsub.f32 %v1731, %v1737
        %v1742 = vsub.f32 %v1733, %v1740
        %v1743 = vmul.f32 %v1741, 1.442695
        %v1744 = vpow.pop %v1743
        %v1745 = vmul.f32 %v1742, 1.442695
        %v1746 = vpow.pop %v1745
        %v1747 = vsel %vm1120, %v1744, 0.0
        %1748 = vadd.xlane.f32.xlu0 %v1747
        %v1749 = vpop.xlane.xlu0 %1748
        %v1750 = vsel %vm1120, %v1746, 0.0
        %1751 = vadd.xlane.f32.xlu0 %v1750
        %v1752 = vpop.xlane.xlu0 %1751
        %v1753 = vrcp.pop %v1749
        %v1754 = vrcp.pop %v1752
        %v1755 = vmul.f32 %v1744, %v1753
        %v1756 = vmul.f32 %v1746, %v1754
        %v1757 = vpack.c.bf16 %v1756, %v1755
        %1758 = vrot.lane.b32.xlu0 %v1454, 40
        %v1759 = vpop.permute.xlu0 %1758
        %v1762 = vsel %vm1120, %v1757, 0
        %1764 = vmatpush.bf16.msra.mxu0 0
        %1765 = vmatpush.bf16.msra.mxu0 0
        %1766 = vmatpush.bf16.msra.mxu0 0
        %1767 = vmatpush.bf16.msra.mxu0 0
        %1768 = vmatpush.bf16.msra.mxu0 0
        %1769 = vmatpush.bf16.msra.mxu0 0
        %1770 = vmatpush.bf16.msra.mxu0 0
        %1771 = vmatpush.bf16.msra.mxu0 %v1759
        %1772 = vmatmul.bf16.gmra.mxu0 %v1762
        %v1773 = vpop.f32.mrf.mxu0
        %v1774 = vadd.f32 0.0, %v1773
        %v1775 = vpop.f32.mrf.mxu0
        %v1776 = vadd.f32 0.0, %v1775
        %1777 = vdwg.mxu0
        %v1778 = vpack.c.bf16 %v1776, %v1774
        %v1780 = vsel %vm1099, %v1778, 0
        %1782 = vmatpush.bf16.msra.mxu0 0
        %1783 = vmatpush.bf16.msra.mxu0 0
        %1784 = vmatpush.bf16.msra.mxu0 0
        %1785 = vmatpush.bf16.msra.mxu0 0
        %1786 = vmatpush.bf16.msra.mxu0 0
        %1787 = vmatpush.bf16.msra.mxu0 0
        %1788 = vmatpush.bf16.msra.mxu0 0
        %1789 = vmatpush.bf16.msra.mxu0 %v1436
        %1790 = vmatmul.bf16.gmra.mxu0 %v1780
        %v1791 = vpop.f32.mrf.mxu0
        %v1792 = vadd.f32 0.0, %v1791
        %v1793 = vpop.f32.mrf.mxu0
        %v1794 = vadd.f32 0.0, %v1793
        %1795 = vdwg.mxu0
        %v1796 = vadd.f32 %v1709, %v1792
        %v1797 = vadd.f32 %v1710, %v1794
        %v1798 = vadd.f32 %v911, %v1452
        %v1799 = vadd.f32 %v912, %v1453
        %v1800 = vadd.f32 %v913, %v1796
        %v1801 = vadd.f32 %v914, %v1797
        %v1803 = vperm.slane %v926, 0
        %v1805 = vadd.f32 %v1798, %v1803
        %v1806 = vadd.f32 %v1799, %v1803
        %v1807 = vadd.f32 %v1800, %v1803
        %v1808 = vadd.f32 %v1801, %v1803
        %v1809 = vsel %vm943, %v1805, 0.0
        %1810 = vadd.xlane.f32.xlu0 %v1809
        %v1811 = vpop.xlane.xlu0 %1810
        %v1812 = vsel %vm943, %v1806, 0.0
        %1813 = vadd.xlane.f32.xlu0 %v1812
        %v1814 = vpop.xlane.xlu0 %1813
        %v1815 = vsel %vm943, %v1807, 0.0
        %1816 = vadd.xlane.f32.xlu0 %v1815
        %v1817 = vpop.xlane.xlu0 %1816
        %v1818 = vsel %vm943, %v1808, 0.0
        %1819 = vadd.xlane.f32.xlu0 %v1818
        %v1820 = vpop.xlane.xlu0 %1819
        %v1821 = vmul.f32 %v1811, %v962
        %v1822 = vmul.f32 %v1814, %v962
        %v1823 = vmul.f32 %v1817, %v962
        %v1824 = vmul.f32 %v1820, %v962
        %v1825 = vsub.f32 %v1805, %v1821
        %v1826 = vsub.f32 %v1806, %v1822
        %v1827 = vsub.f32 %v1807, %v1823
        %v1828 = vsub.f32 %v1808, %v1824
        %v1829 = vmul.f32 %v1825, %v1825
        %v1830 = vmul.f32 %v1826, %v1826
        %v1831 = vmul.f32 %v1827, %v1827
        %v1832 = vmul.f32 %v1828, %v1828
        %v1833 = vsel %vm943, %v1829, 0.0
        %1834 = vadd.xlane.f32.xlu0 %v1833
        %v1835 = vpop.xlane.xlu0 %1834
        %v1836 = vsel %vm943, %v1830, 0.0
        %1837 = vadd.xlane.f32.xlu0 %v1836
        %v1838 = vpop.xlane.xlu0 %1837
        %v1839 = vsel %vm943, %v1831, 0.0
        %1840 = vadd.xlane.f32.xlu0 %v1839
        %v1841 = vpop.xlane.xlu0 %1840
        %v1842 = vsel %vm943, %v1832, 0.0
        %1843 = vadd.xlane.f32.xlu0 %v1842
        %v1844 = vpop.xlane.xlu0 %1843
        %v1845 = vmul.f32 %v1835, %v962
        %v1846 = vmul.f32 %v1838, %v962
        %v1847 = vmul.f32 %v1841, %v962
        %v1848 = vmul.f32 %v1844, %v962
        %v1849 = vadd.f32 %v1845, 1e-06
        %v1850 = vadd.f32 %v1846, 1e-06
        %v1851 = vadd.f32 %v1847, 1e-06
        %v1852 = vadd.f32 %v1848, 1e-06
        %v1853 = vrsqrt.pop %v1849
        %v1854 = vmul.f32 %v1853, %v1849
        %v1855 = vmul.f32 %v1854, %v1853
        %v1856 = vmul.f32 0.5, %v1855
        %v1857 = vsub.f32 1.5, %v1856
        %v1858 = vmul.f32 %v1853, %v1857
        %vm1859 = vweird.f32 %v1849
        %vm1860 = vweird.f32 %v1853
        %vm1861 = vmor %vm1859, %vm1860
        %v1862 = vsel %vm1861, %v1853, %v1858
        %v1863 = vrsqrt.pop %v1850
        %v1864 = vmul.f32 %v1863, %v1850
        %v1865 = vmul.f32 %v1864, %v1863
        %v1866 = vmul.f32 0.5, %v1865
        %v1867 = vsub.f32 1.5, %v1866
        %v1868 = vmul.f32 %v1863, %v1867
        %vm1869 = vweird.f32 %v1850
        %vm1870 = vweird.f32 %v1863
        %vm1871 = vmor %vm1869, %vm1870
        %v1872 = vsel %vm1871, %v1863, %v1868
        %v1873 = vrsqrt.pop %v1851
        %v1874 = vmul.f32 %v1873, %v1851
        %v1875 = vmul.f32 %v1874, %v1873
        %v1876 = vmul.f32 0.5, %v1875
        %v1877 = vsub.f32 1.5, %v1876
        %v1878 = vmul.f32 %v1873, %v1877
        %vm1879 = vweird.f32 %v1851
        %vm1880 = vweird.f32 %v1873
        %vm1881 = vmor %vm1879, %vm1880
        %v1882 = vsel %vm1881, %v1873, %v1878
        %v1883 = vrsqrt.pop %v1852
        %v1884 = vmul.f32 %v1883, %v1852
        %v1885 = vmul.f32 %v1884, %v1883
        %v1886 = vmul.f32 0.5, %v1885
        %v1887 = vsub.f32 1.5, %v1886
        %v1888 = vmul.f32 %v1883, %v1887
        %vm1889 = vweird.f32 %v1852
        %vm1890 = vweird.f32 %v1883
        %vm1891 = vmor %vm1889, %vm1890
        %v1892 = vsel %vm1891, %v1883, %v1888
        %v1893 = vmul.f32 %v1825, %v1862
        %v1894 = vmul.f32 %v1826, %v1872
        %v1895 = vmul.f32 %v1827, %v1882
        %v1896 = vmul.f32 %v1828, %v1892
        %v1898 = vperm.slane %v927, 0
        %v1900 = vmul.f32 %v1893, %v1898
        %v1901 = vmul.f32 %v1894, %v1898
        %v1902 = vmul.f32 %v1895, %v1898
        %v1903 = vmul.f32 %v1896, %v1898
        %v1905 = vperm.slane %v928, 0
        %v1907 = vadd.f32 %v1900, %v1905
        %v1908 = vadd.f32 %v1901, %v1905
        %v1909 = vadd.f32 %v1902, %v1905
        %v1910 = vadd.f32 %v1903, %v1905
        %v1911 = vpack.c.bf16 %v1908, %v1907
        %v1912 = vpack.c.bf16 %v1910, %v1909
        %v1914 = vperm.slane %v933, 0
        %v1920 = vunpack.c.l.b16 %v929
        %v1921 = vunpack.c.l.b16 %v930
        %v1922 = vunpack.c.l.b16 %v931
        %v1923 = vunpack.c.l.b16 %v932
        %v1924 = vpack.c.b16 %v1921, %v1920
        %v1925 = vpack.c.b16 %v1923, %v1922
        %v1929 = vsel %vm943, %v1911, 0
        %v1932 = vsel %vm943, %v1912, 0
        %1934 = vmatpush.bf16.msra.mxu0 0
        %1935 = vmatpush.bf16.msra.mxu0 0
        %1936 = vmatpush.bf16.msra.mxu0 0
        %1937 = vmatpush.bf16.msra.mxu0 0
        %1938 = vmatpush.bf16.msra.mxu0 0
        %1939 = vmatpush.bf16.msra.mxu0 0
        %1940 = vmatpush.bf16.msra.mxu0 %v1925
        %1941 = vmatpush.bf16.msra.mxu0 %v1924
        %1942 = vmatmul.bf16.gmra.mxu0 %v1929
        %v1943 = vpop.f32.mrf.mxu0
        %v1944 = vadd.f32 %v1914, %v1943
        %v1945 = vpop.f32.mrf.mxu0
        %v1946 = vadd.f32 %v1914, %v1945
        %1947 = vmatmul.bf16.gmra.mxu0 %v1932
        %v1948 = vpop.f32.mrf.mxu0
        %v1949 = vadd.f32 %v1914, %v1948
        %v1950 = vpop.f32.mrf.mxu0
        %v1951 = vadd.f32 %v1914, %v1950
        %1952 = vdwg.mxu0
        %v1953 = vmul.f32 %v1944, %v1944
        %v1954 = vmul.f32 %v1946, %v1946
        %v1955 = vmul.f32 %v1949, %v1949
        %v1956 = vmul.f32 %v1951, %v1951
        %v1957 = vmul.f32 %v1944, %v1953
        %v1958 = vmul.f32 %v1946, %v1954
        %v1959 = vmul.f32 %v1949, %v1955
        %v1960 = vmul.f32 %v1951, %v1956
        %v1961 = vmul.f32 %v1957, 0.044715
        %v1962 = vmul.f32 %v1958, 0.044715
        %v1963 = vmul.f32 %v1959, 0.044715
        %v1964 = vmul.f32 %v1960, 0.044715
        %v1965 = vadd.f32 %v1944, %v1961
        %v1966 = vadd.f32 %v1946, %v1962
        %v1967 = vadd.f32 %v1949, %v1963
        %v1968 = vadd.f32 %v1951, %v1964
        %v1969 = vmul.f32 %v1965, 0.7978846
        %v1970 = vmul.f32 %v1966, 0.7978846
        %v1971 = vmul.f32 %v1967, 0.7978846
        %v1972 = vmul.f32 %v1968, 0.7978846
        %v1973 = vtanh.pop %v1969
        %v1974 = vtanh.pop %v1970
        %v1975 = vtanh.pop %v1971
        %v1976 = vtanh.pop %v1972
        %v1977 = vadd.f32 %v1973, 1.0
        %v1978 = vadd.f32 %v1974, 1.0
        %v1979 = vadd.f32 %v1975, 1.0
        %v1980 = vadd.f32 %v1976, 1.0
        %v1981 = vmul.f32 %v1977, 0.5
        %v1982 = vmul.f32 %v1978, 0.5
        %v1983 = vmul.f32 %v1979, 0.5
        %v1984 = vmul.f32 %v1980, 0.5
        %v1985 = vmul.f32 %v1944, %v1981
        %v1986 = vmul.f32 %v1946, %v1982
        %v1987 = vmul.f32 %v1949, %v1983
        %v1988 = vmul.f32 %v1951, %v1984
        %v1989 = vpack.c.bf16 %v1986, %v1985
        %v1990 = vpack.c.bf16 %v1988, %v1987
        %v1992 = vperm.slane %v942, 0
        %v2002 = vunpack.c.l.b16 %v934
        %v2003 = vunpack.c.l.b16 %v935
        %v2004 = vunpack.c.l.b16 %v936
        %v2005 = vunpack.c.l.b16 %v937
        %v2006 = vunpack.c.l.b16 %v938
        %v2007 = vunpack.c.l.b16 %v939
        %v2008 = vunpack.c.l.b16 %v940
        %v2009 = vunpack.c.l.b16 %v941
        %v2010 = vpack.c.b16 %v2003, %v2002
        %v2011 = vpack.c.b16 %v2005, %v2004
        %v2012 = vpack.c.b16 %v2007, %v2006
        %v2013 = vpack.c.b16 %v2009, %v2008
        %vm2018 = vcmask 523264
        %v2020 = vsel %vm2018, %v1989, 0
        %v2023 = vsel %vm2018, %v1990, 0
        %2025 = vmatpush.bf16.msra.mxu0 0
        %2026 = vmatpush.bf16.msra.mxu0 0
        %2027 = vmatpush.bf16.msra.mxu0 0
        %2028 = vmatpush.bf16.msra.mxu0 0
        %2029 = vmatpush.bf16.msra.mxu0 %v2013
        %2030 = vmatpush.bf16.msra.mxu0 %v2012
        %2031 = vmatpush.bf16.msra.mxu0 %v2011
        %2032 = vmatpush.bf16.msra.mxu0 %v2010
        %2033 = vmatmul.bf16.gmra.mxu0 %v2020
        %v2034 = vpop.f32.mrf.mxu0
        %v2035 = vadd.f32 %v1992, %v2034
        %v2036 = vpop.f32.mrf.mxu0
        %v2037 = vadd.f32 %v1992, %v2036
        %2038 = vmatmul.bf16.gmra.mxu0 %v2023
        %v2039 = vpop.f32.mrf.mxu0
        %v2040 = vadd.f32 %v1992, %v2039
        %v2041 = vpop.f32.mrf.mxu0
        %v2042 = vadd.f32 %v1992, %v2041
        %2043 = vdwg.mxu0
        %v2044 = vadd.f32 %v1805, %v2035
        %v2045 = vadd.f32 %v1806, %v2037
        %v2046 = vadd.f32 %v1807, %v2040
        %v2047 = vadd.f32 %v1808, %v2042
        %2048 = vst.msk [vmem:[#allocation2] sm:$0xff] %vm943, %v2044
        %2049 = vst.msk [vmem:[#allocation2 + $0x8] sm:$0xff] %vm943, %v2045
        %2050 = vst.msk [vmem:[#allocation2 + $0x10] sm:$0xff] %vm943, %v2046
        %2051 = vst.msk [vmem:[#allocation2 + $0x18] sm:$0xff] %vm943, %v2047
        %p2052 = scmp.eq.s32.totalorder %s34, 1
        // Predicated region
        $region113: #{_lambda_.5} parent=107 // pred_check
          %p2053 = pneg %p2052
        $region114: #{_lambda_.5} parent=107 // pred_check_branch
          %2055 = sbr.rel (%p2053) target = $region116
        $region115: #{_lambda_.5} parent=107 // pred_region
          %v2056 = vld [vmem:[%s16] sm:$0x1]
          %v2057 = vld [vmem:[%s17] sm:$0x1]
          %v2058 = vsel %vm943, %v2044, 0.0
          %2059 = vadd.xlane.f32.xlu0 %v2058
          %v2060 = vpop.xlane.xlu0 %2059
          %v2061 = vsel %vm943, %v2045, 0.0
          %2062 = vadd.xlane.f32.xlu0 %v2061
          %v2063 = vpop.xlane.xlu0 %2062
          %v2064 = vsel %vm943, %v2046, 0.0
          %2065 = vadd.xlane.f32.xlu0 %v2064
          %v2066 = vpop.xlane.xlu0 %2065
          %v2067 = vsel %vm943, %v2047, 0.0
          %2068 = vadd.xlane.f32.xlu0 %v2067
          %v2069 = vpop.xlane.xlu0 %2068
          %v2070 = vmul.f32 %v2060, %v962
          %v2071 = vmul.f32 %v2063, %v962
          %v2072 = vmul.f32 %v2066, %v962
          %v2073 = vmul.f32 %v2069, %v962
          %v2074 = vsub.f32 %v2044, %v2070
          %v2075 = vsub.f32 %v2045, %v2071
          %v2076 = vsub.f32 %v2046, %v2072
          %v2077 = vsub.f32 %v2047, %v2073
          %v2078 = vmul.f32 %v2074, %v2074
          %v2079 = vmul.f32 %v2075, %v2075
          %v2080 = vmul.f32 %v2076, %v2076
          %v2081 = vmul.f32 %v2077, %v2077
          %v2082 = vsel %vm943, %v2078, 0.0
          %2083 = vadd.xlane.f32.xlu0 %v2082
          %v2084 = vpop.xlane.xlu0 %2083
          %v2085 = vsel %vm943, %v2079, 0.0
          %2086 = vadd.xlane.f32.xlu0 %v2085
          %v2087 = vpop.xlane.xlu0 %2086
          %v2088 = vsel %vm943, %v2080, 0.0
          %2089 = vadd.xlane.f32.xlu0 %v2088
          %v2090 = vpop.xlane.xlu0 %2089
          %v2091 = vsel %vm943, %v2081, 0.0
          %2092 = vadd.xlane.f32.xlu0 %v2091
          %v2093 = vpop.xlane.xlu0 %2092
          %v2094 = vmul.f32 %v2084, %v962
          %v2095 = vmul.f32 %v2087, %v962
          %v2096 = vmul.f32 %v2090, %v962
          %v2097 = vmul.f32 %v2093, %v962
          %v2098 = vadd.f32 %v2094, 1e-06
          %v2099 = vadd.f32 %v2095, 1e-06
          %v2100 = vadd.f32 %v2096, 1e-06
          %v2101 = vadd.f32 %v2097, 1e-06
          %v2102 = vrsqrt.pop %v2098
          %v2103 = vmul.f32 %v2102, %v2098
          %v2104 = vmul.f32 %v2103, %v2102
          %v2105 = vmul.f32 0.5, %v2104
          %v2106 = vsub.f32 1.5, %v2105
          %v2107 = vmul.f32 %v2102, %v2106
          %vm2108 = vweird.f32 %v2098
          %vm2109 = vweird.f32 %v2102
          %vm2110 = vmor %vm2108, %vm2109
          %v2111 = vsel %vm2110, %v2102, %v2107
          %v2112 = vrsqrt.pop %v2099
          %v2113 = vmul.f32 %v2112, %v2099
          %v2114 = vmul.f32 %v2113, %v2112
          %v2115 = vmul.f32 0.5, %v2114
          %v2116 = vsub.f32 1.5, %v2115
          %v2117 = vmul.f32 %v2112, %v2116
          %vm2118 = vweird.f32 %v2099
          %vm2119 = vweird.f32 %v2112
          %vm2120 = vmor %vm2118, %vm2119
          %v2121 = vsel %vm2120, %v2112, %v2117
          %v2122 = vrsqrt.pop %v2100
          %v2123 = vmul.f32 %v2122, %v2100
          %v2124 = vmul.f32 %v2123, %v2122
          %v2125 = vmul.f32 0.5, %v2124
          %v2126 = vsub.f32 1.5, %v2125
          %v2127 = vmul.f32 %v2122, %v2126
          %vm2128 = vweird.f32 %v2100
          %vm2129 = vweird.f32 %v2122
          %vm2130 = vmor %vm2128, %vm2129
          %v2131 = vsel %vm2130, %v2122, %v2127
          %v2132 = vrsqrt.pop %v2101
          %v2133 = vmul.f32 %v2132, %v2101
          %v2134 = vmul.f32 %v2133, %v2132
          %v2135 = vmul.f32 0.5, %v2134
          %v2136 = vsub.f32 1.5, %v2135
          %v2137 = vmul.f32 %v2132, %v2136
          %vm2138 = vweird.f32 %v2101
          %vm2139 = vweird.f32 %v2132
          %vm2140 = vmor %vm2138, %vm2139
          %v2141 = vsel %vm2140, %v2132, %v2137
          %v2142 = vmul.f32 %v2074, %v2111
          %v2143 = vmul.f32 %v2075, %v2121
          %v2144 = vmul.f32 %v2076, %v2131
          %v2145 = vmul.f32 %v2077, %v2141
          %v2147 = vperm.slane %v2056, 0
          %v2149 = vmul.f32 %v2142, %v2147
          %v2150 = vmul.f32 %v2143, %v2147
          %v2151 = vmul.f32 %v2144, %v2147
          %v2152 = vmul.f32 %v2145, %v2147
          %v2154 = vperm.slane %v2057, 0
          %v2156 = vadd.f32 %v2149, %v2154
          %v2157 = vadd.f32 %v2150, %v2154
          %v2158 = vadd.f32 %v2151, %v2154
          %v2159 = vadd.f32 %v2152, %v2154
          %v2160 = vld [vmem:[%s18] sm:$0x1]
          %v2161 = vld [vmem:[%s19] sm:$0x1]
          %v2162 = vsel %vm943, %v2156, 0.0
          %2163 = vadd.xlane.f32.xlu0 %v2162
          %v2164 = vpop.xlane.xlu0 %2163
          %v2165 = vsel %vm943, %v2157, 0.0
          %2166 = vadd.xlane.f32.xlu0 %v2165
          %v2167 = vpop.xlane.xlu0 %2166
          %v2168 = vsel %vm943, %v2158, 0.0
          %2169 = vadd.xlane.f32.xlu0 %v2168
          %v2170 = vpop.xlane.xlu0 %2169
          %v2171 = vsel %vm943, %v2159, 0.0
          %2172 = vadd.xlane.f32.xlu0 %v2171
          %v2173 = vpop.xlane.xlu0 %2172
          %v2174 = vmul.f32 %v2164, %v962
          %v2175 = vmul.f32 %v2167, %v962
          %v2176 = vmul.f32 %v2170, %v962
          %v2177 = vmul.f32 %v2173, %v962
          %v2178 = vsub.f32 %v2156, %v2174
          %v2179 = vsub.f32 %v2157, %v2175
          %v2180 = vsub.f32 %v2158, %v2176
          %v2181 = vsub.f32 %v2159, %v2177
          %v2182 = vmul.f32 %v2178, %v2178
          %v2183 = vmul.f32 %v2179, %v2179
          %v2184 = vmul.f32 %v2180, %v2180
          %v2185 = vmul.f32 %v2181, %v2181
          %v2186 = vsel %vm943, %v2182, 0.0
          %2187 = vadd.xlane.f32.xlu0 %v2186
          %v2188 = vpop.xlane.xlu0 %2187
          %v2189 = vsel %vm943, %v2183, 0.0
          %2190 = vadd.xlane.f32.xlu0 %v2189
          %v2191 = vpop.xlane.xlu0 %2190
          %v2192 = vsel %vm943, %v2184, 0.0
          %2193 = vadd.xlane.f32.xlu0 %v2192
          %v2194 = vpop.xlane.xlu0 %2193
          %v2195 = vsel %vm943, %v2185, 0.0
          %2196 = vadd.xlane.f32.xlu0 %v2195
          %v2197 = vpop.xlane.xlu0 %2196
          %v2198 = vmul.f32 %v2188, %v962
          %v2199 = vmul.f32 %v2191, %v962
          %v2200 = vmul.f32 %v2194, %v962
          %v2201 = vmul.f32 %v2197, %v962
          %v2202 = vadd.f32 %v2198, 1e-05
          %v2203 = vadd.f32 %v2199, 1e-05
          %v2204 = vadd.f32 %v2200, 1e-05
          %v2205 = vadd.f32 %v2201, 1e-05
          %v2206 = vrsqrt.pop %v2202
          %v2207 = vmul.f32 %v2206, %v2202
          %v2208 = vmul.f32 %v2207, %v2206
          %v2209 = vmul.f32 0.5, %v2208
          %v2210 = vsub.f32 1.5, %v2209
          %v2211 = vmul.f32 %v2206, %v2210
          %vm2212 = vweird.f32 %v2202
          %vm2213 = vweird.f32 %v2206
          %vm2214 = vmor %vm2212, %vm2213
          %v2215 = vsel %vm2214, %v2206, %v2211
          %v2216 = vrsqrt.pop %v2203
          %v2217 = vmul.f32 %v2216, %v2203
          %v2218 = vmul.f32 %v2217, %v2216
          %v2219 = vmul.f32 0.5, %v2218
          %v2220 = vsub.f32 1.5, %v2219
          %v2221 = vmul.f32 %v2216, %v2220
          %vm2222 = vweird.f32 %v2203
          %vm2223 = vweird.f32 %v2216
          %vm2224 = vmor %vm2222, %vm2223
          %v2225 = vsel %vm2224, %v2216, %v2221
          %v2226 = vrsqrt.pop %v2204
          %v2227 = vmul.f32 %v2226, %v2204
          %v2228 = vmul.f32 %v2227, %v2226
          %v2229 = vmul.f32 0.5, %v2228
          %v2230 = vsub.f32 1.5, %v2229
          %v2231 = vmul.f32 %v2226, %v2230
          %vm2232 = vweird.f32 %v2204
          %vm2233 = vweird.f32 %v2226
          %vm2234 = vmor %vm2232, %vm2233
          %v2235 = vsel %vm2234, %v2226, %v2231
          %v2236 = vrsqrt.pop %v2205
          %v2237 = vmul.f32 %v2236, %v2205
          %v2238 = vmul.f32 %v2237, %v2236
          %v2239 = vmul.f32 0.5, %v2238
          %v2240 = vsub.f32 1.5, %v2239
          %v2241 = vmul.f32 %v2236, %v2240
          %vm2242 = vweird.f32 %v2205
          %vm2243 = vweird.f32 %v2236
          %vm2244 = vmor %vm2242, %vm2243
          %v2245 = vsel %vm2244, %v2236, %v2241
          %v2246 = vmul.f32 %v2178, %v2215
          %v2247 = vmul.f32 %v2179, %v2225
          %v2248 = vmul.f32 %v2180, %v2235
          %v2249 = vmul.f32 %v2181, %v2245
          %v2251 = vperm.slane %v2160, 0
          %v2253 = vmul.f32 %v2246, %v2251
          %v2254 = vmul.f32 %v2247, %v2251
          %v2255 = vmul.f32 %v2248, %v2251
          %v2256 = vmul.f32 %v2249, %v2251
          %v2258 = vperm.slane %v2161, 0
          %v2260 = vadd.f32 %v2253, %v2258
          %v2261 = vadd.f32 %v2254, %v2258
          %v2262 = vadd.f32 %v2255, %v2258
          %v2263 = vadd.f32 %v2256, %v2258
          %v2264 = vpack.c.bf16 %v2261, %v2260
          %v2265 = vpack.c.bf16 %v2263, %v2262
          %v2266 = vld [vmem:[%s20] sm:$0xf]
          %v2267 = vld [vmem:[%s20 + $0x4] sm:$0xf]
          %v2268 = vld [vmem:[%s20 + $0x8] sm:$0xf]
          %v2269 = vld [vmem:[%s20 + $0xc] sm:$0xf]
          %v2270 = vld [vmem:[%s21] sm:$0x1]
          %v2272 = vperm.slane %v2270, 0
          %v2278 = vunpack.c.l.b16 %v2266
          %v2279 = vunpack.c.l.b16 %v2267
          %v2280 = vunpack.c.l.b16 %v2268
          %v2281 = vunpack.c.l.b16 %v2269
          %v2282 = vpack.c.b16 %v2279, %v2278
          %v2283 = vpack.c.b16 %v2281, %v2280
          %v2287 = vsel %vm943, %v2264, 0
          %v2290 = vsel %vm943, %v2265, 0
          %2292 = vmatpush.bf16.msra.mxu0 0
          %2293 = vmatpush.bf16.msra.mxu0 0
          %2294 = vmatpush.bf16.msra.mxu0 0
          %2295 = vmatpush.bf16.msra.mxu0 0
          %2296 = vmatpush.bf16.msra.mxu0 0
          %2297 = vmatpush.bf16.msra.mxu0 0
          %2298 = vmatpush.bf16.msra.mxu0 %v2283
          %2299 = vmatpush.bf16.msra.mxu0 %v2282
          %2300 = vmatmul.bf16.gmra.mxu0 %v2287
          %v2301 = vpop.f32.mrf.mxu0
          %v2302 = vadd.f32 %v2272, %v2301
          %v2303 = vpop.f32.mrf.mxu0
          %v2304 = vadd.f32 %v2272, %v2303
          %2305 = vmatmul.bf16.gmra.mxu0 %v2290
          %v2306 = vpop.f32.mrf.mxu0
          %v2307 = vadd.f32 %v2272, %v2306
          %v2308 = vpop.f32.mrf.mxu0
          %v2309 = vadd.f32 %v2272, %v2308
          %2310 = vdwg.mxu0
          %vm2311 = vcmask 392192
          %2312 = vst.msk [vmem:[#allocation3] sm:$0xff] %vm2311, %v2302
          %2313 = vst.msk [vmem:[#allocation3 + $0x8] sm:$0xff] %vm2311, %v2304
          %2314 = vst.msk [vmem:[#allocation3 + $0x10] sm:$0xff] %vm2311, %v2307
          %2315 = vst.msk [vmem:[#allocation3 + $0x18] sm:$0xff] %vm2311, %v2309
        $region116: #{_lambda_.5} parent=107 // pred_fallthru
          _
        // Predicated region
        $region117: #{_lambda_.5} parent=107 // pred_check
          %p2316 = pneg %p569
        $region118: #{_lambda_.5} parent=107 // pred_check_branch
          %2318 = sbr.rel (%p2316) target = $region120
        $region119: #{_lambda_.5} parent=107 // pred_region
          %2320 = vsyncadd [#allocation4], 0
          %s2321 = sshll.u32 [#allocation3], 4
          %s2322 = int_to_ptr.vmem [resolvable:$true] %s2321
          %s2323 = sshll.u32 %s22, 4
          %s2324 = int_to_ptr.hbm [resolvable:$true] %s2323
          %2329 = dma.vmem_to_hbm [thread:$0]  %s2322, 512, %s2324, [#allocation4], 128, 128, 8
        $region120: #{_lambda_.5} parent=107 // pred_fallthru
          _
        // Predicated region
        $region121: #{_lambda_.5} parent=107 // pred_check
          %p2330 = pneg %p569
        $region122: #{_lambda_.5} parent=107 // pred_check_branch
          %2332 = sbr.rel (%p2330) target = $region124
        $region123: #{_lambda_.5} parent=107 // pred_region
          %2334 = dma.done [#allocation4], 512
        $region124: #{_lambda_.5} parent=107 // pred_fallthru
          _
      $region108: #{_lambda_.5} parent=5 // pred_fallthru
        _
      %p2335 = scmp.le.s32.totalorder 2, %s29
      // Predicated region
      $region125: #{_lambda_.5} parent=5 // pred_check
        %p2336 = pneg %p2335
      $region126: #{_lambda_.5} parent=5 // pred_check_branch
        %2338 = sbr.rel (%p2336) target = $region128
      $region127: #{_lambda_.5} parent=5 // pred_region
        %s2339 = ssub.s32 %s29, 2
      $region128: #{_lambda_.5} parent=5 // pred_fallthru
        _
    $region6: #{_lambda_.5} parent=1 // loop_footer
      %s33 = sadd.s32 1, %s29
    $region7: #{_lambda_.5} parent=1 // loop_footer_branch
      %28 = sbr.rel target = $region3
    $region8: #{_lambda_.5} parent=1 // loop_exit
      _
    %2340 = vsyncpa [#allocation4], 1
    %s2341 = scalar_lea.sflag [#allocation4], 1
    %2342 = vsyncpa %s2341, 1

</llo_original>
